<compile_context>
chip_gen: v7x
topology: tpu7x:2x2x1
jax: 0.10.0
libtpu: 0.0.40
codegen_flags: <defaults>
</compile_context>

<pallas_src>
import jax
import jax.numpy as jnp
from jax import lax
from jax.experimental import pallas as pl
from jax.experimental.pallas import tpu as pltpu


def make_tandl_kernel(B, T, H, O):
    f32 = jnp.float32

    def kernel(x_ref,                       # (T, B)    time-major LSTM input
               wih_ref, whh_ref, bsum_ref,  # (3, 4)    per-layer LSTM params (layer, gate)
               wl1_ref,                     # (T, O, 1) fc0-scaled LSTM head weight
               xtaps_ref,                   # (3, B, T) pre-shifted conv1 input taps
               wc1_ref, bc1_ref,            # (3, H, 1), (1, H, 1)
               wc3_ref,                     # (3, H, 1)
               bc3_ref,                     # (1,) SMEM scalar
               mup_ref, mdn_ref,            # (T, T)    time-shift matrices
               wl2_ref,                     # (T, O)    fc1-scaled TCN head weight
               bfused_ref,                  # (1, O)    fused biases
               out_l_ref,                   # (O, B)    LSTM branch output (transposed)
               out_t_ref):                  # (B, O)    TCN branch output (+ fused bias)

        # ---------------- LSTM branch: 3 layers, wavefront-fused -------------------
        wiW = wih_ref[...]
        whW = whh_ref[...]
        bW = bsum_ref[...]
        # hoist the (3,1)->(3,B) weight broadcasts out of the recurrence
        wi = [jnp.broadcast_to(wiW[:, g:g + 1], (3, B)) for g in range(4)]
        wh = [jnp.broadcast_to(whW[:, g:g + 1], (3, B)) for g in range(4)]
        bb = [jnp.broadcast_to(bW[:, g:g + 1], (3, B)) for g in range(4)]
        layer_idx = lax.broadcasted_iota(jnp.int32, (3, B), 0)

        def step(t, carry):
            h_st, c_st, acc = carry                                   # (3,B),(3,B),(O,B)
            x_row = x_ref[pl.ds(jnp.minimum(t, T - 1), 1), :]         # (1, B)
            # layer inputs: [x_t, h_layer0(t-1), h_layer1(t-2)]
            xin = jnp.concatenate([x_row, h_st[0:2, :]], axis=0)      # (3, B)
            pre_i = xin * wi[0] + h_st * wh[0] + bb[0]
            pre_f = xin * wi[1] + h_st * wh[1] + bb[1]
            pre_g = xin * wi[2] + h_st * wh[2] + bb[2]
            pre_o = xin * wi[3] + h_st * wh[3] + bb[3]
            i_g = jax.nn.sigmoid(pre_i)
            f_g = jax.nn.sigmoid(pre_f)
            g_g = jnp.tanh(pre_g)
            o_g = jax.nn.sigmoid(pre_o)
            c_cand = f_g * c_st + i_g * g_g
            h_cand = o_g * jnp.tanh(c_cand)
            # layer l is active only while its own time index t-l is in [0, T-1]
            valid = (t >= layer_idx) & (t <= layer_idx + (T - 1))
            h_new = jnp.where(valid, h_cand, h_st)
            c_new = jnp.where(valid, c_cand, c_st)
            # on-the-fly (scaled) head accumulation for layer-2 output at time t-2;
            # h_new[2] is still exactly zero while t < 2, so no extra gating needed.
            w_col = wl1_ref[jnp.maximum(t - 2, 0)]                    # (O, 1)
            acc = acc + w_col * h_new[2:3, :]                         # (O, B)
            return h_new, c_new, acc

        z3 = jnp.zeros((3, B), f32)
        _, _, acc1 = lax.fori_loop(0, T + 2, step,
                                   (z3, z3, jnp.zeros((O, B), f32)),
                                   unroll=True)
        out_l_ref[...] = acc1                                          # (O, B)

        # ---------------- TCN branch ------------------------------------------------
        w1 = wc1_ref[...]                                              # (3, H, 1)
        xt = xtaps_ref[...]                                            # (3, B, T)
        y1 = (bc1_ref[...]
              + w1[0] * xt[0][:, None, :]
              + w1[1] * xt[1][:, None, :]
              + w1[2] * xt[2][:, None, :])                             # (B, H, T)
        y1 = jnp.maximum(y1, 0.0)                                      # ReLU; dropout = id (eval)

        w3 = wc3_ref[...]                                              # (3, H, 1)
        s0 = jnp.sum(y1 * w3[0], axis=1)                               # (B, T)
        s1 = jnp.sum(y1 * w3[1], axis=1)
        s2 = jnp.sum(y1 * w3[2], axis=1)
        # 3-tap conv over time via shift matrices (zero padding at the edges)
        y2 = (s1 + bc3_ref[0]
              + jnp.dot(s0, mup_ref[...], preferred_element_type=f32)
              + jnp.dot(s2, mdn_ref[...], preferred_element_type=f32))
        y2 = jnp.maximum(y2, 0.0)                                      # (B, T)

        x2 = jnp.dot(y2, wl2_ref[...], preferred_element_type=f32)     # (B, O)
        out_t_ref[...] = x2 + bfused_ref[...]

    return kernel


def tandl_forward(x, p):
    B, T, D = x.shape
    assert D == 1, "TandL's fc = nn.Linear(2, 1) forces input_dim == 1"
    O = p["lin1_b"].shape[0]
    H = p["c1_b"].shape[0]
    f32 = jnp.float32

    x_bt = x[:, :, 0].astype(f32)                                      # (B, T)
    x_tb = jnp.transpose(x_bt)                                         # (T, B)

    wih = p["lstm_w_ih"][:, :, 0].astype(f32)                          # (3, 4)
    whh = p["lstm_w_hh"][:, :, 0].astype(f32)                          # (3, 4)
    bsum = (p["lstm_b_ih"] + p["lstm_b_hh"]).astype(f32)               # (3, 4)

    # fold fc = Linear(2 -> 1) into the two heads + one fused bias
    wfc = p["fc_w"][0].astype(f32)                                     # (2,)
    wl1s = (wfc[0] * p["lin1_w"].T).astype(f32)[:, :, None]            # (T, O, 1)
    wl2s = (wfc[1] * p["lin2_w"].T).astype(f32)                        # (T, O)
    bfused = (wfc[0] * p["lin1_b"] + wfc[1] * p["lin2_b"]
              + p["fc_b"]).astype(f32)[None, :]                        # (1, O)

    # wrapper-side zero padding -> pre-shifted conv1 taps (no in-kernel concat)
    xpad = jnp.pad(x_bt, ((0, 0), (1, 1)))                             # (B, T+2)
    xtaps = jnp.stack([xpad[:, k:k + T] for k in range(3)])            # (3, B, T)
    wc1 = jnp.transpose(p["c1_w"][:, 0, :]).astype(f32)[:, :, None]    # (3, H, 1)
    bc1 = p["c1_b"].astype(f32).reshape(1, H, 1)
    wc3 = jnp.transpose(p["c3_w"][0]).astype(f32)[:, :, None]          # (3, H, 1)
    bc3 = p["c3_b"].astype(f32)                                        # (1,)
    m_up = jnp.eye(T, k=1, dtype=f32)                                  # picks y[t-1]
    m_dn = jnp.eye(T, k=-1, dtype=f32)                                 # picks y[t+1]

    vmem = pl.BlockSpec(memory_space=pltpu.MemorySpace.VMEM)
    smem = pl.BlockSpec(memory_space=pltpu.MemorySpace.SMEM)

    out_l, out_t = pl.pallas_call(
        make_tandl_kernel(B, T, H, O),
        out_shape=(jax.ShapeDtypeStruct((O, B), f32),
                   jax.ShapeDtypeStruct((B, O), f32)),
        in_specs=[vmem, vmem, vmem, vmem, vmem,
                  vmem, vmem, vmem, vmem, smem,
                  vmem, vmem, vmem, vmem],
        out_specs=(vmem, vmem),
    )(x_tb, wih, whh, bsum, wl1s,
      xtaps, wc1, bc1, wc3, bc3,
      m_up, m_dn, wl2s, bfused)

    out = out_t + jnp.transpose(out_l)                                 # (B, O) tiny XLA epilogue
    return out[:, :, None]                                             # (B, output_len, 1)


def tandl_reference(x, p):
    """Pure-JAX reference replicating the PyTorch forward (eval mode)."""
    B, T, D = x.shape
    # myLSTM
    seq = x
    for l in range(3):
        W_ih, W_hh = p["lstm_w_ih"][l], p["lstm_w_hh"][l]
        b = p["lstm_b_ih"][l] + p["lstm_b_hh"][l]
        h = jnp.zeros((B, D), jnp.float32)
        c = jnp.zeros((B, D), jnp.float32)
        hs = []
        for t in range(T):
            g = seq[:, t, :] @ W_ih.T + h @ W_hh.T + b
            i = jax.nn.sigmoid(g[:, :D]); f = jax.nn.sigmoid(g[:, D:2 * D])
            gg = jnp.tanh(g[:, 2 * D:3 * D]); o = jax.nn.sigmoid(g[:, 3 * D:])
            c = f * c + i * gg
            h = o * jnp.tanh(c)
            hs.append(h)
        seq = jnp.stack(hs, axis=1)
    x1 = jnp.einsum("btd,ot->bod", seq, p["lin1_w"]) + p["lin1_b"][None, :, None]

    # myTCN (dropout = identity in eval)
    xt = jnp.transpose(x, (0, 2, 1))                       # (B, D, T)

    def conv1d(inp, w, bias):
        pad = jnp.pad(inp, ((0, 0), (0, 0), (1, 1)))
        out = bias[None, :, None]
        for k in range(3):
            out = out + jnp.einsum("oc,bct->bot", w[:, :, k], pad[:, :, k:k + T])
        return out

    y = jax.nn.relu(conv1d(xt, p["c1_w"], p["c1_b"]))
    y = jax.nn.relu(conv1d(y, p["c3_w"], p["c3_b"]))
    x2 = jnp.einsum("bdt,ot->bod", y, p["lin2_w"]) + p["lin2_b"][None, :, None]

    cat = jnp.concatenate([x1, x2], axis=2)                # (B, O, 2)
    return cat @ p["fc_w"].T + p["fc_b"]                   # (B, O, 1)


if __name__ == "__main__":
    B, D, H, T, O = 2, 1, 32, 16, 8                        # input_dim=1, hidden=32, len 16->8

    key = jax.random.PRNGKey(0)
    ks = jax.random.split(key, 16)

    def u(k, shape, s=0.5):
        return jax.random.uniform(k, shape, jnp.float32, -s, s)

    params = {
        "lstm_w_ih": u(ks[0], (3, 4 * D, D)),   # per layer weight_ih (4*hidden, input)
        "lstm_w_hh": u(ks[1], (3, 4 * D, D)),
        "lstm_b_ih": u(ks[2], (3, 4 * D)),
        "lstm_b_hh": u(ks[3], (3, 4 * D)),
        "lin1_w": u(ks[4], (O, T)),             # myLSTM.out
        "lin1_b": u(ks[5], (O,)),
        "c1_w": u(ks[6], (H, D, 3)),            # tcn_1
        "c1_b": u(ks[7], (H,)),
        "c3_w": u(ks[8], (D, H, 3)),            # tcn_3
        "c3_b": u(ks[9], (D,)),
        "lin2_w": u(ks[10], (O, T)),            # myTCN.out
        "lin2_b": u(ks[11], (O,)),
        "fc_w": u(ks[12], (1, 2)),              # TandL.fc
        "fc_b": u(ks[13], (1,)),
    }

    x = jax.random.normal(ks[14], (B, T, D), jnp.float32)

    out = jax.block_until_ready(tandl_forward(x, params))
    ref = jax.block_until_ready(tandl_reference(x, params))

    assert out.shape == (B, O, 1), out.shape
    max_err = float(jnp.max(jnp.abs(out - ref)))
    if max_err > 2e-3:
        raise AssertionError(f"Pallas kernel mismatch vs reference: max abs err {max_err}")

    print("KERNEL_OK")
</pallas_src>

<mosaic_0001>
module attributes {stable_mosaic.version = 11 : i64} {
  func.func @kernel(%arg0: memref<16x2xf32, #tpu.memory_space<vmem>>, %arg1: memref<3x4xf32, #tpu.memory_space<vmem>>, %arg2: memref<3x4xf32, #tpu.memory_space<vmem>>, %arg3: memref<3x4xf32, #tpu.memory_space<vmem>>, %arg4: memref<16x8x1xf32, #tpu.memory_space<vmem>>, %arg5: memref<3x2x16xf32, #tpu.memory_space<vmem>>, %arg6: memref<3x32x1xf32, #tpu.memory_space<vmem>>, %arg7: memref<1x32x1xf32, #tpu.memory_space<vmem>>, %arg8: memref<3x32x1xf32, #tpu.memory_space<vmem>>, %arg9: memref<1xf32, #tpu.memory_space<smem>>, %arg10: memref<16x16xf32, #tpu.memory_space<vmem>>, %arg11: memref<16x16xf32, #tpu.memory_space<vmem>>, %arg12: memref<16x8xf32, #tpu.memory_space<vmem>>, %arg13: memref<1x8xf32, #tpu.memory_space<vmem>>, %arg14: memref<8x2xf32, #tpu.memory_space<vmem>>, %arg15: memref<2x8xf32, #tpu.memory_space<vmem>>) attributes {dimension_semantics = [], scalar_prefetch = 0 : i64, scratch_operands = 0 : i64, tpu.core_type = #tpu.core_type<tc>} {
    %c0 = arith.constant 0 : index
    %c0_0 = arith.constant 0 : index
    %0 = vector.load %arg1[%c0, %c0_0] : memref<3x4xf32, #tpu.memory_space<vmem>>, vector<3x4xf32>
    %c0_1 = arith.constant 0 : index
    %c0_2 = arith.constant 0 : index
    %1 = vector.load %arg2[%c0_1, %c0_2] : memref<3x4xf32, #tpu.memory_space<vmem>>, vector<3x4xf32>
    %c0_3 = arith.constant 0 : index
    %c0_4 = arith.constant 0 : index
    %2 = vector.load %arg3[%c0_3, %c0_4] : memref<3x4xf32, #tpu.memory_space<vmem>>, vector<3x4xf32>
    %3 = vector.extract_strided_slice %0 {offsets = [0, 0], sizes = [3, 1], strides = [1, 1]} : vector<3x4xf32> to vector<3x1xf32>
    %4 = vector.shape_cast %3 : vector<3x1xf32> to vector<3x1xf32>
    %5 = vector.broadcast %4 : vector<3x1xf32> to vector<3x2xf32>
    %6 = vector.extract_strided_slice %0 {offsets = [0, 1], sizes = [3, 1], strides = [1, 1]} : vector<3x4xf32> to vector<3x1xf32>
    %7 = vector.shape_cast %6 : vector<3x1xf32> to vector<3x1xf32>
    %8 = vector.broadcast %7 : vector<3x1xf32> to vector<3x2xf32>
    %9 = vector.extract_strided_slice %0 {offsets = [0, 2], sizes = [3, 1], strides = [1, 1]} : vector<3x4xf32> to vector<3x1xf32>
    %10 = vector.shape_cast %9 : vector<3x1xf32> to vector<3x1xf32>
    %11 = vector.broadcast %10 : vector<3x1xf32> to vector<3x2xf32>
    %12 = vector.extract_strided_slice %0 {offsets = [0, 3], sizes = [3, 1], strides = [1, 1]} : vector<3x4xf32> to vector<3x1xf32>
    %13 = vector.shape_cast %12 : vector<3x1xf32> to vector<3x1xf32>
    %14 = vector.broadcast %13 : vector<3x1xf32> to vector<3x2xf32>
    %15 = vector.extract_strided_slice %1 {offsets = [0, 0], sizes = [3, 1], strides = [1, 1]} : vector<3x4xf32> to vector<3x1xf32>
    %16 = vector.shape_cast %15 : vector<3x1xf32> to vector<3x1xf32>
    %17 = vector.broadcast %16 : vector<3x1xf32> to vector<3x2xf32>
    %18 = vector.extract_strided_slice %1 {offsets = [0, 1], sizes = [3, 1], strides = [1, 1]} : vector<3x4xf32> to vector<3x1xf32>
    %19 = vector.shape_cast %18 : vector<3x1xf32> to vector<3x1xf32>
    %20 = vector.broadcast %19 : vector<3x1xf32> to vector<3x2xf32>
    %21 = vector.extract_strided_slice %1 {offsets = [0, 2], sizes = [3, 1], strides = [1, 1]} : vector<3x4xf32> to vector<3x1xf32>
    %22 = vector.shape_cast %21 : vector<3x1xf32> to vector<3x1xf32>
    %23 = vector.broadcast %22 : vector<3x1xf32> to vector<3x2xf32>
    %24 = vector.extract_strided_slice %1 {offsets = [0, 3], sizes = [3, 1], strides = [1, 1]} : vector<3x4xf32> to vector<3x1xf32>
    %25 = vector.shape_cast %24 : vector<3x1xf32> to vector<3x1xf32>
    %26 = vector.broadcast %25 : vector<3x1xf32> to vector<3x2xf32>
    %27 = vector.extract_strided_slice %2 {offsets = [0, 0], sizes = [3, 1], strides = [1, 1]} : vector<3x4xf32> to vector<3x1xf32>
    %28 = vector.shape_cast %27 : vector<3x1xf32> to vector<3x1xf32>
    %29 = vector.broadcast %28 : vector<3x1xf32> to vector<3x2xf32>
    %30 = vector.extract_strided_slice %2 {offsets = [0, 1], sizes = [3, 1], strides = [1, 1]} : vector<3x4xf32> to vector<3x1xf32>
    %31 = vector.shape_cast %30 : vector<3x1xf32> to vector<3x1xf32>
    %32 = vector.broadcast %31 : vector<3x1xf32> to vector<3x2xf32>
    %33 = vector.extract_strided_slice %2 {offsets = [0, 2], sizes = [3, 1], strides = [1, 1]} : vector<3x4xf32> to vector<3x1xf32>
    %34 = vector.shape_cast %33 : vector<3x1xf32> to vector<3x1xf32>
    %35 = vector.broadcast %34 : vector<3x1xf32> to vector<3x2xf32>
    %36 = vector.extract_strided_slice %2 {offsets = [0, 3], sizes = [3, 1], strides = [1, 1]} : vector<3x4xf32> to vector<3x1xf32>
    %37 = vector.shape_cast %36 : vector<3x1xf32> to vector<3x1xf32>
    %38 = vector.broadcast %37 : vector<3x1xf32> to vector<3x2xf32>
    %39 = tpu.iota {dimensions = array<i32: 0>} : vector<3x2xi32>
    %cst = arith.constant 0.000000e+00 : f32
    %40 = vector.broadcast %cst : f32 to vector<3x2xf32>
    %cst_5 = arith.constant 0.000000e+00 : f32
    %41 = vector.broadcast %cst_5 : f32 to vector<8x2xf32>
    %c0_i32 = arith.constant 0 : i32
    %c15_i32 = arith.constant 15 : i32
    %42 = arith.minsi %c0_i32, %c15_i32 : i32
    %43 = arith.index_cast %42 : i32 to index
    %c0_6 = arith.constant 0 : index
    %44 = vector.load %arg0[%43, %c0_6] : memref<16x2xf32, #tpu.memory_space<vmem>>, vector<1x2xf32>
    %45 = vector.extract_strided_slice %40 {offsets = [0, 0], sizes = [2, 2], strides = [1, 1]} : vector<3x2xf32> to vector<2x2xf32>
    %46 = tpu.concatenate %44, %45 in 0 : vector<1x2xf32>, vector<2x2xf32> -> vector<3x2xf32>
    %47 = arith.mulf %46, %5 : vector<3x2xf32>
    %48 = arith.mulf %40, %17 : vector<3x2xf32>
    %49 = arith.addf %47, %48 : vector<3x2xf32>
    %50 = arith.addf %49, %29 : vector<3x2xf32>
    %51 = arith.mulf %46, %8 : vector<3x2xf32>
    %52 = arith.mulf %40, %20 : vector<3x2xf32>
    %53 = arith.addf %51, %52 : vector<3x2xf32>
    %54 = arith.addf %53, %32 : vector<3x2xf32>
    %55 = arith.mulf %46, %11 : vector<3x2xf32>
    %56 = arith.mulf %40, %23 : vector<3x2xf32>
    %57 = arith.addf %55, %56 : vector<3x2xf32>
    %58 = arith.addf %57, %35 : vector<3x2xf32>
    %59 = arith.mulf %46, %14 : vector<3x2xf32>
    %60 = arith.mulf %40, %26 : vector<3x2xf32>
    %61 = arith.addf %59, %60 : vector<3x2xf32>
    %62 = arith.addf %61, %38 : vector<3x2xf32>
    %63 = arith.negf %50 : vector<3x2xf32>
    %64 = math.exp %63 : vector<3x2xf32>
    %cst_7 = arith.constant 1.000000e+00 : f32
    %65 = vector.broadcast %cst_7 : f32 to vector<3x2xf32>
    %66 = arith.addf %65, %64 : vector<3x2xf32>
    %67 = arith.divf %65, %66 : vector<3x2xf32>
    %68 = arith.negf %54 : vector<3x2xf32>
    %69 = math.exp %68 : vector<3x2xf32>
    %cst_8 = arith.constant 1.000000e+00 : f32
    %70 = vector.broadcast %cst_8 : f32 to vector<3x2xf32>
    %71 = arith.addf %70, %69 : vector<3x2xf32>
    %72 = arith.divf %70, %71 : vector<3x2xf32>
    %73 = math.tanh %58 : vector<3x2xf32>
    %74 = arith.negf %62 : vector<3x2xf32>
    %75 = math.exp %74 : vector<3x2xf32>
    %cst_9 = arith.constant 1.000000e+00 : f32
    %76 = vector.broadcast %cst_9 : f32 to vector<3x2xf32>
    %77 = arith.addf %76, %75 : vector<3x2xf32>
    %78 = arith.divf %76, %77 : vector<3x2xf32>
    %79 = arith.mulf %72, %40 : vector<3x2xf32>
    %80 = arith.mulf %67, %73 : vector<3x2xf32>
    %81 = arith.addf %79, %80 : vector<3x2xf32>
    %82 = math.tanh %81 : vector<3x2xf32>
    %83 = arith.mulf %78, %82 : vector<3x2xf32>
    %84 = vector.broadcast %c0_i32 : i32 to vector<3x2xi32>
    %85 = arith.cmpi sge, %84, %39 : vector<3x2xi32>
    %c15_i32_10 = arith.constant 15 : i32
    %86 = vector.broadcast %c15_i32_10 : i32 to vector<3x2xi32>
    %87 = arith.addi %39, %86 : vector<3x2xi32>
    %88 = vector.broadcast %c0_i32 : i32 to vector<3x2xi32>
    %89 = arith.cmpi sle, %88, %87 : vector<3x2xi32>
    %90 = arith.andi %85, %89 : vector<3x2xi1>
    %91 = arith.select %90, %83, %40 : vector<3x2xi1>, vector<3x2xf32>
    %92 = arith.select %90, %81, %40 : vector<3x2xi1>, vector<3x2xf32>
    %c2_i32 = arith.constant 2 : i32
    %93 = arith.subi %c0_i32, %c2_i32 : i32
    %c0_i32_11 = arith.constant 0 : i32
    %94 = arith.maxsi %93, %c0_i32_11 : i32
    %95 = arith.index_cast %94 : i32 to index
    %c0_12 = arith.constant 0 : index
    %c0_13 = arith.constant 0 : index
    %96 = vector.load %arg4[%95, %c0_12, %c0_13] : memref<16x8x1xf32, #tpu.memory_space<vmem>>, vector<1x8x1xf32>
    %97 = vector.shape_cast %96 : vector<1x8x1xf32> to vector<8x1xf32>
    %98 = vector.extract_strided_slice %91 {offsets = [2, 0], sizes = [1, 2], strides = [1, 1]} : vector<3x2xf32> to vector<1x2xf32>
    %99 = vector.broadcast %97 : vector<8x1xf32> to vector<8x2xf32>
    %100 = vector.broadcast %98 : vector<1x2xf32> to vector<8x2xf32>
    %101 = arith.mulf %99, %100 : vector<8x2xf32>
    %102 = arith.addf %41, %101 : vector<8x2xf32>
    %c1_i32 = arith.constant 1 : i32
    %c15_i32_14 = arith.constant 15 : i32
    %103 = arith.minsi %c1_i32, %c15_i32_14 : i32
    %104 = arith.index_cast %103 : i32 to index
    %c0_15 = arith.constant 0 : index
    %105 = vector.load %arg0[%104, %c0_15] : memref<16x2xf32, #tpu.memory_space<vmem>>, vector<1x2xf32>
    %106 = vector.extract_strided_slice %91 {offsets = [0, 0], sizes = [2, 2], strides = [1, 1]} : vector<3x2xf32> to vector<2x2xf32>
    %107 = tpu.concatenate %105, %106 in 0 : vector<1x2xf32>, vector<2x2xf32> -> vector<3x2xf32>
    %108 = arith.mulf %107, %5 : vector<3x2xf32>
    %109 = arith.mulf %91, %17 : vector<3x2xf32>
    %110 = arith.addf %108, %109 : vector<3x2xf32>
    %111 = arith.addf %110, %29 : vector<3x2xf32>
    %112 = arith.mulf %107, %8 : vector<3x2xf32>
    %113 = arith.mulf %91, %20 : vector<3x2xf32>
    %114 = arith.addf %112, %113 : vector<3x2xf32>
    %115 = arith.addf %114, %32 : vector<3x2xf32>
    %116 = arith.mulf %107, %11 : vector<3x2xf32>
    %117 = arith.mulf %91, %23 : vector<3x2xf32>
    %118 = arith.addf %116, %117 : vector<3x2xf32>
    %119 = arith.addf %118, %35 : vector<3x2xf32>
    %120 = arith.mulf %107, %14 : vector<3x2xf32>
    %121 = arith.mulf %91, %26 : vector<3x2xf32>
    %122 = arith.addf %120, %121 : vector<3x2xf32>
    %123 = arith.addf %122, %38 : vector<3x2xf32>
    %124 = arith.negf %111 : vector<3x2xf32>
    %125 = math.exp %124 : vector<3x2xf32>
    %cst_16 = arith.constant 1.000000e+00 : f32
    %126 = vector.broadcast %cst_16 : f32 to vector<3x2xf32>
    %127 = arith.addf %126, %125 : vector<3x2xf32>
    %128 = arith.divf %126, %127 : vector<3x2xf32>
    %129 = arith.negf %115 : vector<3x2xf32>
    %130 = math.exp %129 : vector<3x2xf32>
    %cst_17 = arith.constant 1.000000e+00 : f32
    %131 = vector.broadcast %cst_17 : f32 to vector<3x2xf32>
    %132 = arith.addf %131, %130 : vector<3x2xf32>
    %133 = arith.divf %131, %132 : vector<3x2xf32>
    %134 = math.tanh %119 : vector<3x2xf32>
    %135 = arith.negf %123 : vector<3x2xf32>
    %136 = math.exp %135 : vector<3x2xf32>
    %cst_18 = arith.constant 1.000000e+00 : f32
    %137 = vector.broadcast %cst_18 : f32 to vector<3x2xf32>
    %138 = arith.addf %137, %136 : vector<3x2xf32>
    %139 = arith.divf %137, %138 : vector<3x2xf32>
    %140 = arith.mulf %133, %92 : vector<3x2xf32>
    %141 = arith.mulf %128, %134 : vector<3x2xf32>
    %142 = arith.addf %140, %141 : vector<3x2xf32>
    %143 = math.tanh %142 : vector<3x2xf32>
    %144 = arith.mulf %139, %143 : vector<3x2xf32>
    %145 = vector.broadcast %c1_i32 : i32 to vector<3x2xi32>
    %146 = arith.cmpi sge, %145, %39 : vector<3x2xi32>
    %c15_i32_19 = arith.constant 15 : i32
    %147 = vector.broadcast %c15_i32_19 : i32 to vector<3x2xi32>
    %148 = arith.addi %39, %147 : vector<3x2xi32>
    %149 = vector.broadcast %c1_i32 : i32 to vector<3x2xi32>
    %150 = arith.cmpi sle, %149, %148 : vector<3x2xi32>
    %151 = arith.andi %146, %150 : vector<3x2xi1>
    %152 = arith.select %151, %144, %91 : vector<3x2xi1>, vector<3x2xf32>
    %153 = arith.select %151, %142, %92 : vector<3x2xi1>, vector<3x2xf32>
    %c2_i32_20 = arith.constant 2 : i32
    %154 = arith.subi %c1_i32, %c2_i32_20 : i32
    %c0_i32_21 = arith.constant 0 : i32
    %155 = arith.maxsi %154, %c0_i32_21 : i32
    %156 = arith.index_cast %155 : i32 to index
    %c0_22 = arith.constant 0 : index
    %c0_23 = arith.constant 0 : index
    %157 = vector.load %arg4[%156, %c0_22, %c0_23] : memref<16x8x1xf32, #tpu.memory_space<vmem>>, vector<1x8x1xf32>
    %158 = vector.shape_cast %157 : vector<1x8x1xf32> to vector<8x1xf32>
    %159 = vector.extract_strided_slice %152 {offsets = [2, 0], sizes = [1, 2], strides = [1, 1]} : vector<3x2xf32> to vector<1x2xf32>
    %160 = vector.broadcast %158 : vector<8x1xf32> to vector<8x2xf32>
    %161 = vector.broadcast %159 : vector<1x2xf32> to vector<8x2xf32>
    %162 = arith.mulf %160, %161 : vector<8x2xf32>
    %163 = arith.addf %102, %162 : vector<8x2xf32>
    %c2_i32_24 = arith.constant 2 : i32
    %c15_i32_25 = arith.constant 15 : i32
    %164 = arith.minsi %c2_i32_24, %c15_i32_25 : i32
    %165 = arith.index_cast %164 : i32 to index
    %c0_26 = arith.constant 0 : index
    %166 = vector.load %arg0[%165, %c0_26] : memref<16x2xf32, #tpu.memory_space<vmem>>, vector<1x2xf32>
    %167 = vector.extract_strided_slice %152 {offsets = [0, 0], sizes = [2, 2], strides = [1, 1]} : vector<3x2xf32> to vector<2x2xf32>
    %168 = tpu.concatenate %166, %167 in 0 : vector<1x2xf32>, vector<2x2xf32> -> vector<3x2xf32>
    %169 = arith.mulf %168, %5 : vector<3x2xf32>
    %170 = arith.mulf %152, %17 : vector<3x2xf32>
    %171 = arith.addf %169, %170 : vector<3x2xf32>
    %172 = arith.addf %171, %29 : vector<3x2xf32>
    %173 = arith.mulf %168, %8 : vector<3x2xf32>
    %174 = arith.mulf %152, %20 : vector<3x2xf32>
    %175 = arith.addf %173, %174 : vector<3x2xf32>
    %176 = arith.addf %175, %32 : vector<3x2xf32>
    %177 = arith.mulf %168, %11 : vector<3x2xf32>
    %178 = arith.mulf %152, %23 : vector<3x2xf32>
    %179 = arith.addf %177, %178 : vector<3x2xf32>
    %180 = arith.addf %179, %35 : vector<3x2xf32>
    %181 = arith.mulf %168, %14 : vector<3x2xf32>
    %182 = arith.mulf %152, %26 : vector<3x2xf32>
    %183 = arith.addf %181, %182 : vector<3x2xf32>
    %184 = arith.addf %183, %38 : vector<3x2xf32>
    %185 = arith.negf %172 : vector<3x2xf32>
    %186 = math.exp %185 : vector<3x2xf32>
    %cst_27 = arith.constant 1.000000e+00 : f32
    %187 = vector.broadcast %cst_27 : f32 to vector<3x2xf32>
    %188 = arith.addf %187, %186 : vector<3x2xf32>
    %189 = arith.divf %187, %188 : vector<3x2xf32>
    %190 = arith.negf %176 : vector<3x2xf32>
    %191 = math.exp %190 : vector<3x2xf32>
    %cst_28 = arith.constant 1.000000e+00 : f32
    %192 = vector.broadcast %cst_28 : f32 to vector<3x2xf32>
    %193 = arith.addf %192, %191 : vector<3x2xf32>
    %194 = arith.divf %192, %193 : vector<3x2xf32>
    %195 = math.tanh %180 : vector<3x2xf32>
    %196 = arith.negf %184 : vector<3x2xf32>
    %197 = math.exp %196 : vector<3x2xf32>
    %cst_29 = arith.constant 1.000000e+00 : f32
    %198 = vector.broadcast %cst_29 : f32 to vector<3x2xf32>
    %199 = arith.addf %198, %197 : vector<3x2xf32>
    %200 = arith.divf %198, %199 : vector<3x2xf32>
    %201 = arith.mulf %194, %153 : vector<3x2xf32>
    %202 = arith.mulf %189, %195 : vector<3x2xf32>
    %203 = arith.addf %201, %202 : vector<3x2xf32>
    %204 = math.tanh %203 : vector<3x2xf32>
    %205 = arith.mulf %200, %204 : vector<3x2xf32>
    %206 = vector.broadcast %c2_i32_24 : i32 to vector<3x2xi32>
    %207 = arith.cmpi sge, %206, %39 : vector<3x2xi32>
    %c15_i32_30 = arith.constant 15 : i32
    %208 = vector.broadcast %c15_i32_30 : i32 to vector<3x2xi32>
    %209 = arith.addi %39, %208 : vector<3x2xi32>
    %210 = vector.broadcast %c2_i32_24 : i32 to vector<3x2xi32>
    %211 = arith.cmpi sle, %210, %209 : vector<3x2xi32>
    %212 = arith.andi %207, %211 : vector<3x2xi1>
    %213 = arith.select %212, %205, %152 : vector<3x2xi1>, vector<3x2xf32>
    %214 = arith.select %212, %203, %153 : vector<3x2xi1>, vector<3x2xf32>
    %c2_i32_31 = arith.constant 2 : i32
    %215 = arith.subi %c2_i32_24, %c2_i32_31 : i32
    %c0_i32_32 = arith.constant 0 : i32
    %216 = arith.maxsi %215, %c0_i32_32 : i32
    %217 = arith.index_cast %216 : i32 to index
    %c0_33 = arith.constant 0 : index
    %c0_34 = arith.constant 0 : index
    %218 = vector.load %arg4[%217, %c0_33, %c0_34] : memref<16x8x1xf32, #tpu.memory_space<vmem>>, vector<1x8x1xf32>
    %219 = vector.shape_cast %218 : vector<1x8x1xf32> to vector<8x1xf32>
    %220 = vector.extract_strided_slice %213 {offsets = [2, 0], sizes = [1, 2], strides = [1, 1]} : vector<3x2xf32> to vector<1x2xf32>
    %221 = vector.broadcast %219 : vector<8x1xf32> to vector<8x2xf32>
    %222 = vector.broadcast %220 : vector<1x2xf32> to vector<8x2xf32>
    %223 = arith.mulf %221, %222 : vector<8x2xf32>
    %224 = arith.addf %163, %223 : vector<8x2xf32>
    %c3_i32 = arith.constant 3 : i32
    %c15_i32_35 = arith.constant 15 : i32
    %225 = arith.minsi %c3_i32, %c15_i32_35 : i32
    %226 = arith.index_cast %225 : i32 to index
    %c0_36 = arith.constant 0 : index
    %227 = vector.load %arg0[%226, %c0_36] : memref<16x2xf32, #tpu.memory_space<vmem>>, vector<1x2xf32>
    %228 = vector.extract_strided_slice %213 {offsets = [0, 0], sizes = [2, 2], strides = [1, 1]} : vector<3x2xf32> to vector<2x2xf32>
    %229 = tpu.concatenate %227, %228 in 0 : vector<1x2xf32>, vector<2x2xf32> -> vector<3x2xf32>
    %230 = arith.mulf %229, %5 : vector<3x2xf32>
    %231 = arith.mulf %213, %17 : vector<3x2xf32>
    %232 = arith.addf %230, %231 : vector<3x2xf32>
    %233 = arith.addf %232, %29 : vector<3x2xf32>
    %234 = arith.mulf %229, %8 : vector<3x2xf32>
    %235 = arith.mulf %213, %20 : vector<3x2xf32>
    %236 = arith.addf %234, %235 : vector<3x2xf32>
    %237 = arith.addf %236, %32 : vector<3x2xf32>
    %238 = arith.mulf %229, %11 : vector<3x2xf32>
    %239 = arith.mulf %213, %23 : vector<3x2xf32>
    %240 = arith.addf %238, %239 : vector<3x2xf32>
    %241 = arith.addf %240, %35 : vector<3x2xf32>
    %242 = arith.mulf %229, %14 : vector<3x2xf32>
    %243 = arith.mulf %213, %26 : vector<3x2xf32>
    %244 = arith.addf %242, %243 : vector<3x2xf32>
    %245 = arith.addf %244, %38 : vector<3x2xf32>
    %246 = arith.negf %233 : vector<3x2xf32>
    %247 = math.exp %246 : vector<3x2xf32>
    %cst_37 = arith.constant 1.000000e+00 : f32
    %248 = vector.broadcast %cst_37 : f32 to vector<3x2xf32>
    %249 = arith.addf %248, %247 : vector<3x2xf32>
    %250 = arith.divf %248, %249 : vector<3x2xf32>
    %251 = arith.negf %237 : vector<3x2xf32>
    %252 = math.exp %251 : vector<3x2xf32>
    %cst_38 = arith.constant 1.000000e+00 : f32
    %253 = vector.broadcast %cst_38 : f32 to vector<3x2xf32>
    %254 = arith.addf %253, %252 : vector<3x2xf32>
    %255 = arith.divf %253, %254 : vector<3x2xf32>
    %256 = math.tanh %241 : vector<3x2xf32>
    %257 = arith.negf %245 : vector<3x2xf32>
    %258 = math.exp %257 : vector<3x2xf32>
    %cst_39 = arith.constant 1.000000e+00 : f32
    %259 = vector.broadcast %cst_39 : f32 to vector<3x2xf32>
    %260 = arith.addf %259, %258 : vector<3x2xf32>
    %261 = arith.divf %259, %260 : vector<3x2xf32>
    %262 = arith.mulf %255, %214 : vector<3x2xf32>
    %263 = arith.mulf %250, %256 : vector<3x2xf32>
    %264 = arith.addf %262, %263 : vector<3x2xf32>
    %265 = math.tanh %264 : vector<3x2xf32>
    %266 = arith.mulf %261, %265 : vector<3x2xf32>
    %267 = vector.broadcast %c3_i32 : i32 to vector<3x2xi32>
    %268 = arith.cmpi sge, %267, %39 : vector<3x2xi32>
    %c15_i32_40 = arith.constant 15 : i32
    %269 = vector.broadcast %c15_i32_40 : i32 to vector<3x2xi32>
    %270 = arith.addi %39, %269 : vector<3x2xi32>
    %271 = vector.broadcast %c3_i32 : i32 to vector<3x2xi32>
    %272 = arith.cmpi sle, %271, %270 : vector<3x2xi32>
    %273 = arith.andi %268, %272 : vector<3x2xi1>
    %274 = arith.select %273, %266, %213 : vector<3x2xi1>, vector<3x2xf32>
    %275 = arith.select %273, %264, %214 : vector<3x2xi1>, vector<3x2xf32>
    %c2_i32_41 = arith.constant 2 : i32
    %276 = arith.subi %c3_i32, %c2_i32_41 : i32
    %c0_i32_42 = arith.constant 0 : i32
    %277 = arith.maxsi %276, %c0_i32_42 : i32
    %278 = arith.index_cast %277 : i32 to index
    %c0_43 = arith.constant 0 : index
    %c0_44 = arith.constant 0 : index
    %279 = vector.load %arg4[%278, %c0_43, %c0_44] : memref<16x8x1xf32, #tpu.memory_space<vmem>>, vector<1x8x1xf32>
    %280 = vector.shape_cast %279 : vector<1x8x1xf32> to vector<8x1xf32>
    %281 = vector.extract_strided_slice %274 {offsets = [2, 0], sizes = [1, 2], strides = [1, 1]} : vector<3x2xf32> to vector<1x2xf32>
    %282 = vector.broadcast %280 : vector<8x1xf32> to vector<8x2xf32>
    %283 = vector.broadcast %281 : vector<1x2xf32> to vector<8x2xf32>
    %284 = arith.mulf %282, %283 : vector<8x2xf32>
    %285 = arith.addf %224, %284 : vector<8x2xf32>
    %c4_i32 = arith.constant 4 : i32
    %c15_i32_45 = arith.constant 15 : i32
    %286 = arith.minsi %c4_i32, %c15_i32_45 : i32
    %287 = arith.index_cast %286 : i32 to index
    %c0_46 = arith.constant 0 : index
    %288 = vector.load %arg0[%287, %c0_46] : memref<16x2xf32, #tpu.memory_space<vmem>>, vector<1x2xf32>
    %289 = vector.extract_strided_slice %274 {offsets = [0, 0], sizes = [2, 2], strides = [1, 1]} : vector<3x2xf32> to vector<2x2xf32>
    %290 = tpu.concatenate %288, %289 in 0 : vector<1x2xf32>, vector<2x2xf32> -> vector<3x2xf32>
    %291 = arith.mulf %290, %5 : vector<3x2xf32>
    %292 = arith.mulf %274, %17 : vector<3x2xf32>
    %293 = arith.addf %291, %292 : vector<3x2xf32>
    %294 = arith.addf %293, %29 : vector<3x2xf32>
    %295 = arith.mulf %290, %8 : vector<3x2xf32>
    %296 = arith.mulf %274, %20 : vector<3x2xf32>
    %297 = arith.addf %295, %296 : vector<3x2xf32>
    %298 = arith.addf %297, %32 : vector<3x2xf32>
    %299 = arith.mulf %290, %11 : vector<3x2xf32>
    %300 = arith.mulf %274, %23 : vector<3x2xf32>
    %301 = arith.addf %299, %300 : vector<3x2xf32>
    %302 = arith.addf %301, %35 : vector<3x2xf32>
    %303 = arith.mulf %290, %14 : vector<3x2xf32>
    %304 = arith.mulf %274, %26 : vector<3x2xf32>
    %305 = arith.addf %303, %304 : vector<3x2xf32>
    %306 = arith.addf %305, %38 : vector<3x2xf32>
    %307 = arith.negf %294 : vector<3x2xf32>
    %308 = math.exp %307 : vector<3x2xf32>
    %cst_47 = arith.constant 1.000000e+00 : f32
    %309 = vector.broadcast %cst_47 : f32 to vector<3x2xf32>
    %310 = arith.addf %309, %308 : vector<3x2xf32>
    %311 = arith.divf %309, %310 : vector<3x2xf32>
    %312 = arith.negf %298 : vector<3x2xf32>
    %313 = math.exp %312 : vector<3x2xf32>
    %cst_48 = arith.constant 1.000000e+00 : f32
    %314 = vector.broadcast %cst_48 : f32 to vector<3x2xf32>
    %315 = arith.addf %314, %313 : vector<3x2xf32>
    %316 = arith.divf %314, %315 : vector<3x2xf32>
    %317 = math.tanh %302 : vector<3x2xf32>
    %318 = arith.negf %306 : vector<3x2xf32>
    %319 = math.exp %318 : vector<3x2xf32>
    %cst_49 = arith.constant 1.000000e+00 : f32
    %320 = vector.broadcast %cst_49 : f32 to vector<3x2xf32>
    %321 = arith.addf %320, %319 : vector<3x2xf32>
    %322 = arith.divf %320, %321 : vector<3x2xf32>
    %323 = arith.mulf %316, %275 : vector<3x2xf32>
    %324 = arith.mulf %311, %317 : vector<3x2xf32>
    %325 = arith.addf %323, %324 : vector<3x2xf32>
    %326 = math.tanh %325 : vector<3x2xf32>
    %327 = arith.mulf %322, %326 : vector<3x2xf32>
    %328 = vector.broadcast %c4_i32 : i32 to vector<3x2xi32>
    %329 = arith.cmpi sge, %328, %39 : vector<3x2xi32>
    %c15_i32_50 = arith.constant 15 : i32
    %330 = vector.broadcast %c15_i32_50 : i32 to vector<3x2xi32>
    %331 = arith.addi %39, %330 : vector<3x2xi32>
    %332 = vector.broadcast %c4_i32 : i32 to vector<3x2xi32>
    %333 = arith.cmpi sle, %332, %331 : vector<3x2xi32>
    %334 = arith.andi %329, %333 : vector<3x2xi1>
    %335 = arith.select %334, %327, %274 : vector<3x2xi1>, vector<3x2xf32>
    %336 = arith.select %334, %325, %275 : vector<3x2xi1>, vector<3x2xf32>
    %c2_i32_51 = arith.constant 2 : i32
    %337 = arith.subi %c4_i32, %c2_i32_51 : i32
    %c0_i32_52 = arith.constant 0 : i32
    %338 = arith.maxsi %337, %c0_i32_52 : i32
    %339 = arith.index_cast %338 : i32 to index
    %c0_53 = arith.constant 0 : index
    %c0_54 = arith.constant 0 : index
    %340 = vector.load %arg4[%339, %c0_53, %c0_54] : memref<16x8x1xf32, #tpu.memory_space<vmem>>, vector<1x8x1xf32>
    %341 = vector.shape_cast %340 : vector<1x8x1xf32> to vector<8x1xf32>
    %342 = vector.extract_strided_slice %335 {offsets = [2, 0], sizes = [1, 2], strides = [1, 1]} : vector<3x2xf32> to vector<1x2xf32>
    %343 = vector.broadcast %341 : vector<8x1xf32> to vector<8x2xf32>
    %344 = vector.broadcast %342 : vector<1x2xf32> to vector<8x2xf32>
    %345 = arith.mulf %343, %344 : vector<8x2xf32>
    %346 = arith.addf %285, %345 : vector<8x2xf32>
    %c5_i32 = arith.constant 5 : i32
    %c15_i32_55 = arith.constant 15 : i32
    %347 = arith.minsi %c5_i32, %c15_i32_55 : i32
    %348 = arith.index_cast %347 : i32 to index
    %c0_56 = arith.constant 0 : index
    %349 = vector.load %arg0[%348, %c0_56] : memref<16x2xf32, #tpu.memory_space<vmem>>, vector<1x2xf32>
    %350 = vector.extract_strided_slice %335 {offsets = [0, 0], sizes = [2, 2], strides = [1, 1]} : vector<3x2xf32> to vector<2x2xf32>
    %351 = tpu.concatenate %349, %350 in 0 : vector<1x2xf32>, vector<2x2xf32> -> vector<3x2xf32>
    %352 = arith.mulf %351, %5 : vector<3x2xf32>
    %353 = arith.mulf %335, %17 : vector<3x2xf32>
    %354 = arith.addf %352, %353 : vector<3x2xf32>
    %355 = arith.addf %354, %29 : vector<3x2xf32>
    %356 = arith.mulf %351, %8 : vector<3x2xf32>
    %357 = arith.mulf %335, %20 : vector<3x2xf32>
    %358 = arith.addf %356, %357 : vector<3x2xf32>
    %359 = arith.addf %358, %32 : vector<3x2xf32>
    %360 = arith.mulf %351, %11 : vector<3x2xf32>
    %361 = arith.mulf %335, %23 : vector<3x2xf32>
    %362 = arith.addf %360, %361 : vector<3x2xf32>
    %363 = arith.addf %362, %35 : vector<3x2xf32>
    %364 = arith.mulf %351, %14 : vector<3x2xf32>
    %365 = arith.mulf %335, %26 : vector<3x2xf32>
    %366 = arith.addf %364, %365 : vector<3x2xf32>
    %367 = arith.addf %366, %38 : vector<3x2xf32>
    %368 = arith.negf %355 : vector<3x2xf32>
    %369 = math.exp %368 : vector<3x2xf32>
    %cst_57 = arith.constant 1.000000e+00 : f32
    %370 = vector.broadcast %cst_57 : f32 to vector<3x2xf32>
    %371 = arith.addf %370, %369 : vector<3x2xf32>
    %372 = arith.divf %370, %371 : vector<3x2xf32>
    %373 = arith.negf %359 : vector<3x2xf32>
    %374 = math.exp %373 : vector<3x2xf32>
    %cst_58 = arith.constant 1.000000e+00 : f32
    %375 = vector.broadcast %cst_58 : f32 to vector<3x2xf32>
    %376 = arith.addf %375, %374 : vector<3x2xf32>
    %377 = arith.divf %375, %376 : vector<3x2xf32>
    %378 = math.tanh %363 : vector<3x2xf32>
    %379 = arith.negf %367 : vector<3x2xf32>
    %380 = math.exp %379 : vector<3x2xf32>
    %cst_59 = arith.constant 1.000000e+00 : f32
    %381 = vector.broadcast %cst_59 : f32 to vector<3x2xf32>
    %382 = arith.addf %381, %380 : vector<3x2xf32>
    %383 = arith.divf %381, %382 : vector<3x2xf32>
    %384 = arith.mulf %377, %336 : vector<3x2xf32>
    %385 = arith.mulf %372, %378 : vector<3x2xf32>
    %386 = arith.addf %384, %385 : vector<3x2xf32>
    %387 = math.tanh %386 : vector<3x2xf32>
    %388 = arith.mulf %383, %387 : vector<3x2xf32>
    %389 = vector.broadcast %c5_i32 : i32 to vector<3x2xi32>
    %390 = arith.cmpi sge, %389, %39 : vector<3x2xi32>
    %c15_i32_60 = arith.constant 15 : i32
    %391 = vector.broadcast %c15_i32_60 : i32 to vector<3x2xi32>
    %392 = arith.addi %39, %391 : vector<3x2xi32>
    %393 = vector.broadcast %c5_i32 : i32 to vector<3x2xi32>
    %394 = arith.cmpi sle, %393, %392 : vector<3x2xi32>
    %395 = arith.andi %390, %394 : vector<3x2xi1>
    %396 = arith.select %395, %388, %335 : vector<3x2xi1>, vector<3x2xf32>
    %397 = arith.select %395, %386, %336 : vector<3x2xi1>, vector<3x2xf32>
    %c2_i32_61 = arith.constant 2 : i32
    %398 = arith.subi %c5_i32, %c2_i32_61 : i32
    %c0_i32_62 = arith.constant 0 : i32
    %399 = arith.maxsi %398, %c0_i32_62 : i32
    %400 = arith.index_cast %399 : i32 to index
    %c0_63 = arith.constant 0 : index
    %c0_64 = arith.constant 0 : index
    %401 = vector.load %arg4[%400, %c0_63, %c0_64] : memref<16x8x1xf32, #tpu.memory_space<vmem>>, vector<1x8x1xf32>
    %402 = vector.shape_cast %401 : vector<1x8x1xf32> to vector<8x1xf32>
    %403 = vector.extract_strided_slice %396 {offsets = [2, 0], sizes = [1, 2], strides = [1, 1]} : vector<3x2xf32> to vector<1x2xf32>
    %404 = vector.broadcast %402 : vector<8x1xf32> to vector<8x2xf32>
    %405 = vector.broadcast %403 : vector<1x2xf32> to vector<8x2xf32>
    %406 = arith.mulf %404, %405 : vector<8x2xf32>
    %407 = arith.addf %346, %406 : vector<8x2xf32>
    %c6_i32 = arith.constant 6 : i32
    %c15_i32_65 = arith.constant 15 : i32
    %408 = arith.minsi %c6_i32, %c15_i32_65 : i32
    %409 = arith.index_cast %408 : i32 to index
    %c0_66 = arith.constant 0 : index
    %410 = vector.load %arg0[%409, %c0_66] : memref<16x2xf32, #tpu.memory_space<vmem>>, vector<1x2xf32>
    %411 = vector.extract_strided_slice %396 {offsets = [0, 0], sizes = [2, 2], strides = [1, 1]} : vector<3x2xf32> to vector<2x2xf32>
    %412 = tpu.concatenate %410, %411 in 0 : vector<1x2xf32>, vector<2x2xf32> -> vector<3x2xf32>
    %413 = arith.mulf %412, %5 : vector<3x2xf32>
    %414 = arith.mulf %396, %17 : vector<3x2xf32>
    %415 = arith.addf %413, %414 : vector<3x2xf32>
    %416 = arith.addf %415, %29 : vector<3x2xf32>
    %417 = arith.mulf %412, %8 : vector<3x2xf32>
    %418 = arith.mulf %396, %20 : vector<3x2xf32>
    %419 = arith.addf %417, %418 : vector<3x2xf32>
    %420 = arith.addf %419, %32 : vector<3x2xf32>
    %421 = arith.mulf %412, %11 : vector<3x2xf32>
    %422 = arith.mulf %396, %23 : vector<3x2xf32>
    %423 = arith.addf %421, %422 : vector<3x2xf32>
    %424 = arith.addf %423, %35 : vector<3x2xf32>
    %425 = arith.mulf %412, %14 : vector<3x2xf32>
    %426 = arith.mulf %396, %26 : vector<3x2xf32>
    %427 = arith.addf %425, %426 : vector<3x2xf32>
    %428 = arith.addf %427, %38 : vector<3x2xf32>
    %429 = arith.negf %416 : vector<3x2xf32>
    %430 = math.exp %429 : vector<3x2xf32>
    %cst_67 = arith.constant 1.000000e+00 : f32
    %431 = vector.broadcast %cst_67 : f32 to vector<3x2xf32>
    %432 = arith.addf %431, %430 : vector<3x2xf32>
    %433 = arith.divf %431, %432 : vector<3x2xf32>
    %434 = arith.negf %420 : vector<3x2xf32>
    %435 = math.exp %434 : vector<3x2xf32>
    %cst_68 = arith.constant 1.000000e+00 : f32
    %436 = vector.broadcast %cst_68 : f32 to vector<3x2xf32>
    %437 = arith.addf %436, %435 : vector<3x2xf32>
    %438 = arith.divf %436, %437 : vector<3x2xf32>
    %439 = math.tanh %424 : vector<3x2xf32>
    %440 = arith.negf %428 : vector<3x2xf32>
    %441 = math.exp %440 : vector<3x2xf32>
    %cst_69 = arith.constant 1.000000e+00 : f32
    %442 = vector.broadcast %cst_69 : f32 to vector<3x2xf32>
    %443 = arith.addf %442, %441 : vector<3x2xf32>
    %444 = arith.divf %442, %443 : vector<3x2xf32>
    %445 = arith.mulf %438, %397 : vector<3x2xf32>
    %446 = arith.mulf %433, %439 : vector<3x2xf32>
    %447 = arith.addf %445, %446 : vector<3x2xf32>
    %448 = math.tanh %447 : vector<3x2xf32>
    %449 = arith.mulf %444, %448 : vector<3x2xf32>
    %450 = vector.broadcast %c6_i32 : i32 to vector<3x2xi32>
    %451 = arith.cmpi sge, %450, %39 : vector<3x2xi32>
    %c15_i32_70 = arith.constant 15 : i32
    %452 = vector.broadcast %c15_i32_70 : i32 to vector<3x2xi32>
    %453 = arith.addi %39, %452 : vector<3x2xi32>
    %454 = vector.broadcast %c6_i32 : i32 to vector<3x2xi32>
    %455 = arith.cmpi sle, %454, %453 : vector<3x2xi32>
    %456 = arith.andi %451, %455 : vector<3x2xi1>
    %457 = arith.select %456, %449, %396 : vector<3x2xi1>, vector<3x2xf32>
    %458 = arith.select %456, %447, %397 : vector<3x2xi1>, vector<3x2xf32>
    %c2_i32_71 = arith.constant 2 : i32
    %459 = arith.subi %c6_i32, %c2_i32_71 : i32
    %c0_i32_72 = arith.constant 0 : i32
    %460 = arith.maxsi %459, %c0_i32_72 : i32
    %461 = arith.index_cast %460 : i32 to index
    %c0_73 = arith.constant 0 : index
    %c0_74 = arith.constant 0 : index
    %462 = vector.load %arg4[%461, %c0_73, %c0_74] : memref<16x8x1xf32, #tpu.memory_space<vmem>>, vector<1x8x1xf32>
    %463 = vector.shape_cast %462 : vector<1x8x1xf32> to vector<8x1xf32>
    %464 = vector.extract_strided_slice %457 {offsets = [2, 0], sizes = [1, 2], strides = [1, 1]} : vector<3x2xf32> to vector<1x2xf32>
    %465 = vector.broadcast %463 : vector<8x1xf32> to vector<8x2xf32>
    %466 = vector.broadcast %464 : vector<1x2xf32> to vector<8x2xf32>
    %467 = arith.mulf %465, %466 : vector<8x2xf32>
    %468 = arith.addf %407, %467 : vector<8x2xf32>
    %c7_i32 = arith.constant 7 : i32
    %c15_i32_75 = arith.constant 15 : i32
    %469 = arith.minsi %c7_i32, %c15_i32_75 : i32
    %470 = arith.index_cast %469 : i32 to index
    %c0_76 = arith.constant 0 : index
    %471 = vector.load %arg0[%470, %c0_76] : memref<16x2xf32, #tpu.memory_space<vmem>>, vector<1x2xf32>
    %472 = vector.extract_strided_slice %457 {offsets = [0, 0], sizes = [2, 2], strides = [1, 1]} : vector<3x2xf32> to vector<2x2xf32>
    %473 = tpu.concatenate %471, %472 in 0 : vector<1x2xf32>, vector<2x2xf32> -> vector<3x2xf32>
    %474 = arith.mulf %473, %5 : vector<3x2xf32>
    %475 = arith.mulf %457, %17 : vector<3x2xf32>
    %476 = arith.addf %474, %475 : vector<3x2xf32>
    %477 = arith.addf %476, %29 : vector<3x2xf32>
    %478 = arith.mulf %473, %8 : vector<3x2xf32>
    %479 = arith.mulf %457, %20 : vector<3x2xf32>
    %480 = arith.addf %478, %479 : vector<3x2xf32>
    %481 = arith.addf %480, %32 : vector<3x2xf32>
    %482 = arith.mulf %473, %11 : vector<3x2xf32>
    %483 = arith.mulf %457, %23 : vector<3x2xf32>
    %484 = arith.addf %482, %483 : vector<3x2xf32>
    %485 = arith.addf %484, %35 : vector<3x2xf32>
    %486 = arith.mulf %473, %14 : vector<3x2xf32>
    %487 = arith.mulf %457, %26 : vector<3x2xf32>
    %488 = arith.addf %486, %487 : vector<3x2xf32>
    %489 = arith.addf %488, %38 : vector<3x2xf32>
    %490 = arith.negf %477 : vector<3x2xf32>
    %491 = math.exp %490 : vector<3x2xf32>
    %cst_77 = arith.constant 1.000000e+00 : f32
    %492 = vector.broadcast %cst_77 : f32 to vector<3x2xf32>
    %493 = arith.addf %492, %491 : vector<3x2xf32>
    %494 = arith.divf %492, %493 : vector<3x2xf32>
    %495 = arith.negf %481 : vector<3x2xf32>
    %496 = math.exp %495 : vector<3x2xf32>
    %cst_78 = arith.constant 1.000000e+00 : f32
    %497 = vector.broadcast %cst_78 : f32 to vector<3x2xf32>
    %498 = arith.addf %497, %496 : vector<3x2xf32>
    %499 = arith.divf %497, %498 : vector<3x2xf32>
    %500 = math.tanh %485 : vector<3x2xf32>
    %501 = arith.negf %489 : vector<3x2xf32>
    %502 = math.exp %501 : vector<3x2xf32>
    %cst_79 = arith.constant 1.000000e+00 : f32
    %503 = vector.broadcast %cst_79 : f32 to vector<3x2xf32>
    %504 = arith.addf %503, %502 : vector<3x2xf32>
    %505 = arith.divf %503, %504 : vector<3x2xf32>
    %506 = arith.mulf %499, %458 : vector<3x2xf32>
    %507 = arith.mulf %494, %500 : vector<3x2xf32>
    %508 = arith.addf %506, %507 : vector<3x2xf32>
    %509 = math.tanh %508 : vector<3x2xf32>
    %510 = arith.mulf %505, %509 : vector<3x2xf32>
    %511 = vector.broadcast %c7_i32 : i32 to vector<3x2xi32>
    %512 = arith.cmpi sge, %511, %39 : vector<3x2xi32>
    %c15_i32_80 = arith.constant 15 : i32
    %513 = vector.broadcast %c15_i32_80 : i32 to vector<3x2xi32>
    %514 = arith.addi %39, %513 : vector<3x2xi32>
    %515 = vector.broadcast %c7_i32 : i32 to vector<3x2xi32>
    %516 = arith.cmpi sle, %515, %514 : vector<3x2xi32>
    %517 = arith.andi %512, %516 : vector<3x2xi1>
    %518 = arith.select %517, %510, %457 : vector<3x2xi1>, vector<3x2xf32>
    %519 = arith.select %517, %508, %458 : vector<3x2xi1>, vector<3x2xf32>
    %c2_i32_81 = arith.constant 2 : i32
    %520 = arith.subi %c7_i32, %c2_i32_81 : i32
    %c0_i32_82 = arith.constant 0 : i32
    %521 = arith.maxsi %520, %c0_i32_82 : i32
    %522 = arith.index_cast %521 : i32 to index
    %c0_83 = arith.constant 0 : index
    %c0_84 = arith.constant 0 : index
    %523 = vector.load %arg4[%522, %c0_83, %c0_84] : memref<16x8x1xf32, #tpu.memory_space<vmem>>, vector<1x8x1xf32>
    %524 = vector.shape_cast %523 : vector<1x8x1xf32> to vector<8x1xf32>
    %525 = vector.extract_strided_slice %518 {offsets = [2, 0], sizes = [1, 2], strides = [1, 1]} : vector<3x2xf32> to vector<1x2xf32>
    %526 = vector.broadcast %524 : vector<8x1xf32> to vector<8x2xf32>
    %527 = vector.broadcast %525 : vector<1x2xf32> to vector<8x2xf32>
    %528 = arith.mulf %526, %527 : vector<8x2xf32>
    %529 = arith.addf %468, %528 : vector<8x2xf32>
    %c8_i32 = arith.constant 8 : i32
    %c15_i32_85 = arith.constant 15 : i32
    %530 = arith.minsi %c8_i32, %c15_i32_85 : i32
    %531 = arith.index_cast %530 : i32 to index
    %c0_86 = arith.constant 0 : index
    %532 = vector.load %arg0[%531, %c0_86] : memref<16x2xf32, #tpu.memory_space<vmem>>, vector<1x2xf32>
    %533 = vector.extract_strided_slice %518 {offsets = [0, 0], sizes = [2, 2], strides = [1, 1]} : vector<3x2xf32> to vector<2x2xf32>
    %534 = tpu.concatenate %532, %533 in 0 : vector<1x2xf32>, vector<2x2xf32> -> vector<3x2xf32>
    %535 = arith.mulf %534, %5 : vector<3x2xf32>
    %536 = arith.mulf %518, %17 : vector<3x2xf32>
    %537 = arith.addf %535, %536 : vector<3x2xf32>
    %538 = arith.addf %537, %29 : vector<3x2xf32>
    %539 = arith.mulf %534, %8 : vector<3x2xf32>
    %540 = arith.mulf %518, %20 : vector<3x2xf32>
    %541 = arith.addf %539, %540 : vector<3x2xf32>
    %542 = arith.addf %541, %32 : vector<3x2xf32>
    %543 = arith.mulf %534, %11 : vector<3x2xf32>
    %544 = arith.mulf %518, %23 : vector<3x2xf32>
    %545 = arith.addf %543, %544 : vector<3x2xf32>
    %546 = arith.addf %545, %35 : vector<3x2xf32>
    %547 = arith.mulf %534, %14 : vector<3x2xf32>
    %548 = arith.mulf %518, %26 : vector<3x2xf32>
    %549 = arith.addf %547, %548 : vector<3x2xf32>
    %550 = arith.addf %549, %38 : vector<3x2xf32>
    %551 = arith.negf %538 : vector<3x2xf32>
    %552 = math.exp %551 : vector<3x2xf32>
    %cst_87 = arith.constant 1.000000e+00 : f32
    %553 = vector.broadcast %cst_87 : f32 to vector<3x2xf32>
    %554 = arith.addf %553, %552 : vector<3x2xf32>
    %555 = arith.divf %553, %554 : vector<3x2xf32>
    %556 = arith.negf %542 : vector<3x2xf32>
    %557 = math.exp %556 : vector<3x2xf32>
    %cst_88 = arith.constant 1.000000e+00 : f32
    %558 = vector.broadcast %cst_88 : f32 to vector<3x2xf32>
    %559 = arith.addf %558, %557 : vector<3x2xf32>
    %560 = arith.divf %558, %559 : vector<3x2xf32>
    %561 = math.tanh %546 : vector<3x2xf32>
    %562 = arith.negf %550 : vector<3x2xf32>
    %563 = math.exp %562 : vector<3x2xf32>
    %cst_89 = arith.constant 1.000000e+00 : f32
    %564 = vector.broadcast %cst_89 : f32 to vector<3x2xf32>
    %565 = arith.addf %564, %563 : vector<3x2xf32>
    %566 = arith.divf %564, %565 : vector<3x2xf32>
    %567 = arith.mulf %560, %519 : vector<3x2xf32>
    %568 = arith.mulf %555, %561 : vector<3x2xf32>
    %569 = arith.addf %567, %568 : vector<3x2xf32>
    %570 = math.tanh %569 : vector<3x2xf32>
    %571 = arith.mulf %566, %570 : vector<3x2xf32>
    %572 = vector.broadcast %c8_i32 : i32 to vector<3x2xi32>
    %573 = arith.cmpi sge, %572, %39 : vector<3x2xi32>
    %c15_i32_90 = arith.constant 15 : i32
    %574 = vector.broadcast %c15_i32_90 : i32 to vector<3x2xi32>
    %575 = arith.addi %39, %574 : vector<3x2xi32>
    %576 = vector.broadcast %c8_i32 : i32 to vector<3x2xi32>
    %577 = arith.cmpi sle, %576, %575 : vector<3x2xi32>
    %578 = arith.andi %573, %577 : vector<3x2xi1>
    %579 = arith.select %578, %571, %518 : vector<3x2xi1>, vector<3x2xf32>
    %580 = arith.select %578, %569, %519 : vector<3x2xi1>, vector<3x2xf32>
    %c2_i32_91 = arith.constant 2 : i32
    %581 = arith.subi %c8_i32, %c2_i32_91 : i32
    %c0_i32_92 = arith.constant 0 : i32
    %582 = arith.maxsi %581, %c0_i32_92 : i32
    %583 = arith.index_cast %582 : i32 to index
    %c0_93 = arith.constant 0 : index
    %c0_94 = arith.constant 0 : index
    %584 = vector.load %arg4[%583, %c0_93, %c0_94] : memref<16x8x1xf32, #tpu.memory_space<vmem>>, vector<1x8x1xf32>
    %585 = vector.shape_cast %584 : vector<1x8x1xf32> to vector<8x1xf32>
    %586 = vector.extract_strided_slice %579 {offsets = [2, 0], sizes = [1, 2], strides = [1, 1]} : vector<3x2xf32> to vector<1x2xf32>
    %587 = vector.broadcast %585 : vector<8x1xf32> to vector<8x2xf32>
    %588 = vector.broadcast %586 : vector<1x2xf32> to vector<8x2xf32>
    %589 = arith.mulf %587, %588 : vector<8x2xf32>
    %590 = arith.addf %529, %589 : vector<8x2xf32>
    %c9_i32 = arith.constant 9 : i32
    %c15_i32_95 = arith.constant 15 : i32
    %591 = arith.minsi %c9_i32, %c15_i32_95 : i32
    %592 = arith.index_cast %591 : i32 to index
    %c0_96 = arith.constant 0 : index
    %593 = vector.load %arg0[%592, %c0_96] : memref<16x2xf32, #tpu.memory_space<vmem>>, vector<1x2xf32>
    %594 = vector.extract_strided_slice %579 {offsets = [0, 0], sizes = [2, 2], strides = [1, 1]} : vector<3x2xf32> to vector<2x2xf32>
    %595 = tpu.concatenate %593, %594 in 0 : vector<1x2xf32>, vector<2x2xf32> -> vector<3x2xf32>
    %596 = arith.mulf %595, %5 : vector<3x2xf32>
    %597 = arith.mulf %579, %17 : vector<3x2xf32>
    %598 = arith.addf %596, %597 : vector<3x2xf32>
    %599 = arith.addf %598, %29 : vector<3x2xf32>
    %600 = arith.mulf %595, %8 : vector<3x2xf32>
    %601 = arith.mulf %579, %20 : vector<3x2xf32>
    %602 = arith.addf %600, %601 : vector<3x2xf32>
    %603 = arith.addf %602, %32 : vector<3x2xf32>
    %604 = arith.mulf %595, %11 : vector<3x2xf32>
    %605 = arith.mulf %579, %23 : vector<3x2xf32>
    %606 = arith.addf %604, %605 : vector<3x2xf32>
    %607 = arith.addf %606, %35 : vector<3x2xf32>
    %608 = arith.mulf %595, %14 : vector<3x2xf32>
    %609 = arith.mulf %579, %26 : vector<3x2xf32>
    %610 = arith.addf %608, %609 : vector<3x2xf32>
    %611 = arith.addf %610, %38 : vector<3x2xf32>
    %612 = arith.negf %599 : vector<3x2xf32>
    %613 = math.exp %612 : vector<3x2xf32>
    %cst_97 = arith.constant 1.000000e+00 : f32
    %614 = vector.broadcast %cst_97 : f32 to vector<3x2xf32>
    %615 = arith.addf %614, %613 : vector<3x2xf32>
    %616 = arith.divf %614, %615 : vector<3x2xf32>
    %617 = arith.negf %603 : vector<3x2xf32>
    %618 = math.exp %617 : vector<3x2xf32>
    %cst_98 = arith.constant 1.000000e+00 : f32
    %619 = vector.broadcast %cst_98 : f32 to vector<3x2xf32>
    %620 = arith.addf %619, %618 : vector<3x2xf32>
    %621 = arith.divf %619, %620 : vector<3x2xf32>
    %622 = math.tanh %607 : vector<3x2xf32>
    %623 = arith.negf %611 : vector<3x2xf32>
    %624 = math.exp %623 : vector<3x2xf32>
    %cst_99 = arith.constant 1.000000e+00 : f32
    %625 = vector.broadcast %cst_99 : f32 to vector<3x2xf32>
    %626 = arith.addf %625, %624 : vector<3x2xf32>
    %627 = arith.divf %625, %626 : vector<3x2xf32>
    %628 = arith.mulf %621, %580 : vector<3x2xf32>
    %629 = arith.mulf %616, %622 : vector<3x2xf32>
    %630 = arith.addf %628, %629 : vector<3x2xf32>
    %631 = math.tanh %630 : vector<3x2xf32>
    %632 = arith.mulf %627, %631 : vector<3x2xf32>
    %633 = vector.broadcast %c9_i32 : i32 to vector<3x2xi32>
    %634 = arith.cmpi sge, %633, %39 : vector<3x2xi32>
    %c15_i32_100 = arith.constant 15 : i32
    %635 = vector.broadcast %c15_i32_100 : i32 to vector<3x2xi32>
    %636 = arith.addi %39, %635 : vector<3x2xi32>
    %637 = vector.broadcast %c9_i32 : i32 to vector<3x2xi32>
    %638 = arith.cmpi sle, %637, %636 : vector<3x2xi32>
    %639 = arith.andi %634, %638 : vector<3x2xi1>
    %640 = arith.select %639, %632, %579 : vector<3x2xi1>, vector<3x2xf32>
    %641 = arith.select %639, %630, %580 : vector<3x2xi1>, vector<3x2xf32>
    %c2_i32_101 = arith.constant 2 : i32
    %642 = arith.subi %c9_i32, %c2_i32_101 : i32
    %c0_i32_102 = arith.constant 0 : i32
    %643 = arith.maxsi %642, %c0_i32_102 : i32
    %644 = arith.index_cast %643 : i32 to index
    %c0_103 = arith.constant 0 : index
    %c0_104 = arith.constant 0 : index
    %645 = vector.load %arg4[%644, %c0_103, %c0_104] : memref<16x8x1xf32, #tpu.memory_space<vmem>>, vector<1x8x1xf32>
    %646 = vector.shape_cast %645 : vector<1x8x1xf32> to vector<8x1xf32>
    %647 = vector.extract_strided_slice %640 {offsets = [2, 0], sizes = [1, 2], strides = [1, 1]} : vector<3x2xf32> to vector<1x2xf32>
    %648 = vector.broadcast %646 : vector<8x1xf32> to vector<8x2xf32>
    %649 = vector.broadcast %647 : vector<1x2xf32> to vector<8x2xf32>
    %650 = arith.mulf %648, %649 : vector<8x2xf32>
    %651 = arith.addf %590, %650 : vector<8x2xf32>
    %c10_i32 = arith.constant 10 : i32
    %c15_i32_105 = arith.constant 15 : i32
    %652 = arith.minsi %c10_i32, %c15_i32_105 : i32
    %653 = arith.index_cast %652 : i32 to index
    %c0_106 = arith.constant 0 : index
    %654 = vector.load %arg0[%653, %c0_106] : memref<16x2xf32, #tpu.memory_space<vmem>>, vector<1x2xf32>
    %655 = vector.extract_strided_slice %640 {offsets = [0, 0], sizes = [2, 2], strides = [1, 1]} : vector<3x2xf32> to vector<2x2xf32>
    %656 = tpu.concatenate %654, %655 in 0 : vector<1x2xf32>, vector<2x2xf32> -> vector<3x2xf32>
    %657 = arith.mulf %656, %5 : vector<3x2xf32>
    %658 = arith.mulf %640, %17 : vector<3x2xf32>
    %659 = arith.addf %657, %658 : vector<3x2xf32>
    %660 = arith.addf %659, %29 : vector<3x2xf32>
    %661 = arith.mulf %656, %8 : vector<3x2xf32>
    %662 = arith.mulf %640, %20 : vector<3x2xf32>
    %663 = arith.addf %661, %662 : vector<3x2xf32>
    %664 = arith.addf %663, %32 : vector<3x2xf32>
    %665 = arith.mulf %656, %11 : vector<3x2xf32>
    %666 = arith.mulf %640, %23 : vector<3x2xf32>
    %667 = arith.addf %665, %666 : vector<3x2xf32>
    %668 = arith.addf %667, %35 : vector<3x2xf32>
    %669 = arith.mulf %656, %14 : vector<3x2xf32>
    %670 = arith.mulf %640, %26 : vector<3x2xf32>
    %671 = arith.addf %669, %670 : vector<3x2xf32>
    %672 = arith.addf %671, %38 : vector<3x2xf32>
    %673 = arith.negf %660 : vector<3x2xf32>
    %674 = math.exp %673 : vector<3x2xf32>
    %cst_107 = arith.constant 1.000000e+00 : f32
    %675 = vector.broadcast %cst_107 : f32 to vector<3x2xf32>
    %676 = arith.addf %675, %674 : vector<3x2xf32>
    %677 = arith.divf %675, %676 : vector<3x2xf32>
    %678 = arith.negf %664 : vector<3x2xf32>
    %679 = math.exp %678 : vector<3x2xf32>
    %cst_108 = arith.constant 1.000000e+00 : f32
    %680 = vector.broadcast %cst_108 : f32 to vector<3x2xf32>
    %681 = arith.addf %680, %679 : vector<3x2xf32>
    %682 = arith.divf %680, %681 : vector<3x2xf32>
    %683 = math.tanh %668 : vector<3x2xf32>
    %684 = arith.negf %672 : vector<3x2xf32>
    %685 = math.exp %684 : vector<3x2xf32>
    %cst_109 = arith.constant 1.000000e+00 : f32
    %686 = vector.broadcast %cst_109 : f32 to vector<3x2xf32>
    %687 = arith.addf %686, %685 : vector<3x2xf32>
    %688 = arith.divf %686, %687 : vector<3x2xf32>
    %689 = arith.mulf %682, %641 : vector<3x2xf32>
    %690 = arith.mulf %677, %683 : vector<3x2xf32>
    %691 = arith.addf %689, %690 : vector<3x2xf32>
    %692 = math.tanh %691 : vector<3x2xf32>
    %693 = arith.mulf %688, %692 : vector<3x2xf32>
    %694 = vector.broadcast %c10_i32 : i32 to vector<3x2xi32>
    %695 = arith.cmpi sge, %694, %39 : vector<3x2xi32>
    %c15_i32_110 = arith.constant 15 : i32
    %696 = vector.broadcast %c15_i32_110 : i32 to vector<3x2xi32>
    %697 = arith.addi %39, %696 : vector<3x2xi32>
    %698 = vector.broadcast %c10_i32 : i32 to vector<3x2xi32>
    %699 = arith.cmpi sle, %698, %697 : vector<3x2xi32>
    %700 = arith.andi %695, %699 : vector<3x2xi1>
    %701 = arith.select %700, %693, %640 : vector<3x2xi1>, vector<3x2xf32>
    %702 = arith.select %700, %691, %641 : vector<3x2xi1>, vector<3x2xf32>
    %c2_i32_111 = arith.constant 2 : i32
    %703 = arith.subi %c10_i32, %c2_i32_111 : i32
    %c0_i32_112 = arith.constant 0 : i32
    %704 = arith.maxsi %703, %c0_i32_112 : i32
    %705 = arith.index_cast %704 : i32 to index
    %c0_113 = arith.constant 0 : index
    %c0_114 = arith.constant 0 : index
    %706 = vector.load %arg4[%705, %c0_113, %c0_114] : memref<16x8x1xf32, #tpu.memory_space<vmem>>, vector<1x8x1xf32>
    %707 = vector.shape_cast %706 : vector<1x8x1xf32> to vector<8x1xf32>
    %708 = vector.extract_strided_slice %701 {offsets = [2, 0], sizes = [1, 2], strides = [1, 1]} : vector<3x2xf32> to vector<1x2xf32>
    %709 = vector.broadcast %707 : vector<8x1xf32> to vector<8x2xf32>
    %710 = vector.broadcast %708 : vector<1x2xf32> to vector<8x2xf32>
    %711 = arith.mulf %709, %710 : vector<8x2xf32>
    %712 = arith.addf %651, %711 : vector<8x2xf32>
    %c11_i32 = arith.constant 11 : i32
    %c15_i32_115 = arith.constant 15 : i32
    %713 = arith.minsi %c11_i32, %c15_i32_115 : i32
    %714 = arith.index_cast %713 : i32 to index
    %c0_116 = arith.constant 0 : index
    %715 = vector.load %arg0[%714, %c0_116] : memref<16x2xf32, #tpu.memory_space<vmem>>, vector<1x2xf32>
    %716 = vector.extract_strided_slice %701 {offsets = [0, 0], sizes = [2, 2], strides = [1, 1]} : vector<3x2xf32> to vector<2x2xf32>
    %717 = tpu.concatenate %715, %716 in 0 : vector<1x2xf32>, vector<2x2xf32> -> vector<3x2xf32>
    %718 = arith.mulf %717, %5 : vector<3x2xf32>
    %719 = arith.mulf %701, %17 : vector<3x2xf32>
    %720 = arith.addf %718, %719 : vector<3x2xf32>
    %721 = arith.addf %720, %29 : vector<3x2xf32>
    %722 = arith.mulf %717, %8 : vector<3x2xf32>
    %723 = arith.mulf %701, %20 : vector<3x2xf32>
    %724 = arith.addf %722, %723 : vector<3x2xf32>
    %725 = arith.addf %724, %32 : vector<3x2xf32>
    %726 = arith.mulf %717, %11 : vector<3x2xf32>
    %727 = arith.mulf %701, %23 : vector<3x2xf32>
    %728 = arith.addf %726, %727 : vector<3x2xf32>
    %729 = arith.addf %728, %35 : vector<3x2xf32>
    %730 = arith.mulf %717, %14 : vector<3x2xf32>
    %731 = arith.mulf %701, %26 : vector<3x2xf32>
    %732 = arith.addf %730, %731 : vector<3x2xf32>
    %733 = arith.addf %732, %38 : vector<3x2xf32>
    %734 = arith.negf %721 : vector<3x2xf32>
    %735 = math.exp %734 : vector<3x2xf32>
    %cst_117 = arith.constant 1.000000e+00 : f32
    %736 = vector.broadcast %cst_117 : f32 to vector<3x2xf32>
    %737 = arith.addf %736, %735 : vector<3x2xf32>
    %738 = arith.divf %736, %737 : vector<3x2xf32>
    %739 = arith.negf %725 : vector<3x2xf32>
    %740 = math.exp %739 : vector<3x2xf32>
    %cst_118 = arith.constant 1.000000e+00 : f32
    %741 = vector.broadcast %cst_118 : f32 to vector<3x2xf32>
    %742 = arith.addf %741, %740 : vector<3x2xf32>
    %743 = arith.divf %741, %742 : vector<3x2xf32>
    %744 = math.tanh %729 : vector<3x2xf32>
    %745 = arith.negf %733 : vector<3x2xf32>
    %746 = math.exp %745 : vector<3x2xf32>
    %cst_119 = arith.constant 1.000000e+00 : f32
    %747 = vector.broadcast %cst_119 : f32 to vector<3x2xf32>
    %748 = arith.addf %747, %746 : vector<3x2xf32>
    %749 = arith.divf %747, %748 : vector<3x2xf32>
    %750 = arith.mulf %743, %702 : vector<3x2xf32>
    %751 = arith.mulf %738, %744 : vector<3x2xf32>
    %752 = arith.addf %750, %751 : vector<3x2xf32>
    %753 = math.tanh %752 : vector<3x2xf32>
    %754 = arith.mulf %749, %753 : vector<3x2xf32>
    %755 = vector.broadcast %c11_i32 : i32 to vector<3x2xi32>
    %756 = arith.cmpi sge, %755, %39 : vector<3x2xi32>
    %c15_i32_120 = arith.constant 15 : i32
    %757 = vector.broadcast %c15_i32_120 : i32 to vector<3x2xi32>
    %758 = arith.addi %39, %757 : vector<3x2xi32>
    %759 = vector.broadcast %c11_i32 : i32 to vector<3x2xi32>
    %760 = arith.cmpi sle, %759, %758 : vector<3x2xi32>
    %761 = arith.andi %756, %760 : vector<3x2xi1>
    %762 = arith.select %761, %754, %701 : vector<3x2xi1>, vector<3x2xf32>
    %763 = arith.select %761, %752, %702 : vector<3x2xi1>, vector<3x2xf32>
    %c2_i32_121 = arith.constant 2 : i32
    %764 = arith.subi %c11_i32, %c2_i32_121 : i32
    %c0_i32_122 = arith.constant 0 : i32
    %765 = arith.maxsi %764, %c0_i32_122 : i32
    %766 = arith.index_cast %765 : i32 to index
    %c0_123 = arith.constant 0 : index
    %c0_124 = arith.constant 0 : index
    %767 = vector.load %arg4[%766, %c0_123, %c0_124] : memref<16x8x1xf32, #tpu.memory_space<vmem>>, vector<1x8x1xf32>
    %768 = vector.shape_cast %767 : vector<1x8x1xf32> to vector<8x1xf32>
    %769 = vector.extract_strided_slice %762 {offsets = [2, 0], sizes = [1, 2], strides = [1, 1]} : vector<3x2xf32> to vector<1x2xf32>
    %770 = vector.broadcast %768 : vector<8x1xf32> to vector<8x2xf32>
    %771 = vector.broadcast %769 : vector<1x2xf32> to vector<8x2xf32>
    %772 = arith.mulf %770, %771 : vector<8x2xf32>
    %773 = arith.addf %712, %772 : vector<8x2xf32>
    %c12_i32 = arith.constant 12 : i32
    %c15_i32_125 = arith.constant 15 : i32
    %774 = arith.minsi %c12_i32, %c15_i32_125 : i32
    %775 = arith.index_cast %774 : i32 to index
    %c0_126 = arith.constant 0 : index
    %776 = vector.load %arg0[%775, %c0_126] : memref<16x2xf32, #tpu.memory_space<vmem>>, vector<1x2xf32>
    %777 = vector.extract_strided_slice %762 {offsets = [0, 0], sizes = [2, 2], strides = [1, 1]} : vector<3x2xf32> to vector<2x2xf32>
    %778 = tpu.concatenate %776, %777 in 0 : vector<1x2xf32>, vector<2x2xf32> -> vector<3x2xf32>
    %779 = arith.mulf %778, %5 : vector<3x2xf32>
    %780 = arith.mulf %762, %17 : vector<3x2xf32>
    %781 = arith.addf %779, %780 : vector<3x2xf32>
    %782 = arith.addf %781, %29 : vector<3x2xf32>
    %783 = arith.mulf %778, %8 : vector<3x2xf32>
    %784 = arith.mulf %762, %20 : vector<3x2xf32>
    %785 = arith.addf %783, %784 : vector<3x2xf32>
    %786 = arith.addf %785, %32 : vector<3x2xf32>
    %787 = arith.mulf %778, %11 : vector<3x2xf32>
    %788 = arith.mulf %762, %23 : vector<3x2xf32>
    %789 = arith.addf %787, %788 : vector<3x2xf32>
    %790 = arith.addf %789, %35 : vector<3x2xf32>
    %791 = arith.mulf %778, %14 : vector<3x2xf32>
    %792 = arith.mulf %762, %26 : vector<3x2xf32>
    %793 = arith.addf %791, %792 : vector<3x2xf32>
    %794 = arith.addf %793, %38 : vector<3x2xf32>
    %795 = arith.negf %782 : vector<3x2xf32>
    %796 = math.exp %795 : vector<3x2xf32>
    %cst_127 = arith.constant 1.000000e+00 : f32
    %797 = vector.broadcast %cst_127 : f32 to vector<3x2xf32>
    %798 = arith.addf %797, %796 : vector<3x2xf32>
    %799 = arith.divf %797, %798 : vector<3x2xf32>
    %800 = arith.negf %786 : vector<3x2xf32>
    %801 = math.exp %800 : vector<3x2xf32>
    %cst_128 = arith.constant 1.000000e+00 : f32
    %802 = vector.broadcast %cst_128 : f32 to vector<3x2xf32>
    %803 = arith.addf %802, %801 : vector<3x2xf32>
    %804 = arith.divf %802, %803 : vector<3x2xf32>
    %805 = math.tanh %790 : vector<3x2xf32>
    %806 = arith.negf %794 : vector<3x2xf32>
    %807 = math.exp %806 : vector<3x2xf32>
    %cst_129 = arith.constant 1.000000e+00 : f32
    %808 = vector.broadcast %cst_129 : f32 to vector<3x2xf32>
    %809 = arith.addf %808, %807 : vector<3x2xf32>
    %810 = arith.divf %808, %809 : vector<3x2xf32>
    %811 = arith.mulf %804, %763 : vector<3x2xf32>
    %812 = arith.mulf %799, %805 : vector<3x2xf32>
    %813 = arith.addf %811, %812 : vector<3x2xf32>
    %814 = math.tanh %813 : vector<3x2xf32>
    %815 = arith.mulf %810, %814 : vector<3x2xf32>
    %816 = vector.broadcast %c12_i32 : i32 to vector<3x2xi32>
    %817 = arith.cmpi sge, %816, %39 : vector<3x2xi32>
    %c15_i32_130 = arith.constant 15 : i32
    %818 = vector.broadcast %c15_i32_130 : i32 to vector<3x2xi32>
    %819 = arith.addi %39, %818 : vector<3x2xi32>
    %820 = vector.broadcast %c12_i32 : i32 to vector<3x2xi32>
    %821 = arith.cmpi sle, %820, %819 : vector<3x2xi32>
    %822 = arith.andi %817, %821 : vector<3x2xi1>
    %823 = arith.select %822, %815, %762 : vector<3x2xi1>, vector<3x2xf32>
    %824 = arith.select %822, %813, %763 : vector<3x2xi1>, vector<3x2xf32>
    %c2_i32_131 = arith.constant 2 : i32
    %825 = arith.subi %c12_i32, %c2_i32_131 : i32
    %c0_i32_132 = arith.constant 0 : i32
    %826 = arith.maxsi %825, %c0_i32_132 : i32
    %827 = arith.index_cast %826 : i32 to index
    %c0_133 = arith.constant 0 : index
    %c0_134 = arith.constant 0 : index
    %828 = vector.load %arg4[%827, %c0_133, %c0_134] : memref<16x8x1xf32, #tpu.memory_space<vmem>>, vector<1x8x1xf32>
    %829 = vector.shape_cast %828 : vector<1x8x1xf32> to vector<8x1xf32>
    %830 = vector.extract_strided_slice %823 {offsets = [2, 0], sizes = [1, 2], strides = [1, 1]} : vector<3x2xf32> to vector<1x2xf32>
    %831 = vector.broadcast %829 : vector<8x1xf32> to vector<8x2xf32>
    %832 = vector.broadcast %830 : vector<1x2xf32> to vector<8x2xf32>
    %833 = arith.mulf %831, %832 : vector<8x2xf32>
    %834 = arith.addf %773, %833 : vector<8x2xf32>
    %c13_i32 = arith.constant 13 : i32
    %c15_i32_135 = arith.constant 15 : i32
    %835 = arith.minsi %c13_i32, %c15_i32_135 : i32
    %836 = arith.index_cast %835 : i32 to index
    %c0_136 = arith.constant 0 : index
    %837 = vector.load %arg0[%836, %c0_136] : memref<16x2xf32, #tpu.memory_space<vmem>>, vector<1x2xf32>
    %838 = vector.extract_strided_slice %823 {offsets = [0, 0], sizes = [2, 2], strides = [1, 1]} : vector<3x2xf32> to vector<2x2xf32>
    %839 = tpu.concatenate %837, %838 in 0 : vector<1x2xf32>, vector<2x2xf32> -> vector<3x2xf32>
    %840 = arith.mulf %839, %5 : vector<3x2xf32>
    %841 = arith.mulf %823, %17 : vector<3x2xf32>
    %842 = arith.addf %840, %841 : vector<3x2xf32>
    %843 = arith.addf %842, %29 : vector<3x2xf32>
    %844 = arith.mulf %839, %8 : vector<3x2xf32>
    %845 = arith.mulf %823, %20 : vector<3x2xf32>
    %846 = arith.addf %844, %845 : vector<3x2xf32>
    %847 = arith.addf %846, %32 : vector<3x2xf32>
    %848 = arith.mulf %839, %11 : vector<3x2xf32>
    %849 = arith.mulf %823, %23 : vector<3x2xf32>
    %850 = arith.addf %848, %849 : vector<3x2xf32>
    %851 = arith.addf %850, %35 : vector<3x2xf32>
    %852 = arith.mulf %839, %14 : vector<3x2xf32>
    %853 = arith.mulf %823, %26 : vector<3x2xf32>
    %854 = arith.addf %852, %853 : vector<3x2xf32>
    %855 = arith.addf %854, %38 : vector<3x2xf32>
    %856 = arith.negf %843 : vector<3x2xf32>
    %857 = math.exp %856 : vector<3x2xf32>
    %cst_137 = arith.constant 1.000000e+00 : f32
    %858 = vector.broadcast %cst_137 : f32 to vector<3x2xf32>
    %859 = arith.addf %858, %857 : vector<3x2xf32>
    %860 = arith.divf %858, %859 : vector<3x2xf32>
    %861 = arith.negf %847 : vector<3x2xf32>
    %862 = math.exp %861 : vector<3x2xf32>
    %cst_138 = arith.constant 1.000000e+00 : f32
    %863 = vector.broadcast %cst_138 : f32 to vector<3x2xf32>
    %864 = arith.addf %863, %862 : vector<3x2xf32>
    %865 = arith.divf %863, %864 : vector<3x2xf32>
    %866 = math.tanh %851 : vector<3x2xf32>
    %867 = arith.negf %855 : vector<3x2xf32>
    %868 = math.exp %867 : vector<3x2xf32>
    %cst_139 = arith.constant 1.000000e+00 : f32
    %869 = vector.broadcast %cst_139 : f32 to vector<3x2xf32>
    %870 = arith.addf %869, %868 : vector<3x2xf32>
    %871 = arith.divf %869, %870 : vector<3x2xf32>
    %872 = arith.mulf %865, %824 : vector<3x2xf32>
    %873 = arith.mulf %860, %866 : vector<3x2xf32>
    %874 = arith.addf %872, %873 : vector<3x2xf32>
    %875 = math.tanh %874 : vector<3x2xf32>
    %876 = arith.mulf %871, %875 : vector<3x2xf32>
    %877 = vector.broadcast %c13_i32 : i32 to vector<3x2xi32>
    %878 = arith.cmpi sge, %877, %39 : vector<3x2xi32>
    %c15_i32_140 = arith.constant 15 : i32
    %879 = vector.broadcast %c15_i32_140 : i32 to vector<3x2xi32>
    %880 = arith.addi %39, %879 : vector<3x2xi32>
    %881 = vector.broadcast %c13_i32 : i32 to vector<3x2xi32>
    %882 = arith.cmpi sle, %881, %880 : vector<3x2xi32>
    %883 = arith.andi %878, %882 : vector<3x2xi1>
    %884 = arith.select %883, %876, %823 : vector<3x2xi1>, vector<3x2xf32>
    %885 = arith.select %883, %874, %824 : vector<3x2xi1>, vector<3x2xf32>
    %c2_i32_141 = arith.constant 2 : i32
    %886 = arith.subi %c13_i32, %c2_i32_141 : i32
    %c0_i32_142 = arith.constant 0 : i32
    %887 = arith.maxsi %886, %c0_i32_142 : i32
    %888 = arith.index_cast %887 : i32 to index
    %c0_143 = arith.constant 0 : index
    %c0_144 = arith.constant 0 : index
    %889 = vector.load %arg4[%888, %c0_143, %c0_144] : memref<16x8x1xf32, #tpu.memory_space<vmem>>, vector<1x8x1xf32>
    %890 = vector.shape_cast %889 : vector<1x8x1xf32> to vector<8x1xf32>
    %891 = vector.extract_strided_slice %884 {offsets = [2, 0], sizes = [1, 2], strides = [1, 1]} : vector<3x2xf32> to vector<1x2xf32>
    %892 = vector.broadcast %890 : vector<8x1xf32> to vector<8x2xf32>
    %893 = vector.broadcast %891 : vector<1x2xf32> to vector<8x2xf32>
    %894 = arith.mulf %892, %893 : vector<8x2xf32>
    %895 = arith.addf %834, %894 : vector<8x2xf32>
    %c14_i32 = arith.constant 14 : i32
    %c15_i32_145 = arith.constant 15 : i32
    %896 = arith.minsi %c14_i32, %c15_i32_145 : i32
    %897 = arith.index_cast %896 : i32 to index
    %c0_146 = arith.constant 0 : index
    %898 = vector.load %arg0[%897, %c0_146] : memref<16x2xf32, #tpu.memory_space<vmem>>, vector<1x2xf32>
    %899 = vector.extract_strided_slice %884 {offsets = [0, 0], sizes = [2, 2], strides = [1, 1]} : vector<3x2xf32> to vector<2x2xf32>
    %900 = tpu.concatenate %898, %899 in 0 : vector<1x2xf32>, vector<2x2xf32> -> vector<3x2xf32>
    %901 = arith.mulf %900, %5 : vector<3x2xf32>
    %902 = arith.mulf %884, %17 : vector<3x2xf32>
    %903 = arith.addf %901, %902 : vector<3x2xf32>
    %904 = arith.addf %903, %29 : vector<3x2xf32>
    %905 = arith.mulf %900, %8 : vector<3x2xf32>
    %906 = arith.mulf %884, %20 : vector<3x2xf32>
    %907 = arith.addf %905, %906 : vector<3x2xf32>
    %908 = arith.addf %907, %32 : vector<3x2xf32>
    %909 = arith.mulf %900, %11 : vector<3x2xf32>
    %910 = arith.mulf %884, %23 : vector<3x2xf32>
    %911 = arith.addf %909, %910 : vector<3x2xf32>
    %912 = arith.addf %911, %35 : vector<3x2xf32>
    %913 = arith.mulf %900, %14 : vector<3x2xf32>
    %914 = arith.mulf %884, %26 : vector<3x2xf32>
    %915 = arith.addf %913, %914 : vector<3x2xf32>
    %916 = arith.addf %915, %38 : vector<3x2xf32>
    %917 = arith.negf %904 : vector<3x2xf32>
    %918 = math.exp %917 : vector<3x2xf32>
    %cst_147 = arith.constant 1.000000e+00 : f32
    %919 = vector.broadcast %cst_147 : f32 to vector<3x2xf32>
    %920 = arith.addf %919, %918 : vector<3x2xf32>
    %921 = arith.divf %919, %920 : vector<3x2xf32>
    %922 = arith.negf %908 : vector<3x2xf32>
    %923 = math.exp %922 : vector<3x2xf32>
    %cst_148 = arith.constant 1.000000e+00 : f32
    %924 = vector.broadcast %cst_148 : f32 to vector<3x2xf32>
    %925 = arith.addf %924, %923 : vector<3x2xf32>
    %926 = arith.divf %924, %925 : vector<3x2xf32>
    %927 = math.tanh %912 : vector<3x2xf32>
    %928 = arith.negf %916 : vector<3x2xf32>
    %929 = math.exp %928 : vector<3x2xf32>
    %cst_149 = arith.constant 1.000000e+00 : f32
    %930 = vector.broadcast %cst_149 : f32 to vector<3x2xf32>
    %931 = arith.addf %930, %929 : vector<3x2xf32>
    %932 = arith.divf %930, %931 : vector<3x2xf32>
    %933 = arith.mulf %926, %885 : vector<3x2xf32>
    %934 = arith.mulf %921, %927 : vector<3x2xf32>
    %935 = arith.addf %933, %934 : vector<3x2xf32>
    %936 = math.tanh %935 : vector<3x2xf32>
    %937 = arith.mulf %932, %936 : vector<3x2xf32>
    %938 = vector.broadcast %c14_i32 : i32 to vector<3x2xi32>
    %939 = arith.cmpi sge, %938, %39 : vector<3x2xi32>
    %c15_i32_150 = arith.constant 15 : i32
    %940 = vector.broadcast %c15_i32_150 : i32 to vector<3x2xi32>
    %941 = arith.addi %39, %940 : vector<3x2xi32>
    %942 = vector.broadcast %c14_i32 : i32 to vector<3x2xi32>
    %943 = arith.cmpi sle, %942, %941 : vector<3x2xi32>
    %944 = arith.andi %939, %943 : vector<3x2xi1>
    %945 = arith.select %944, %937, %884 : vector<3x2xi1>, vector<3x2xf32>
    %946 = arith.select %944, %935, %885 : vector<3x2xi1>, vector<3x2xf32>
    %c2_i32_151 = arith.constant 2 : i32
    %947 = arith.subi %c14_i32, %c2_i32_151 : i32
    %c0_i32_152 = arith.constant 0 : i32
    %948 = arith.maxsi %947, %c0_i32_152 : i32
    %949 = arith.index_cast %948 : i32 to index
    %c0_153 = arith.constant 0 : index
    %c0_154 = arith.constant 0 : index
    %950 = vector.load %arg4[%949, %c0_153, %c0_154] : memref<16x8x1xf32, #tpu.memory_space<vmem>>, vector<1x8x1xf32>
    %951 = vector.shape_cast %950 : vector<1x8x1xf32> to vector<8x1xf32>
    %952 = vector.extract_strided_slice %945 {offsets = [2, 0], sizes = [1, 2], strides = [1, 1]} : vector<3x2xf32> to vector<1x2xf32>
    %953 = vector.broadcast %951 : vector<8x1xf32> to vector<8x2xf32>
    %954 = vector.broadcast %952 : vector<1x2xf32> to vector<8x2xf32>
    %955 = arith.mulf %953, %954 : vector<8x2xf32>
    %956 = arith.addf %895, %955 : vector<8x2xf32>
    %c15_i32_155 = arith.constant 15 : i32
    %c15_i32_156 = arith.constant 15 : i32
    %957 = arith.minsi %c15_i32_155, %c15_i32_156 : i32
    %958 = arith.index_cast %957 : i32 to index
    %c0_157 = arith.constant 0 : index
    %959 = vector.load %arg0[%958, %c0_157] : memref<16x2xf32, #tpu.memory_space<vmem>>, vector<1x2xf32>
    %960 = vector.extract_strided_slice %945 {offsets = [0, 0], sizes = [2, 2], strides = [1, 1]} : vector<3x2xf32> to vector<2x2xf32>
    %961 = tpu.concatenate %959, %960 in 0 : vector<1x2xf32>, vector<2x2xf32> -> vector<3x2xf32>
    %962 = arith.mulf %961, %5 : vector<3x2xf32>
    %963 = arith.mulf %945, %17 : vector<3x2xf32>
    %964 = arith.addf %962, %963 : vector<3x2xf32>
    %965 = arith.addf %964, %29 : vector<3x2xf32>
    %966 = arith.mulf %961, %8 : vector<3x2xf32>
    %967 = arith.mulf %945, %20 : vector<3x2xf32>
    %968 = arith.addf %966, %967 : vector<3x2xf32>
    %969 = arith.addf %968, %32 : vector<3x2xf32>
    %970 = arith.mulf %961, %11 : vector<3x2xf32>
    %971 = arith.mulf %945, %23 : vector<3x2xf32>
    %972 = arith.addf %970, %971 : vector<3x2xf32>
    %973 = arith.addf %972, %35 : vector<3x2xf32>
    %974 = arith.mulf %961, %14 : vector<3x2xf32>
    %975 = arith.mulf %945, %26 : vector<3x2xf32>
    %976 = arith.addf %974, %975 : vector<3x2xf32>
    %977 = arith.addf %976, %38 : vector<3x2xf32>
    %978 = arith.negf %965 : vector<3x2xf32>
    %979 = math.exp %978 : vector<3x2xf32>
    %cst_158 = arith.constant 1.000000e+00 : f32
    %980 = vector.broadcast %cst_158 : f32 to vector<3x2xf32>
    %981 = arith.addf %980, %979 : vector<3x2xf32>
    %982 = arith.divf %980, %981 : vector<3x2xf32>
    %983 = arith.negf %969 : vector<3x2xf32>
    %984 = math.exp %983 : vector<3x2xf32>
    %cst_159 = arith.constant 1.000000e+00 : f32
    %985 = vector.broadcast %cst_159 : f32 to vector<3x2xf32>
    %986 = arith.addf %985, %984 : vector<3x2xf32>
    %987 = arith.divf %985, %986 : vector<3x2xf32>
    %988 = math.tanh %973 : vector<3x2xf32>
    %989 = arith.negf %977 : vector<3x2xf32>
    %990 = math.exp %989 : vector<3x2xf32>
    %cst_160 = arith.constant 1.000000e+00 : f32
    %991 = vector.broadcast %cst_160 : f32 to vector<3x2xf32>
    %992 = arith.addf %991, %990 : vector<3x2xf32>
    %993 = arith.divf %991, %992 : vector<3x2xf32>
    %994 = arith.mulf %987, %946 : vector<3x2xf32>
    %995 = arith.mulf %982, %988 : vector<3x2xf32>
    %996 = arith.addf %994, %995 : vector<3x2xf32>
    %997 = math.tanh %996 : vector<3x2xf32>
    %998 = arith.mulf %993, %997 : vector<3x2xf32>
    %999 = vector.broadcast %c15_i32_155 : i32 to vector<3x2xi32>
    %1000 = arith.cmpi sge, %999, %39 : vector<3x2xi32>
    %c15_i32_161 = arith.constant 15 : i32
    %1001 = vector.broadcast %c15_i32_161 : i32 to vector<3x2xi32>
    %1002 = arith.addi %39, %1001 : vector<3x2xi32>
    %1003 = vector.broadcast %c15_i32_155 : i32 to vector<3x2xi32>
    %1004 = arith.cmpi sle, %1003, %1002 : vector<3x2xi32>
    %1005 = arith.andi %1000, %1004 : vector<3x2xi1>
    %1006 = arith.select %1005, %998, %945 : vector<3x2xi1>, vector<3x2xf32>
    %1007 = arith.select %1005, %996, %946 : vector<3x2xi1>, vector<3x2xf32>
    %c2_i32_162 = arith.constant 2 : i32
    %1008 = arith.subi %c15_i32_155, %c2_i32_162 : i32
    %c0_i32_163 = arith.constant 0 : i32
    %1009 = arith.maxsi %1008, %c0_i32_163 : i32
    %1010 = arith.index_cast %1009 : i32 to index
    %c0_164 = arith.constant 0 : index
    %c0_165 = arith.constant 0 : index
    %1011 = vector.load %arg4[%1010, %c0_164, %c0_165] : memref<16x8x1xf32, #tpu.memory_space<vmem>>, vector<1x8x1xf32>
    %1012 = vector.shape_cast %1011 : vector<1x8x1xf32> to vector<8x1xf32>
    %1013 = vector.extract_strided_slice %1006 {offsets = [2, 0], sizes = [1, 2], strides = [1, 1]} : vector<3x2xf32> to vector<1x2xf32>
    %1014 = vector.broadcast %1012 : vector<8x1xf32> to vector<8x2xf32>
    %1015 = vector.broadcast %1013 : vector<1x2xf32> to vector<8x2xf32>
    %1016 = arith.mulf %1014, %1015 : vector<8x2xf32>
    %1017 = arith.addf %956, %1016 : vector<8x2xf32>
    %c16_i32 = arith.constant 16 : i32
    %c15_i32_166 = arith.constant 15 : i32
    %1018 = arith.minsi %c16_i32, %c15_i32_166 : i32
    %1019 = arith.index_cast %1018 : i32 to index
    %c0_167 = arith.constant 0 : index
    %1020 = vector.load %arg0[%1019, %c0_167] : memref<16x2xf32, #tpu.memory_space<vmem>>, vector<1x2xf32>
    %1021 = vector.extract_strided_slice %1006 {offsets = [0, 0], sizes = [2, 2], strides = [1, 1]} : vector<3x2xf32> to vector<2x2xf32>
    %1022 = tpu.concatenate %1020, %1021 in 0 : vector<1x2xf32>, vector<2x2xf32> -> vector<3x2xf32>
    %1023 = arith.mulf %1022, %5 : vector<3x2xf32>
    %1024 = arith.mulf %1006, %17 : vector<3x2xf32>
    %1025 = arith.addf %1023, %1024 : vector<3x2xf32>
    %1026 = arith.addf %1025, %29 : vector<3x2xf32>
    %1027 = arith.mulf %1022, %8 : vector<3x2xf32>
    %1028 = arith.mulf %1006, %20 : vector<3x2xf32>
    %1029 = arith.addf %1027, %1028 : vector<3x2xf32>
    %1030 = arith.addf %1029, %32 : vector<3x2xf32>
    %1031 = arith.mulf %1022, %11 : vector<3x2xf32>
    %1032 = arith.mulf %1006, %23 : vector<3x2xf32>
    %1033 = arith.addf %1031, %1032 : vector<3x2xf32>
    %1034 = arith.addf %1033, %35 : vector<3x2xf32>
    %1035 = arith.mulf %1022, %14 : vector<3x2xf32>
    %1036 = arith.mulf %1006, %26 : vector<3x2xf32>
    %1037 = arith.addf %1035, %1036 : vector<3x2xf32>
    %1038 = arith.addf %1037, %38 : vector<3x2xf32>
    %1039 = arith.negf %1026 : vector<3x2xf32>
    %1040 = math.exp %1039 : vector<3x2xf32>
    %cst_168 = arith.constant 1.000000e+00 : f32
    %1041 = vector.broadcast %cst_168 : f32 to vector<3x2xf32>
    %1042 = arith.addf %1041, %1040 : vector<3x2xf32>
    %1043 = arith.divf %1041, %1042 : vector<3x2xf32>
    %1044 = arith.negf %1030 : vector<3x2xf32>
    %1045 = math.exp %1044 : vector<3x2xf32>
    %cst_169 = arith.constant 1.000000e+00 : f32
    %1046 = vector.broadcast %cst_169 : f32 to vector<3x2xf32>
    %1047 = arith.addf %1046, %1045 : vector<3x2xf32>
    %1048 = arith.divf %1046, %1047 : vector<3x2xf32>
    %1049 = math.tanh %1034 : vector<3x2xf32>
    %1050 = arith.negf %1038 : vector<3x2xf32>
    %1051 = math.exp %1050 : vector<3x2xf32>
    %cst_170 = arith.constant 1.000000e+00 : f32
    %1052 = vector.broadcast %cst_170 : f32 to vector<3x2xf32>
    %1053 = arith.addf %1052, %1051 : vector<3x2xf32>
    %1054 = arith.divf %1052, %1053 : vector<3x2xf32>
    %1055 = arith.mulf %1048, %1007 : vector<3x2xf32>
    %1056 = arith.mulf %1043, %1049 : vector<3x2xf32>
    %1057 = arith.addf %1055, %1056 : vector<3x2xf32>
    %1058 = math.tanh %1057 : vector<3x2xf32>
    %1059 = arith.mulf %1054, %1058 : vector<3x2xf32>
    %1060 = vector.broadcast %c16_i32 : i32 to vector<3x2xi32>
    %1061 = arith.cmpi sge, %1060, %39 : vector<3x2xi32>
    %c15_i32_171 = arith.constant 15 : i32
    %1062 = vector.broadcast %c15_i32_171 : i32 to vector<3x2xi32>
    %1063 = arith.addi %39, %1062 : vector<3x2xi32>
    %1064 = vector.broadcast %c16_i32 : i32 to vector<3x2xi32>
    %1065 = arith.cmpi sle, %1064, %1063 : vector<3x2xi32>
    %1066 = arith.andi %1061, %1065 : vector<3x2xi1>
    %1067 = arith.select %1066, %1059, %1006 : vector<3x2xi1>, vector<3x2xf32>
    %1068 = arith.select %1066, %1057, %1007 : vector<3x2xi1>, vector<3x2xf32>
    %c2_i32_172 = arith.constant 2 : i32
    %1069 = arith.subi %c16_i32, %c2_i32_172 : i32
    %c0_i32_173 = arith.constant 0 : i32
    %1070 = arith.maxsi %1069, %c0_i32_173 : i32
    %1071 = arith.index_cast %1070 : i32 to index
    %c0_174 = arith.constant 0 : index
    %c0_175 = arith.constant 0 : index
    %1072 = vector.load %arg4[%1071, %c0_174, %c0_175] : memref<16x8x1xf32, #tpu.memory_space<vmem>>, vector<1x8x1xf32>
    %1073 = vector.shape_cast %1072 : vector<1x8x1xf32> to vector<8x1xf32>
    %1074 = vector.extract_strided_slice %1067 {offsets = [2, 0], sizes = [1, 2], strides = [1, 1]} : vector<3x2xf32> to vector<1x2xf32>
    %1075 = vector.broadcast %1073 : vector<8x1xf32> to vector<8x2xf32>
    %1076 = vector.broadcast %1074 : vector<1x2xf32> to vector<8x2xf32>
    %1077 = arith.mulf %1075, %1076 : vector<8x2xf32>
    %1078 = arith.addf %1017, %1077 : vector<8x2xf32>
    %c17_i32 = arith.constant 17 : i32
    %c15_i32_176 = arith.constant 15 : i32
    %1079 = arith.minsi %c17_i32, %c15_i32_176 : i32
    %1080 = arith.index_cast %1079 : i32 to index
    %c0_177 = arith.constant 0 : index
    %1081 = vector.load %arg0[%1080, %c0_177] : memref<16x2xf32, #tpu.memory_space<vmem>>, vector<1x2xf32>
    %1082 = vector.extract_strided_slice %1067 {offsets = [0, 0], sizes = [2, 2], strides = [1, 1]} : vector<3x2xf32> to vector<2x2xf32>
    %1083 = tpu.concatenate %1081, %1082 in 0 : vector<1x2xf32>, vector<2x2xf32> -> vector<3x2xf32>
    %1084 = arith.mulf %1083, %5 : vector<3x2xf32>
    %1085 = arith.mulf %1067, %17 : vector<3x2xf32>
    %1086 = arith.addf %1084, %1085 : vector<3x2xf32>
    %1087 = arith.addf %1086, %29 : vector<3x2xf32>
    %1088 = arith.mulf %1083, %8 : vector<3x2xf32>
    %1089 = arith.mulf %1067, %20 : vector<3x2xf32>
    %1090 = arith.addf %1088, %1089 : vector<3x2xf32>
    %1091 = arith.addf %1090, %32 : vector<3x2xf32>
    %1092 = arith.mulf %1083, %11 : vector<3x2xf32>
    %1093 = arith.mulf %1067, %23 : vector<3x2xf32>
    %1094 = arith.addf %1092, %1093 : vector<3x2xf32>
    %1095 = arith.addf %1094, %35 : vector<3x2xf32>
    %1096 = arith.mulf %1083, %14 : vector<3x2xf32>
    %1097 = arith.mulf %1067, %26 : vector<3x2xf32>
    %1098 = arith.addf %1096, %1097 : vector<3x2xf32>
    %1099 = arith.addf %1098, %38 : vector<3x2xf32>
    %1100 = arith.negf %1087 : vector<3x2xf32>
    %1101 = math.exp %1100 : vector<3x2xf32>
    %cst_178 = arith.constant 1.000000e+00 : f32
    %1102 = vector.broadcast %cst_178 : f32 to vector<3x2xf32>
    %1103 = arith.addf %1102, %1101 : vector<3x2xf32>
    %1104 = arith.divf %1102, %1103 : vector<3x2xf32>
    %1105 = arith.negf %1091 : vector<3x2xf32>
    %1106 = math.exp %1105 : vector<3x2xf32>
    %cst_179 = arith.constant 1.000000e+00 : f32
    %1107 = vector.broadcast %cst_179 : f32 to vector<3x2xf32>
    %1108 = arith.addf %1107, %1106 : vector<3x2xf32>
    %1109 = arith.divf %1107, %1108 : vector<3x2xf32>
    %1110 = math.tanh %1095 : vector<3x2xf32>
    %1111 = arith.negf %1099 : vector<3x2xf32>
    %1112 = math.exp %1111 : vector<3x2xf32>
    %cst_180 = arith.constant 1.000000e+00 : f32
    %1113 = vector.broadcast %cst_180 : f32 to vector<3x2xf32>
    %1114 = arith.addf %1113, %1112 : vector<3x2xf32>
    %1115 = arith.divf %1113, %1114 : vector<3x2xf32>
    %1116 = arith.mulf %1109, %1068 : vector<3x2xf32>
    %1117 = arith.mulf %1104, %1110 : vector<3x2xf32>
    %1118 = arith.addf %1116, %1117 : vector<3x2xf32>
    %1119 = math.tanh %1118 : vector<3x2xf32>
    %1120 = arith.mulf %1115, %1119 : vector<3x2xf32>
    %1121 = vector.broadcast %c17_i32 : i32 to vector<3x2xi32>
    %1122 = arith.cmpi sge, %1121, %39 : vector<3x2xi32>
    %c15_i32_181 = arith.constant 15 : i32
    %1123 = vector.broadcast %c15_i32_181 : i32 to vector<3x2xi32>
    %1124 = arith.addi %39, %1123 : vector<3x2xi32>
    %1125 = vector.broadcast %c17_i32 : i32 to vector<3x2xi32>
    %1126 = arith.cmpi sle, %1125, %1124 : vector<3x2xi32>
    %1127 = arith.andi %1122, %1126 : vector<3x2xi1>
    %1128 = arith.select %1127, %1120, %1067 : vector<3x2xi1>, vector<3x2xf32>
    %1129 = arith.select %1127, %1118, %1068 : vector<3x2xi1>, vector<3x2xf32>
    %c2_i32_182 = arith.constant 2 : i32
    %1130 = arith.subi %c17_i32, %c2_i32_182 : i32
    %c0_i32_183 = arith.constant 0 : i32
    %1131 = arith.maxsi %1130, %c0_i32_183 : i32
    %1132 = arith.index_cast %1131 : i32 to index
    %c0_184 = arith.constant 0 : index
    %c0_185 = arith.constant 0 : index
    %1133 = vector.load %arg4[%1132, %c0_184, %c0_185] : memref<16x8x1xf32, #tpu.memory_space<vmem>>, vector<1x8x1xf32>
    %1134 = vector.shape_cast %1133 : vector<1x8x1xf32> to vector<8x1xf32>
    %1135 = vector.extract_strided_slice %1128 {offsets = [2, 0], sizes = [1, 2], strides = [1, 1]} : vector<3x2xf32> to vector<1x2xf32>
    %1136 = vector.broadcast %1134 : vector<8x1xf32> to vector<8x2xf32>
    %1137 = vector.broadcast %1135 : vector<1x2xf32> to vector<8x2xf32>
    %1138 = arith.mulf %1136, %1137 : vector<8x2xf32>
    %1139 = arith.addf %1078, %1138 : vector<8x2xf32>
    %c18_i32 = arith.constant 18 : i32
    %c0_186 = arith.constant 0 : index
    %c0_187 = arith.constant 0 : index
    %1140 = vector.load %arg14[%c0_186, %c0_187] : memref<8x2xf32, #tpu.memory_space<vmem>>, vector<8x2xf32>
    tpu.vector_store %arg14[%c0_186, %c0_187], %1139 {strides = array<i32>} : memref<8x2xf32, #tpu.memory_space<vmem>>, vector<8x2xf32>,
    %c0_188 = arith.constant 0 : index
    %c0_189 = arith.constant 0 : index
    %c0_190 = arith.constant 0 : index
    %1141 = vector.load %arg6[%c0_188, %c0_189, %c0_190] : memref<3x32x1xf32, #tpu.memory_space<vmem>>, vector<3x32x1xf32>
    %c0_191 = arith.constant 0 : index
    %c0_192 = arith.constant 0 : index
    %c0_193 = arith.constant 0 : index
    %1142 = vector.load %arg5[%c0_191, %c0_192, %c0_193] : memref<3x2x16xf32, #tpu.memory_space<vmem>>, vector<3x2x16xf32>
    %c0_194 = arith.constant 0 : index
    %c0_195 = arith.constant 0 : index
    %c0_196 = arith.constant 0 : index
    %1143 = vector.load %arg7[%c0_194, %c0_195, %c0_196] : memref<1x32x1xf32, #tpu.memory_space<vmem>>, vector<1x32x1xf32>
    %1144 = vector.extract_strided_slice %1141 {offsets = [0, 0, 0], sizes = [1, 32, 1], strides = [1, 1, 1]} : vector<3x32x1xf32> to vector<1x32x1xf32>
    %1145 = vector.shape_cast %1144 : vector<1x32x1xf32> to vector<32x1xf32>
    %1146 = vector.extract_strided_slice %1142 {offsets = [0, 0, 0], sizes = [1, 2, 16], strides = [1, 1, 1]} : vector<3x2x16xf32> to vector<1x2x16xf32>
    %1147 = vector.shape_cast %1146 : vector<1x2x16xf32> to vector<2x16xf32>
    %1148 = vector.shape_cast %1147 : vector<2x16xf32> to vector<2x1x16xf32>
    %1149 = vector.shape_cast %1145 : vector<32x1xf32> to vector<1x32x1xf32>
    %1150 = vector.broadcast %1149 : vector<1x32x1xf32> to vector<2x32x16xf32>
    %1151 = vector.broadcast %1148 : vector<2x1x16xf32> to vector<2x32x16xf32>
    %1152 = arith.mulf %1150, %1151 : vector<2x32x16xf32>
    %1153 = vector.broadcast %1143 : vector<1x32x1xf32> to vector<2x32x16xf32>
    %1154 = arith.addf %1153, %1152 : vector<2x32x16xf32>
    %1155 = vector.extract_strided_slice %1141 {offsets = [1, 0, 0], sizes = [1, 32, 1], strides = [1, 1, 1]} : vector<3x32x1xf32> to vector<1x32x1xf32>
    %1156 = vector.shape_cast %1155 : vector<1x32x1xf32> to vector<32x1xf32>
    %1157 = vector.extract_strided_slice %1142 {offsets = [1, 0, 0], sizes = [1, 2, 16], strides = [1, 1, 1]} : vector<3x2x16xf32> to vector<1x2x16xf32>
    %1158 = vector.shape_cast %1157 : vector<1x2x16xf32> to vector<2x16xf32>
    %1159 = vector.shape_cast %1158 : vector<2x16xf32> to vector<2x1x16xf32>
    %1160 = vector.shape_cast %1156 : vector<32x1xf32> to vector<1x32x1xf32>
    %1161 = vector.broadcast %1160 : vector<1x32x1xf32> to vector<2x32x16xf32>
    %1162 = vector.broadcast %1159 : vector<2x1x16xf32> to vector<2x32x16xf32>
    %1163 = arith.mulf %1161, %1162 : vector<2x32x16xf32>
    %1164 = arith.addf %1154, %1163 : vector<2x32x16xf32>
    %1165 = vector.extract_strided_slice %1141 {offsets = [2, 0, 0], sizes = [1, 32, 1], strides = [1, 1, 1]} : vector<3x32x1xf32> to vector<1x32x1xf32>
    %1166 = vector.shape_cast %1165 : vector<1x32x1xf32> to vector<32x1xf32>
    %1167 = vector.extract_strided_slice %1142 {offsets = [2, 0, 0], sizes = [1, 2, 16], strides = [1, 1, 1]} : vector<3x2x16xf32> to vector<1x2x16xf32>
    %1168 = vector.shape_cast %1167 : vector<1x2x16xf32> to vector<2x16xf32>
    %1169 = vector.shape_cast %1168 : vector<2x16xf32> to vector<2x1x16xf32>
    %1170 = vector.shape_cast %1166 : vector<32x1xf32> to vector<1x32x1xf32>
    %1171 = vector.broadcast %1170 : vector<1x32x1xf32> to vector<2x32x16xf32>
    %1172 = vector.broadcast %1169 : vector<2x1x16xf32> to vector<2x32x16xf32>
    %1173 = arith.mulf %1171, %1172 : vector<2x32x16xf32>
    %1174 = arith.addf %1164, %1173 : vector<2x32x16xf32>
    %cst_197 = arith.constant 0.000000e+00 : f32
    %1175 = vector.broadcast %cst_197 : f32 to vector<2x32x16xf32>
    %1176 = arith.maximumf %1174, %1175 : vector<2x32x16xf32>
    %c0_198 = arith.constant 0 : index
    %c0_199 = arith.constant 0 : index
    %c0_200 = arith.constant 0 : index
    %1177 = vector.load %arg8[%c0_198, %c0_199, %c0_200] : memref<3x32x1xf32, #tpu.memory_space<vmem>>, vector<3x32x1xf32>
    %1178 = vector.extract_strided_slice %1177 {offsets = [0, 0, 0], sizes = [1, 32, 1], strides = [1, 1, 1]} : vector<3x32x1xf32> to vector<1x32x1xf32>
    %1179 = vector.shape_cast %1178 : vector<1x32x1xf32> to vector<32x1xf32>
    %1180 = vector.shape_cast %1179 : vector<32x1xf32> to vector<1x32x1xf32>
    %1181 = vector.broadcast %1180 : vector<1x32x1xf32> to vector<2x32x16xf32>
    %1182 = arith.mulf %1176, %1181 : vector<2x32x16xf32>
    %cst_201 = arith.constant dense<0.000000e+00> : vector<2x16xf32>
    %1183 = vector.multi_reduction <add>, %1182, %cst_201 [1] : vector<2x32x16xf32> to vector<2x16xf32>
    %1184 = vector.extract_strided_slice %1177 {offsets = [1, 0, 0], sizes = [1, 32, 1], strides = [1, 1, 1]} : vector<3x32x1xf32> to vector<1x32x1xf32>
    %1185 = vector.shape_cast %1184 : vector<1x32x1xf32> to vector<32x1xf32>
    %1186 = vector.shape_cast %1185 : vector<32x1xf32> to vector<1x32x1xf32>
    %1187 = vector.broadcast %1186 : vector<1x32x1xf32> to vector<2x32x16xf32>
    %1188 = arith.mulf %1176, %1187 : vector<2x32x16xf32>
    %cst_202 = arith.constant dense<0.000000e+00> : vector<2x16xf32>
    %1189 = vector.multi_reduction <add>, %1188, %cst_202 [1] : vector<2x32x16xf32> to vector<2x16xf32>
    %1190 = vector.extract_strided_slice %1177 {offsets = [2, 0, 0], sizes = [1, 32, 1], strides = [1, 1, 1]} : vector<3x32x1xf32> to vector<1x32x1xf32>
    %1191 = vector.shape_cast %1190 : vector<1x32x1xf32> to vector<32x1xf32>
    %1192 = vector.shape_cast %1191 : vector<32x1xf32> to vector<1x32x1xf32>
    %1193 = vector.broadcast %1192 : vector<1x32x1xf32> to vector<2x32x16xf32>
    %1194 = arith.mulf %1176, %1193 : vector<2x32x16xf32>
    %cst_203 = arith.constant dense<0.000000e+00> : vector<2x16xf32>
    %1195 = vector.multi_reduction <add>, %1194, %cst_203 [1] : vector<2x32x16xf32> to vector<2x16xf32>
    %c0_204 = arith.constant 0 : index
    %1196 = memref.load %arg9[%c0_204] : memref<1xf32, #tpu.memory_space<smem>>
    %1197 = vector.broadcast %1196 : f32 to vector<2x16xf32>
    %1198 = arith.addf %1189, %1197 : vector<2x16xf32>
    %c0_205 = arith.constant 0 : index
    %c0_206 = arith.constant 0 : index
    %1199 = vector.load %arg10[%c0_205, %c0_206] : memref<16x16xf32, #tpu.memory_space<vmem>>, vector<16x16xf32>
    %cst_207 = arith.constant dense<0.000000e+00> : vector<2x16xf32>
    %1200 = tpu.matmul %1183, %1199, %cst_207 {dimension_numbers = #tpu.dot_dimension_numbers<[1], [0], [0], [1], [0, 0, 1, 1], [], []>} : vector<2x16xf32>, vector<16x16xf32>, vector<2x16xf32> -> vector<2x16xf32>
    %1201 = arith.addf %1198, %1200 : vector<2x16xf32>
    %c0_208 = arith.constant 0 : index
    %c0_209 = arith.constant 0 : index
    %1202 = vector.load %arg11[%c0_208, %c0_209] : memref<16x16xf32, #tpu.memory_space<vmem>>, vector<16x16xf32>
    %cst_210 = arith.constant dense<0.000000e+00> : vector<2x16xf32>
    %1203 = tpu.matmul %1195, %1202, %cst_210 {dimension_numbers = #tpu.dot_dimension_numbers<[1], [0], [0], [1], [0, 0, 1, 1], [], []>} : vector<2x16xf32>, vector<16x16xf32>, vector<2x16xf32> -> vector<2x16xf32>
    %1204 = arith.addf %1201, %1203 : vector<2x16xf32>
    %cst_211 = arith.constant 0.000000e+00 : f32
    %1205 = vector.broadcast %cst_211 : f32 to vector<2x16xf32>
    %1206 = arith.maximumf %1204, %1205 : vector<2x16xf32>
    %c0_212 = arith.constant 0 : index
    %c0_213 = arith.constant 0 : index
    %1207 = vector.load %arg12[%c0_212, %c0_213] : memref<16x8xf32, #tpu.memory_space<vmem>>, vector<16x8xf32>
    %cst_214 = arith.constant dense<0.000000e+00> : vector<2x8xf32>
    %1208 = tpu.matmul %1206, %1207, %cst_214 {dimension_numbers = #tpu.dot_dimension_numbers<[1], [0], [0], [1], [0, 0, 1, 1], [], []>} : vector<2x16xf32>, vector<16x8xf32>, vector<2x8xf32> -> vector<2x8xf32>
    %c0_215 = arith.constant 0 : index
    %c0_216 = arith.constant 0 : index
    %1209 = vector.load %arg13[%c0_215, %c0_216] : memref<1x8xf32, #tpu.memory_space<vmem>>, vector<1x8xf32>
    %1210 = vector.broadcast %1209 : vector<1x8xf32> to vector<2x8xf32>
    %1211 = arith.addf %1208, %1210 : vector<2x8xf32>
    %c0_217 = arith.constant 0 : index
    %c0_218 = arith.constant 0 : index
    %1212 = vector.load %arg15[%c0_217, %c0_218] : memref<2x8xf32, #tpu.memory_space<vmem>>, vector<2x8xf32>
    tpu.vector_store %arg15[%c0_217, %c0_218], %1211 {strides = array<i32>} : memref<2x8xf32, #tpu.memory_space<vmem>>, vector<2x8xf32>,
    return
  }
}

</mosaic_0001>

<llo_original>
// kernel: tpu_custom_call.1
$region0: #{tpu_custom_call.1}
  #allocation0 [shape = 'u32[]', space=smem, size = 0x4, offset = 0x4, fixed_abs, tag = 'smem constant byte address 0x4 - core index']
  #allocation1 [shape = 'u32[144,128]{1,0:T(1,128)}', space=vmem, size = 0x12000, scoped, tag = 'internal scratch']
  #allocation2 [shape = 'f32[1]{0:T(128)S(6)}', space=smem, size = 0x200, scoped, tag = 'scoped memory for tpu_custom_call.1']
  %s0 = inlined_call_operand.vmem [shape: f32[16,2], index: 0, kind: input, shape index: {}]
  %s1 = inlined_call_operand.vmem [shape: f32[3,4], index: 1, kind: input, shape index: {}]
  %s2 = inlined_call_operand.vmem [shape: f32[3,4], index: 2, kind: input, shape index: {}]
  %s3 = inlined_call_operand.vmem [shape: f32[3,4], index: 3, kind: input, shape index: {}]
  %s4 = inlined_call_operand.vmem [shape: f32[16,8,1], index: 4, kind: input, shape index: {}]
  %s5 = inlined_call_operand.vmem [shape: f32[3,2,16], index: 5, kind: input, shape index: {}]
  %s6 = inlined_call_operand.vmem [shape: f32[3,32,1], index: 6, kind: input, shape index: {}]
  %s7 = inlined_call_operand.vmem [shape: f32[1,32,1], index: 7, kind: input, shape index: {}]
  %s8 = inlined_call_operand.vmem [shape: f32[3,32,1], index: 8, kind: input, shape index: {}]
  %s9 = inlined_call_operand.<no memory space> [shape: f32[1], index: 9, kind: input, shape index: {}]
  %s10 = inlined_call_operand.vmem [shape: f32[16,16], index: 10, kind: input, shape index: {}]
  %s11 = inlined_call_operand.vmem [shape: f32[16,16], index: 11, kind: input, shape index: {}]
  %s12 = inlined_call_operand.vmem [shape: f32[16,8], index: 12, kind: input, shape index: {}]
  %s13 = inlined_call_operand.vmem [shape: f32[1,8], index: 13, kind: input, shape index: {}]
  %s14 = inlined_call_operand.vmem [shape: f32[8,2], index: 14, kind: output, shape index: {0}]
  %s15 = inlined_call_operand.hbm [shape: f32[2,8], index: 15, kind: output, shape index: {1}]
  %16 = xla_tuple %s14, %s15
  %s17 = sld [smem:[#allocation0]]
  $region74: #{tpu_custom_call.1} parent=0
    _
  %s19 = ssub.s32 1, %s17
  %s20 = scalar_select 0, %s19, %s17
  %21 = sst [smem:[#allocation2]] %s9
  $region1: #{tpu_custom_call.1} parent=0
    #allocation3 [shape = 'u8[1024]{0}', space=vmem, size = 0x400, scoped, tag = 'output window, operand 1, single buffered']
    #allocation4 [shape = 's32[1]{0}', space=sflag, size = 0x4, scoped, tag = 'scoped memory for tpu_custom_call.1']
    %22 = vsyncpa [#allocation4], 0
    // Predicated region
    $region2: #{tpu_custom_call.1} parent=1 // pred_check
      _
    $region3: #{tpu_custom_call.1} parent=1 // pred_check_branch
      %24 = sbr.rel (0) target = $region5
    $region4: #{tpu_custom_call.1} parent=1 // pred_region
      _
    $region5: #{tpu_custom_call.1} parent=1 // pred_fallthru
      _
    // Predicated region
    $region6: #{tpu_custom_call.1} parent=1 // pred_check
      _
    $region7: #{tpu_custom_call.1} parent=1 // pred_check_branch
      %26 = sbr.rel (0) target = $region9
    $region8: #{tpu_custom_call.1} parent=1 // pred_region
      _
    $region9: #{tpu_custom_call.1} parent=1 // pred_fallthru
      _
    // Predicated region
    $region10: #{tpu_custom_call.1} parent=1 // pred_check
      _
    $region11: #{tpu_custom_call.1} parent=1 // pred_check_branch
      %28 = sbr.rel (0) target = $region13
    $region12: #{tpu_custom_call.1} parent=1 // pred_region
      _
    $region13: #{tpu_custom_call.1} parent=1 // pred_fallthru
      _
    // Predicated region
    $region14: #{tpu_custom_call.1} parent=1 // pred_check
      _
    $region15: #{tpu_custom_call.1} parent=1 // pred_check_branch
      %30 = sbr.rel (0) target = $region17
    $region16: #{tpu_custom_call.1} parent=1 // pred_region
      _
    $region17: #{tpu_custom_call.1} parent=1 // pred_fallthru
      _
    // Predicated region
    $region18: #{tpu_custom_call.1} parent=1 // pred_check
      _
    $region19: #{tpu_custom_call.1} parent=1 // pred_check_branch
      %32 = sbr.rel (0) target = $region21
    $region20: #{tpu_custom_call.1} parent=1 // pred_region
      _
    $region21: #{tpu_custom_call.1} parent=1 // pred_fallthru
      _
    // Predicated region
    $region22: #{tpu_custom_call.1} parent=1 // pred_check
      _
    $region23: #{tpu_custom_call.1} parent=1 // pred_check_branch
      %34 = sbr.rel (0) target = $region25
    $region24: #{tpu_custom_call.1} parent=1 // pred_region
      _
    $region25: #{tpu_custom_call.1} parent=1 // pred_fallthru
      _
    // Predicated region
    $region26: #{tpu_custom_call.1} parent=1 // pred_check
      _
    $region27: #{tpu_custom_call.1} parent=1 // pred_check_branch
      %36 = sbr.rel (0) target = $region29
    $region28: #{tpu_custom_call.1} parent=1 // pred_region
      _
    $region29: #{tpu_custom_call.1} parent=1 // pred_fallthru
      _
    // Predicated region
    $region30: #{tpu_custom_call.1} parent=1 // pred_check
      _
    $region31: #{tpu_custom_call.1} parent=1 // pred_check_branch
      %38 = sbr.rel (0) target = $region33
    $region32: #{tpu_custom_call.1} parent=1 // pred_region
      _
    $region33: #{tpu_custom_call.1} parent=1 // pred_fallthru
      _
    // Predicated region
    $region34: #{tpu_custom_call.1} parent=1 // pred_check
      _
    $region35: #{tpu_custom_call.1} parent=1 // pred_check_branch
      %40 = sbr.rel (0) target = $region37
    $region36: #{tpu_custom_call.1} parent=1 // pred_region
      _
    $region37: #{tpu_custom_call.1} parent=1 // pred_fallthru
      _
    // Predicated region
    $region38: #{tpu_custom_call.1} parent=1 // pred_check
      _
    $region39: #{tpu_custom_call.1} parent=1 // pred_check_branch
      %42 = sbr.rel (0) target = $region41
    $region40: #{tpu_custom_call.1} parent=1 // pred_region
      _
    $region41: #{tpu_custom_call.1} parent=1 // pred_fallthru
      _
    // Predicated region
    $region42: #{tpu_custom_call.1} parent=1 // pred_check
      _
    $region43: #{tpu_custom_call.1} parent=1 // pred_check_branch
      %44 = sbr.rel (0) target = $region45
    $region44: #{tpu_custom_call.1} parent=1 // pred_region
      _
    $region45: #{tpu_custom_call.1} parent=1 // pred_fallthru
      _
    // Predicated region
    $region46: #{tpu_custom_call.1} parent=1 // pred_check
      _
    $region47: #{tpu_custom_call.1} parent=1 // pred_check_branch
      %46 = sbr.rel (0) target = $region49
    $region48: #{tpu_custom_call.1} parent=1 // pred_region
      _
    $region49: #{tpu_custom_call.1} parent=1 // pred_fallthru
      _
    // Predicated region
    $region50: #{tpu_custom_call.1} parent=1 // pred_check
      _
    $region51: #{tpu_custom_call.1} parent=1 // pred_check_branch
      %48 = sbr.rel (0) target = $region53
    $region52: #{tpu_custom_call.1} parent=1 // pred_region
      _
    $region53: #{tpu_custom_call.1} parent=1 // pred_fallthru
      _
    // Predicated region
    $region54: #{tpu_custom_call.1} parent=1 // pred_check
      _
    $region55: #{tpu_custom_call.1} parent=1 // pred_check_branch
      %50 = sbr.rel (0) target = $region57
    $region56: #{tpu_custom_call.1} parent=1 // pred_region
      _
    $region57: #{tpu_custom_call.1} parent=1 // pred_fallthru
      _
    %v51 = vld [vmem:[%s1] sm:$0x7]
    %v52 = vld [vmem:[%s2] sm:$0x7]
    %v53 = vld [vmem:[%s3] sm:$0x7]
    %55 = vset.pattern.permute.xlu0 0
    %56 = vperm.xlu0 %55, %v51
    %v57 = vpop.permute.xlu0 %56
    %59 = vset.pattern.permute.xlu0 1
    %60 = vperm.xlu0 %59, %v51
    %v61 = vpop.permute.xlu0 %60
    %63 = vset.pattern.permute.xlu0 2
    %64 = vperm.xlu0 %63, %v51
    %v65 = vpop.permute.xlu0 %64
    %67 = vset.pattern.permute.xlu0 3
    %68 = vperm.xlu0 %67, %v51
    %v69 = vpop.permute.xlu0 %68
    %72 = vset.pattern.permute.xlu0 0
    %73 = vperm.xlu0 %72, %v52
    %v74 = vpop.permute.xlu0 %73
    %76 = vset.pattern.permute.xlu0 1
    %77 = vperm.xlu0 %76, %v52
    %v78 = vpop.permute.xlu0 %77
    %80 = vset.pattern.permute.xlu0 2
    %81 = vperm.xlu0 %80, %v52
    %v82 = vpop.permute.xlu0 %81
    %84 = vset.pattern.permute.xlu0 3
    %85 = vperm.xlu0 %84, %v52
    %v86 = vpop.permute.xlu0 %85
    %89 = vset.pattern.permute.xlu0 0
    %90 = vperm.xlu0 %89, %v53
    %v91 = vpop.permute.xlu0 %90
    %93 = vset.pattern.permute.xlu0 1
    %94 = vperm.xlu0 %93, %v53
    %v95 = vpop.permute.xlu0 %94
    %97 = vset.pattern.permute.xlu0 2
    %98 = vperm.xlu0 %97, %v53
    %v99 = vpop.permute.xlu0 %98
    %101 = vset.pattern.permute.xlu0 3
    %102 = vperm.xlu0 %101, %v53
    %v103 = vpop.permute.xlu0 %102
    %v105 = vlaneseq
    %v106 = vshrl.u32 %v105, 7
    %v107 = vld [vmem:[%s0] sm:$0x1]
    %vm108 = vcmask 1040384
    %v109 = vsel %vm108, %v107, 0.0
    %v110 = vmul.f32 %v109, %v57
    %v111 = vmul.f32 %v74, 0.0
    %v112 = vadd.f32 %v110, %v111
    %v113 = vadd.f32 %v112, %v91
    %v114 = vmul.f32 %v109, %v61
    %v115 = vmul.f32 %v78, 0.0
    %v116 = vadd.f32 %v114, %v115
    %v117 = vadd.f32 %v116, %v95
    %v118 = vmul.f32 %v109, %v65
    %v119 = vmul.f32 %v82, 0.0
    %v120 = vadd.f32 %v118, %v119
    %v121 = vadd.f32 %v120, %v99
    %v122 = vmul.f32 %v109, %v69
    %v123 = vmul.f32 %v86, 0.0
    %v124 = vadd.f32 %v122, %v123
    %v125 = vadd.f32 %v124, %v103
    %v126 = vxor.u32 %v113, 2147483648
    %v127 = vmul.f32 %v126, 1.442695
    %v128 = vpow.pop %v127
    %v129 = vadd.f32 %v128, 1.0
    %v130 = vrcp.pop %v129
    %v131 = vmul.f32 1.0, %v130
    %v132 = vxor.u32 %v117, 2147483648
    %v133 = vmul.f32 %v132, 1.442695
    %v134 = vpow.pop %v133
    %v135 = vadd.f32 %v134, 1.0
    %v136 = vrcp.pop %v135
    %v137 = vmul.f32 1.0, %v136
    %v138 = vtanh.pop %v121
    %v139 = vxor.u32 %v125, 2147483648
    %v140 = vmul.f32 %v139, 1.442695
    %v141 = vpow.pop %v140
    %v142 = vadd.f32 %v141, 1.0
    %v143 = vrcp.pop %v142
    %v144 = vmul.f32 1.0, %v143
    %v145 = vmul.f32 %v137, 0.0
    %v146 = vmul.f32 %v131, %v138
    %v147 = vadd.f32 %v145, %v146
    %v148 = vtanh.pop %v147
    %v149 = vmul.f32 %v144, %v148
    %vm150 = vcmp.le.s32.totalorder %v106, 0
    %v151 = vadd.s32 %v106, 15
    %vm152 = vcmp.ge.s32.totalorder %v151, 0
    %vm153 = vmand %vm150, %vm152
    %v154 = vsel %vm153, %v149, 0.0
    %v155 = vsel %vm153, %v147, 0.0
    %v156 = vld [vmem:[%s4] sm:$0xff]
    %158 = vset.pattern.permute.xlu0 0
    %159 = vperm.xlu0 %158, %v156
    %v160 = vpop.permute.xlu0 %159
    %v162 = vlaneseq
    %v163 = vshrl.u32 %v162, 7
    %v164 = vsub.s32 2, %v163
    %v165 = vrot.slane %v154, %v164
    %v166 = vmul.f32 %v160, %v165
    %v167 = vadd.f32 %v166, 0.0
    %v168 = vld [vmem:[%s0 + $0x1] sm:$0x1]
    %v170 = vrot.slane %v154, 7
    %v172 = vsel %vm108, %v168, %v170
    %v173 = vmul.f32 %v172, %v57
    %v174 = vmul.f32 %v154, %v74
    %v175 = vadd.f32 %v173, %v174
    %v176 = vadd.f32 %v175, %v91
    %v177 = vmul.f32 %v172, %v61
    %v178 = vmul.f32 %v154, %v78
    %v179 = vadd.f32 %v177, %v178
    %v180 = vadd.f32 %v179, %v95
    %v181 = vmul.f32 %v172, %v65
    %v182 = vmul.f32 %v154, %v82
    %v183 = vadd.f32 %v181, %v182
    %v184 = vadd.f32 %v183, %v99
    %v185 = vmul.f32 %v172, %v69
    %v186 = vmul.f32 %v154, %v86
    %v187 = vadd.f32 %v185, %v186
    %v188 = vadd.f32 %v187, %v103
    %v189 = vxor.u32 %v176, 2147483648
    %v190 = vmul.f32 %v189, 1.442695
    %v191 = vpow.pop %v190
    %v192 = vadd.f32 %v191, 1.0
    %v193 = vrcp.pop %v192
    %v194 = vmul.f32 1.0, %v193
    %v195 = vxor.u32 %v180, 2147483648
    %v196 = vmul.f32 %v195, 1.442695
    %v197 = vpow.pop %v196
    %v198 = vadd.f32 %v197, 1.0
    %v199 = vrcp.pop %v198
    %v200 = vmul.f32 1.0, %v199
    %v201 = vtanh.pop %v184
    %v202 = vxor.u32 %v188, 2147483648
    %v203 = vmul.f32 %v202, 1.442695
    %v204 = vpow.pop %v203
    %v205 = vadd.f32 %v204, 1.0
    %v206 = vrcp.pop %v205
    %v207 = vmul.f32 1.0, %v206
    %v208 = vmul.f32 %v200, %v155
    %v209 = vmul.f32 %v194, %v201
    %v210 = vadd.f32 %v208, %v209
    %v211 = vtanh.pop %v210
    %v212 = vmul.f32 %v207, %v211
    %vm213 = vcmp.le.s32.totalorder %v106, 1
    %vm214 = vcmp.ge.s32.totalorder %v151, 1
    %vm215 = vmand %vm213, %vm214
    %v216 = vsel %vm215, %v212, %v154
    %v217 = vsel %vm215, %v210, %v155
    %v218 = vlaneseq
    %v219 = vshrl.u32 %v218, 7
    %v220 = vsub.s32 2, %v219
    %v221 = vrot.slane %v216, %v220
    %v222 = vmul.f32 %v160, %v221
    %v223 = vadd.f32 %v167, %v222
    %v224 = vld [vmem:[%s0 + $0x2] sm:$0x1]
    %v226 = vrot.slane %v216, 7
    %v228 = vsel %vm108, %v224, %v226
    %v229 = vmul.f32 %v228, %v57
    %v230 = vmul.f32 %v216, %v74
    %v231 = vadd.f32 %v229, %v230
    %v232 = vadd.f32 %v231, %v91
    %v233 = vmul.f32 %v228, %v61
    %v234 = vmul.f32 %v216, %v78
    %v235 = vadd.f32 %v233, %v234
    %v236 = vadd.f32 %v235, %v95
    %v237 = vmul.f32 %v228, %v65
    %v238 = vmul.f32 %v216, %v82
    %v239 = vadd.f32 %v237, %v238
    %v240 = vadd.f32 %v239, %v99
    %v241 = vmul.f32 %v228, %v69
    %v242 = vmul.f32 %v216, %v86
    %v243 = vadd.f32 %v241, %v242
    %v244 = vadd.f32 %v243, %v103
    %v245 = vxor.u32 %v232, 2147483648
    %v246 = vmul.f32 %v245, 1.442695
    %v247 = vpow.pop %v246
    %v248 = vadd.f32 %v247, 1.0
    %v249 = vrcp.pop %v248
    %v250 = vmul.f32 1.0, %v249
    %v251 = vxor.u32 %v236, 2147483648
    %v252 = vmul.f32 %v251, 1.442695
    %v253 = vpow.pop %v252
    %v254 = vadd.f32 %v253, 1.0
    %v255 = vrcp.pop %v254
    %v256 = vmul.f32 1.0, %v255
    %v257 = vtanh.pop %v240
    %v258 = vxor.u32 %v244, 2147483648
    %v259 = vmul.f32 %v258, 1.442695
    %v260 = vpow.pop %v259
    %v261 = vadd.f32 %v260, 1.0
    %v262 = vrcp.pop %v261
    %v263 = vmul.f32 1.0, %v262
    %v264 = vmul.f32 %v256, %v217
    %v265 = vmul.f32 %v250, %v257
    %v266 = vadd.f32 %v264, %v265
    %v267 = vtanh.pop %v266
    %v268 = vmul.f32 %v263, %v267
    %vm269 = vcmp.le.s32.totalorder %v106, 2
    %vm270 = vcmp.ge.s32.totalorder %v151, 2
    %vm271 = vmand %vm269, %vm270
    %v272 = vsel %vm271, %v268, %v216
    %v273 = vsel %vm271, %v266, %v217
    %v274 = vlaneseq
    %v275 = vshrl.u32 %v274, 7
    %v276 = vsub.s32 2, %v275
    %v277 = vrot.slane %v272, %v276
    %v278 = vmul.f32 %v160, %v277
    %v279 = vadd.f32 %v223, %v278
    %v280 = vld [vmem:[%s0 + $0x3] sm:$0x1]
    %v282 = vrot.slane %v272, 7
    %v284 = vsel %vm108, %v280, %v282
    %v285 = vmul.f32 %v284, %v57
    %v286 = vmul.f32 %v272, %v74
    %v287 = vadd.f32 %v285, %v286
    %v288 = vadd.f32 %v287, %v91
    %v289 = vmul.f32 %v284, %v61
    %v290 = vmul.f32 %v272, %v78
    %v291 = vadd.f32 %v289, %v290
    %v292 = vadd.f32 %v291, %v95
    %v293 = vmul.f32 %v284, %v65
    %v294 = vmul.f32 %v272, %v82
    %v295 = vadd.f32 %v293, %v294
    %v296 = vadd.f32 %v295, %v99
    %v297 = vmul.f32 %v284, %v69
    %v298 = vmul.f32 %v272, %v86
    %v299 = vadd.f32 %v297, %v298
    %v300 = vadd.f32 %v299, %v103
    %v301 = vxor.u32 %v288, 2147483648
    %v302 = vmul.f32 %v301, 1.442695
    %v303 = vpow.pop %v302
    %v304 = vadd.f32 %v303, 1.0
    %v305 = vrcp.pop %v304
    %v306 = vmul.f32 1.0, %v305
    %v307 = vxor.u32 %v292, 2147483648
    %v308 = vmul.f32 %v307, 1.442695
    %v309 = vpow.pop %v308
    %v310 = vadd.f32 %v309, 1.0
    %v311 = vrcp.pop %v310
    %v312 = vmul.f32 1.0, %v311
    %v313 = vtanh.pop %v296
    %v314 = vxor.u32 %v300, 2147483648
    %v315 = vmul.f32 %v314, 1.442695
    %v316 = vpow.pop %v315
    %v317 = vadd.f32 %v316, 1.0
    %v318 = vrcp.pop %v317
    %v319 = vmul.f32 1.0, %v318
    %v320 = vmul.f32 %v312, %v273
    %v321 = vmul.f32 %v306, %v313
    %v322 = vadd.f32 %v320, %v321
    %v323 = vtanh.pop %v322
    %v324 = vmul.f32 %v319, %v323
    %vm325 = vcmp.le.s32.totalorder %v106, 3
    %vm326 = vcmp.ge.s32.totalorder %v151, 3
    %vm327 = vmand %vm325, %vm326
    %v328 = vsel %vm327, %v324, %v272
    %v329 = vsel %vm327, %v322, %v273
    %s330 = scalar_lea.vmem %s4, 8
    %v331 = vld [vmem:[%s330] sm:$0xff]
    %333 = vset.pattern.permute.xlu0 0
    %334 = vperm.xlu0 %333, %v331
    %v335 = vpop.permute.xlu0 %334
    %v337 = vlaneseq
    %v338 = vshrl.u32 %v337, 7
    %v339 = vsub.s32 2, %v338
    %v340 = vrot.slane %v328, %v339
    %v341 = vmul.f32 %v335, %v340
    %v342 = vadd.f32 %v279, %v341
    %v343 = vld [vmem:[%s0 + $0x4] sm:$0x1]
    %v345 = vrot.slane %v328, 7
    %v347 = vsel %vm108, %v343, %v345
    %v348 = vmul.f32 %v347, %v57
    %v349 = vmul.f32 %v328, %v74
    %v350 = vadd.f32 %v348, %v349
    %v351 = vadd.f32 %v350, %v91
    %v352 = vmul.f32 %v347, %v61
    %v353 = vmul.f32 %v328, %v78
    %v354 = vadd.f32 %v352, %v353
    %v355 = vadd.f32 %v354, %v95
    %v356 = vmul.f32 %v347, %v65
    %v357 = vmul.f32 %v328, %v82
    %v358 = vadd.f32 %v356, %v357
    %v359 = vadd.f32 %v358, %v99
    %v360 = vmul.f32 %v347, %v69
    %v361 = vmul.f32 %v328, %v86
    %v362 = vadd.f32 %v360, %v361
    %v363 = vadd.f32 %v362, %v103
    %v364 = vxor.u32 %v351, 2147483648
    %v365 = vmul.f32 %v364, 1.442695
    %v366 = vpow.pop %v365
    %v367 = vadd.f32 %v366, 1.0
    %v368 = vrcp.pop %v367
    %v369 = vmul.f32 1.0, %v368
    %v370 = vxor.u32 %v355, 2147483648
    %v371 = vmul.f32 %v370, 1.442695
    %v372 = vpow.pop %v371
    %v373 = vadd.f32 %v372, 1.0
    %v374 = vrcp.pop %v373
    %v375 = vmul.f32 1.0, %v374
    %v376 = vtanh.pop %v359
    %v377 = vxor.u32 %v363, 2147483648
    %v378 = vmul.f32 %v377, 1.442695
    %v379 = vpow.pop %v378
    %v380 = vadd.f32 %v379, 1.0
    %v381 = vrcp.pop %v380
    %v382 = vmul.f32 1.0, %v381
    %v383 = vmul.f32 %v375, %v329
    %v384 = vmul.f32 %v369, %v376
    %v385 = vadd.f32 %v383, %v384
    %v386 = vtanh.pop %v385
    %v387 = vmul.f32 %v382, %v386
    %vm388 = vcmp.le.s32.totalorder %v106, 4
    %vm389 = vcmp.ge.s32.totalorder %v151, 4
    %vm390 = vmand %vm388, %vm389
    %v391 = vsel %vm390, %v387, %v328
    %v392 = vsel %vm390, %v385, %v329
    %s393 = scalar_lea.vmem %s4, 16
    %v394 = vld [vmem:[%s393] sm:$0xff]
    %396 = vset.pattern.permute.xlu0 0
    %397 = vperm.xlu0 %396, %v394
    %v398 = vpop.permute.xlu0 %397
    %v400 = vlaneseq
    %v401 = vshrl.u32 %v400, 7
    %v402 = vsub.s32 2, %v401
    %v403 = vrot.slane %v391, %v402
    %v404 = vmul.f32 %v398, %v403
    %v405 = vadd.f32 %v342, %v404
    %v406 = vld [vmem:[%s0 + $0x5] sm:$0x1]
    %v408 = vrot.slane %v391, 7
    %v410 = vsel %vm108, %v406, %v408
    %v411 = vmul.f32 %v410, %v57
    %v412 = vmul.f32 %v391, %v74
    %v413 = vadd.f32 %v411, %v412
    %v414 = vadd.f32 %v413, %v91
    %v415 = vmul.f32 %v410, %v61
    %v416 = vmul.f32 %v391, %v78
    %v417 = vadd.f32 %v415, %v416
    %v418 = vadd.f32 %v417, %v95
    %v419 = vmul.f32 %v410, %v65
    %v420 = vmul.f32 %v391, %v82
    %v421 = vadd.f32 %v419, %v420
    %v422 = vadd.f32 %v421, %v99
    %v423 = vmul.f32 %v410, %v69
    %v424 = vmul.f32 %v391, %v86
    %v425 = vadd.f32 %v423, %v424
    %v426 = vadd.f32 %v425, %v103
    %v427 = vxor.u32 %v414, 2147483648
    %v428 = vmul.f32 %v427, 1.442695
    %v429 = vpow.pop %v428
    %v430 = vadd.f32 %v429, 1.0
    %v431 = vrcp.pop %v430
    %v432 = vmul.f32 1.0, %v431
    %v433 = vxor.u32 %v418, 2147483648
    %v434 = vmul.f32 %v433, 1.442695
    %v435 = vpow.pop %v434
    %v436 = vadd.f32 %v435, 1.0
    %v437 = vrcp.pop %v436
    %v438 = vmul.f32 1.0, %v437
    %v439 = vtanh.pop %v422
    %v440 = vxor.u32 %v426, 2147483648
    %v441 = vmul.f32 %v440, 1.442695
    %v442 = vpow.pop %v441
    %v443 = vadd.f32 %v442, 1.0
    %v444 = vrcp.pop %v443
    %v445 = vmul.f32 1.0, %v444
    %v446 = vmul.f32 %v438, %v392
    %v447 = vmul.f32 %v432, %v439
    %v448 = vadd.f32 %v446, %v447
    %v449 = vtanh.pop %v448
    %v450 = vmul.f32 %v445, %v449
    %vm451 = vcmp.le.s32.totalorder %v106, 5
    %vm452 = vcmp.ge.s32.totalorder %v151, 5
    %vm453 = vmand %vm451, %vm452
    %v454 = vsel %vm453, %v450, %v391
    %v455 = vsel %vm453, %v448, %v392
    %s456 = scalar_lea.vmem %s4, 24
    %v457 = vld [vmem:[%s456] sm:$0xff]
    %459 = vset.pattern.permute.xlu0 0
    %460 = vperm.xlu0 %459, %v457
    %v461 = vpop.permute.xlu0 %460
    %v463 = vlaneseq
    %v464 = vshrl.u32 %v463, 7
    %v465 = vsub.s32 2, %v464
    %v466 = vrot.slane %v454, %v465
    %v467 = vmul.f32 %v461, %v466
    %v468 = vadd.f32 %v405, %v467
    %v469 = vld [vmem:[%s0 + $0x6] sm:$0x1]
    %v471 = vrot.slane %v454, 7
    %v473 = vsel %vm108, %v469, %v471
    %v474 = vmul.f32 %v473, %v57
    %v475 = vmul.f32 %v454, %v74
    %v476 = vadd.f32 %v474, %v475
    %v477 = vadd.f32 %v476, %v91
    %v478 = vmul.f32 %v473, %v61
    %v479 = vmul.f32 %v454, %v78
    %v480 = vadd.f32 %v478, %v479
    %v481 = vadd.f32 %v480, %v95
    %v482 = vmul.f32 %v473, %v65
    %v483 = vmul.f32 %v454, %v82
    %v484 = vadd.f32 %v482, %v483
    %v485 = vadd.f32 %v484, %v99
    %v486 = vmul.f32 %v473, %v69
    %v487 = vmul.f32 %v454, %v86
    %v488 = vadd.f32 %v486, %v487
    %v489 = vadd.f32 %v488, %v103
    %v490 = vxor.u32 %v477, 2147483648
    %v491 = vmul.f32 %v490, 1.442695
    %v492 = vpow.pop %v491
    %v493 = vadd.f32 %v492, 1.0
    %v494 = vrcp.pop %v493
    %v495 = vmul.f32 1.0, %v494
    %v496 = vxor.u32 %v481, 2147483648
    %v497 = vmul.f32 %v496, 1.442695
    %v498 = vpow.pop %v497
    %v499 = vadd.f32 %v498, 1.0
    %v500 = vrcp.pop %v499
    %v501 = vmul.f32 1.0, %v500
    %v502 = vtanh.pop %v485
    %v503 = vxor.u32 %v489, 2147483648
    %v504 = vmul.f32 %v503, 1.442695
    %v505 = vpow.pop %v504
    %v506 = vadd.f32 %v505, 1.0
    %v507 = vrcp.pop %v506
    %v508 = vmul.f32 1.0, %v507
    %v509 = vmul.f32 %v501, %v455
    %v510 = vmul.f32 %v495, %v502
    %v511 = vadd.f32 %v509, %v510
    %v512 = vtanh.pop %v511
    %v513 = vmul.f32 %v508, %v512
    %vm514 = vcmp.le.s32.totalorder %v106, 6
    %vm515 = vcmp.ge.s32.totalorder %v151, 6
    %vm516 = vmand %vm514, %vm515
    %v517 = vsel %vm516, %v513, %v454
    %v518 = vsel %vm516, %v511, %v455
    %s519 = scalar_lea.vmem %s4, 32
    %v520 = vld [vmem:[%s519] sm:$0xff]
    %522 = vset.pattern.permute.xlu0 0
    %523 = vperm.xlu0 %522, %v520
    %v524 = vpop.permute.xlu0 %523
    %v526 = vlaneseq
    %v527 = vshrl.u32 %v526, 7
    %v528 = vsub.s32 2, %v527
    %v529 = vrot.slane %v517, %v528
    %v530 = vmul.f32 %v524, %v529
    %v531 = vadd.f32 %v468, %v530
    %v532 = vld [vmem:[%s0 + $0x7] sm:$0x1]
    %v534 = vrot.slane %v517, 7
    %v536 = vsel %vm108, %v532, %v534
    %v537 = vmul.f32 %v536, %v57
    %v538 = vmul.f32 %v517, %v74
    %v539 = vadd.f32 %v537, %v538
    %v540 = vadd.f32 %v539, %v91
    %v541 = vmul.f32 %v536, %v61
    %v542 = vmul.f32 %v517, %v78
    %v543 = vadd.f32 %v541, %v542
    %v544 = vadd.f32 %v543, %v95
    %v545 = vmul.f32 %v536, %v65
    %v546 = vmul.f32 %v517, %v82
    %v547 = vadd.f32 %v545, %v546
    %v548 = vadd.f32 %v547, %v99
    %v549 = vmul.f32 %v536, %v69
    %v550 = vmul.f32 %v517, %v86
    %v551 = vadd.f32 %v549, %v550
    %v552 = vadd.f32 %v551, %v103
    %v553 = vxor.u32 %v540, 2147483648
    %v554 = vmul.f32 %v553, 1.442695
    %v555 = vpow.pop %v554
    %v556 = vadd.f32 %v555, 1.0
    %v557 = vrcp.pop %v556
    %v558 = vmul.f32 1.0, %v557
    %v559 = vxor.u32 %v544, 2147483648
    %v560 = vmul.f32 %v559, 1.442695
    %v561 = vpow.pop %v560
    %v562 = vadd.f32 %v561, 1.0
    %v563 = vrcp.pop %v562
    %v564 = vmul.f32 1.0, %v563
    %v565 = vtanh.pop %v548
    %v566 = vxor.u32 %v552, 2147483648
    %v567 = vmul.f32 %v566, 1.442695
    %v568 = vpow.pop %v567
    %v569 = vadd.f32 %v568, 1.0
    %v570 = vrcp.pop %v569
    %v571 = vmul.f32 1.0, %v570
    %v572 = vmul.f32 %v564, %v518
    %v573 = vmul.f32 %v558, %v565
    %v574 = vadd.f32 %v572, %v573
    %v575 = vtanh.pop %v574
    %v576 = vmul.f32 %v571, %v575
    %vm577 = vcmp.le.s32.totalorder %v106, 7
    %vm578 = vcmp.ge.s32.totalorder %v151, 7
    %vm579 = vmand %vm577, %vm578
    %v580 = vsel %vm579, %v576, %v517
    %v581 = vsel %vm579, %v574, %v518
    %s582 = scalar_lea.vmem %s4, 40
    %v583 = vld [vmem:[%s582] sm:$0xff]
    %585 = vset.pattern.permute.xlu0 0
    %586 = vperm.xlu0 %585, %v583
    %v587 = vpop.permute.xlu0 %586
    %v589 = vlaneseq
    %v590 = vshrl.u32 %v589, 7
    %v591 = vsub.s32 2, %v590
    %v592 = vrot.slane %v580, %v591
    %v593 = vmul.f32 %v587, %v592
    %v594 = vadd.f32 %v531, %v593
    %v595 = vld [vmem:[%s0 + $0x8] sm:$0x1]
    %v597 = vrot.slane %v580, 7
    %v599 = vsel %vm108, %v595, %v597
    %v600 = vmul.f32 %v599, %v57
    %v601 = vmul.f32 %v580, %v74
    %v602 = vadd.f32 %v600, %v601
    %v603 = vadd.f32 %v602, %v91
    %v604 = vmul.f32 %v599, %v61
    %v605 = vmul.f32 %v580, %v78
    %v606 = vadd.f32 %v604, %v605
    %v607 = vadd.f32 %v606, %v95
    %v608 = vmul.f32 %v599, %v65
    %v609 = vmul.f32 %v580, %v82
    %v610 = vadd.f32 %v608, %v609
    %v611 = vadd.f32 %v610, %v99
    %v612 = vmul.f32 %v599, %v69
    %v613 = vmul.f32 %v580, %v86
    %v614 = vadd.f32 %v612, %v613
    %v615 = vadd.f32 %v614, %v103
    %v616 = vxor.u32 %v603, 2147483648
    %v617 = vmul.f32 %v616, 1.442695
    %v618 = vpow.pop %v617
    %v619 = vadd.f32 %v618, 1.0
    %v620 = vrcp.pop %v619
    %v621 = vmul.f32 1.0, %v620
    %v622 = vxor.u32 %v607, 2147483648
    %v623 = vmul.f32 %v622, 1.442695
    %v624 = vpow.pop %v623
    %v625 = vadd.f32 %v624, 1.0
    %v626 = vrcp.pop %v625
    %v627 = vmul.f32 1.0, %v626
    %v628 = vtanh.pop %v611
    %v629 = vxor.u32 %v615, 2147483648
    %v630 = vmul.f32 %v629, 1.442695
    %v631 = vpow.pop %v630
    %v632 = vadd.f32 %v631, 1.0
    %v633 = vrcp.pop %v632
    %v634 = vmul.f32 1.0, %v633
    %v635 = vmul.f32 %v627, %v581
    %v636 = vmul.f32 %v621, %v628
    %v637 = vadd.f32 %v635, %v636
    %v638 = vtanh.pop %v637
    %v639 = vmul.f32 %v634, %v638
    %vm640 = vcmp.le.s32.totalorder %v106, 8
    %vm641 = vcmp.ge.s32.totalorder %v151, 8
    %vm642 = vmand %vm640, %vm641
    %v643 = vsel %vm642, %v639, %v580
    %v644 = vsel %vm642, %v637, %v581
    %s645 = scalar_lea.vmem %s4, 48
    %v646 = vld [vmem:[%s645] sm:$0xff]
    %648 = vset.pattern.permute.xlu0 0
    %649 = vperm.xlu0 %648, %v646
    %v650 = vpop.permute.xlu0 %649
    %v652 = vlaneseq
    %v653 = vshrl.u32 %v652, 7
    %v654 = vsub.s32 2, %v653
    %v655 = vrot.slane %v643, %v654
    %v656 = vmul.f32 %v650, %v655
    %v657 = vadd.f32 %v594, %v656
    %v658 = vld [vmem:[%s0 + $0x9] sm:$0x1]
    %v660 = vrot.slane %v643, 7
    %v662 = vsel %vm108, %v658, %v660
    %v663 = vmul.f32 %v662, %v57
    %v664 = vmul.f32 %v643, %v74
    %v665 = vadd.f32 %v663, %v664
    %v666 = vadd.f32 %v665, %v91
    %v667 = vmul.f32 %v662, %v61
    %v668 = vmul.f32 %v643, %v78
    %v669 = vadd.f32 %v667, %v668
    %v670 = vadd.f32 %v669, %v95
    %v671 = vmul.f32 %v662, %v65
    %v672 = vmul.f32 %v643, %v82
    %v673 = vadd.f32 %v671, %v672
    %v674 = vadd.f32 %v673, %v99
    %v675 = vmul.f32 %v662, %v69
    %v676 = vmul.f32 %v643, %v86
    %v677 = vadd.f32 %v675, %v676
    %v678 = vadd.f32 %v677, %v103
    %v679 = vxor.u32 %v666, 2147483648
    %v680 = vmul.f32 %v679, 1.442695
    %v681 = vpow.pop %v680
    %v682 = vadd.f32 %v681, 1.0
    %v683 = vrcp.pop %v682
    %v684 = vmul.f32 1.0, %v683
    %v685 = vxor.u32 %v670, 2147483648
    %v686 = vmul.f32 %v685, 1.442695
    %v687 = vpow.pop %v686
    %v688 = vadd.f32 %v687, 1.0
    %v689 = vrcp.pop %v688
    %v690 = vmul.f32 1.0, %v689
    %v691 = vtanh.pop %v674
    %v692 = vxor.u32 %v678, 2147483648
    %v693 = vmul.f32 %v692, 1.442695
    %v694 = vpow.pop %v693
    %v695 = vadd.f32 %v694, 1.0
    %v696 = vrcp.pop %v695
    %v697 = vmul.f32 1.0, %v696
    %v698 = vmul.f32 %v690, %v644
    %v699 = vmul.f32 %v684, %v691
    %v700 = vadd.f32 %v698, %v699
    %v701 = vtanh.pop %v700
    %v702 = vmul.f32 %v697, %v701
    %vm703 = vcmp.le.s32.totalorder %v106, 9
    %vm704 = vcmp.ge.s32.totalorder %v151, 9
    %vm705 = vmand %vm703, %vm704
    %v706 = vsel %vm705, %v702, %v643
    %v707 = vsel %vm705, %v700, %v644
    %s708 = scalar_lea.vmem %s4, 56
    %v709 = vld [vmem:[%s708] sm:$0xff]
    %711 = vset.pattern.permute.xlu0 0
    %712 = vperm.xlu0 %711, %v709
    %v713 = vpop.permute.xlu0 %712
    %v715 = vlaneseq
    %v716 = vshrl.u32 %v715, 7
    %v717 = vsub.s32 2, %v716
    %v718 = vrot.slane %v706, %v717
    %v719 = vmul.f32 %v713, %v718
    %v720 = vadd.f32 %v657, %v719
    %v721 = vld [vmem:[%s0 + $0xa] sm:$0x1]
    %v723 = vrot.slane %v706, 7
    %v725 = vsel %vm108, %v721, %v723
    %v726 = vmul.f32 %v725, %v57
    %v727 = vmul.f32 %v706, %v74
    %v728 = vadd.f32 %v726, %v727
    %v729 = vadd.f32 %v728, %v91
    %v730 = vmul.f32 %v725, %v61
    %v731 = vmul.f32 %v706, %v78
    %v732 = vadd.f32 %v730, %v731
    %v733 = vadd.f32 %v732, %v95
    %v734 = vmul.f32 %v725, %v65
    %v735 = vmul.f32 %v706, %v82
    %v736 = vadd.f32 %v734, %v735
    %v737 = vadd.f32 %v736, %v99
    %v738 = vmul.f32 %v725, %v69
    %v739 = vmul.f32 %v706, %v86
    %v740 = vadd.f32 %v738, %v739
    %v741 = vadd.f32 %v740, %v103
    %v742 = vxor.u32 %v729, 2147483648
    %v743 = vmul.f32 %v742, 1.442695
    %v744 = vpow.pop %v743
    %v745 = vadd.f32 %v744, 1.0
    %v746 = vrcp.pop %v745
    %v747 = vmul.f32 1.0, %v746
    %v748 = vxor.u32 %v733, 2147483648
    %v749 = vmul.f32 %v748, 1.442695
    %v750 = vpow.pop %v749
    %v751 = vadd.f32 %v750, 1.0
    %v752 = vrcp.pop %v751
    %v753 = vmul.f32 1.0, %v752
    %v754 = vtanh.pop %v737
    %v755 = vxor.u32 %v741, 2147483648
    %v756 = vmul.f32 %v755, 1.442695
    %v757 = vpow.pop %v756
    %v758 = vadd.f32 %v757, 1.0
    %v759 = vrcp.pop %v758
    %v760 = vmul.f32 1.0, %v759
    %v761 = vmul.f32 %v753, %v707
    %v762 = vmul.f32 %v747, %v754
    %v763 = vadd.f32 %v761, %v762
    %v764 = vtanh.pop %v763
    %v765 = vmul.f32 %v760, %v764
    %vm766 = vcmp.le.s32.totalorder %v106, 10
    %vm767 = vcmp.ge.s32.totalorder %v151, 10
    %vm768 = vmand %vm766, %vm767
    %v769 = vsel %vm768, %v765, %v706
    %v770 = vsel %vm768, %v763, %v707
    %s771 = scalar_lea.vmem %s4, 64
    %v772 = vld [vmem:[%s771] sm:$0xff]
    %774 = vset.pattern.permute.xlu0 0
    %775 = vperm.xlu0 %774, %v772
    %v776 = vpop.permute.xlu0 %775
    %v778 = vlaneseq
    %v779 = vshrl.u32 %v778, 7
    %v780 = vsub.s32 2, %v779
    %v781 = vrot.slane %v769, %v780
    %v782 = vmul.f32 %v776, %v781
    %v783 = vadd.f32 %v720, %v782
    %v784 = vld [vmem:[%s0 + $0xb] sm:$0x1]
    %v786 = vrot.slane %v769, 7
    %v788 = vsel %vm108, %v784, %v786
    %v789 = vmul.f32 %v788, %v57
    %v790 = vmul.f32 %v769, %v74
    %v791 = vadd.f32 %v789, %v790
    %v792 = vadd.f32 %v791, %v91
    %v793 = vmul.f32 %v788, %v61
    %v794 = vmul.f32 %v769, %v78
    %v795 = vadd.f32 %v793, %v794
    %v796 = vadd.f32 %v795, %v95
    %v797 = vmul.f32 %v788, %v65
    %v798 = vmul.f32 %v769, %v82
    %v799 = vadd.f32 %v797, %v798
    %v800 = vadd.f32 %v799, %v99
    %v801 = vmul.f32 %v788, %v69
    %v802 = vmul.f32 %v769, %v86
    %v803 = vadd.f32 %v801, %v802
    %v804 = vadd.f32 %v803, %v103
    %v805 = vxor.u32 %v792, 2147483648
    %v806 = vmul.f32 %v805, 1.442695
    %v807 = vpow.pop %v806
    %v808 = vadd.f32 %v807, 1.0
    %v809 = vrcp.pop %v808
    %v810 = vmul.f32 1.0, %v809
    %v811 = vxor.u32 %v796, 2147483648
    %v812 = vmul.f32 %v811, 1.442695
    %v813 = vpow.pop %v812
    %v814 = vadd.f32 %v813, 1.0
    %v815 = vrcp.pop %v814
    %v816 = vmul.f32 1.0, %v815
    %v817 = vtanh.pop %v800
    %v818 = vxor.u32 %v804, 2147483648
    %v819 = vmul.f32 %v818, 1.442695
    %v820 = vpow.pop %v819
    %v821 = vadd.f32 %v820, 1.0
    %v822 = vrcp.pop %v821
    %v823 = vmul.f32 1.0, %v822
    %v824 = vmul.f32 %v816, %v770
    %v825 = vmul.f32 %v810, %v817
    %v826 = vadd.f32 %v824, %v825
    %v827 = vtanh.pop %v826
    %v828 = vmul.f32 %v823, %v827
    %vm829 = vcmp.le.s32.totalorder %v106, 11
    %vm830 = vcmp.ge.s32.totalorder %v151, 11
    %vm831 = vmand %vm829, %vm830
    %v832 = vsel %vm831, %v828, %v769
    %v833 = vsel %vm831, %v826, %v770
    %s834 = scalar_lea.vmem %s4, 72
    %v835 = vld [vmem:[%s834] sm:$0xff]
    %837 = vset.pattern.permute.xlu0 0
    %838 = vperm.xlu0 %837, %v835
    %v839 = vpop.permute.xlu0 %838
    %v841 = vlaneseq
    %v842 = vshrl.u32 %v841, 7
    %v843 = vsub.s32 2, %v842
    %v844 = vrot.slane %v832, %v843
    %v845 = vmul.f32 %v839, %v844
    %v846 = vadd.f32 %v783, %v845
    %v847 = vld [vmem:[%s0 + $0xc] sm:$0x1]
    %v849 = vrot.slane %v832, 7
    %v851 = vsel %vm108, %v847, %v849
    %v852 = vmul.f32 %v851, %v57
    %v853 = vmul.f32 %v832, %v74
    %v854 = vadd.f32 %v852, %v853
    %v855 = vadd.f32 %v854, %v91
    %v856 = vmul.f32 %v851, %v61
    %v857 = vmul.f32 %v832, %v78
    %v858 = vadd.f32 %v856, %v857
    %v859 = vadd.f32 %v858, %v95
    %v860 = vmul.f32 %v851, %v65
    %v861 = vmul.f32 %v832, %v82
    %v862 = vadd.f32 %v860, %v861
    %v863 = vadd.f32 %v862, %v99
    %v864 = vmul.f32 %v851, %v69
    %v865 = vmul.f32 %v832, %v86
    %v866 = vadd.f32 %v864, %v865
    %v867 = vadd.f32 %v866, %v103
    %v868 = vxor.u32 %v855, 2147483648
    %v869 = vmul.f32 %v868, 1.442695
    %v870 = vpow.pop %v869
    %v871 = vadd.f32 %v870, 1.0
    %v872 = vrcp.pop %v871
    %v873 = vmul.f32 1.0, %v872
    %v874 = vxor.u32 %v859, 2147483648
    %v875 = vmul.f32 %v874, 1.442695
    %v876 = vpow.pop %v875
    %v877 = vadd.f32 %v876, 1.0
    %v878 = vrcp.pop %v877
    %v879 = vmul.f32 1.0, %v878
    %v880 = vtanh.pop %v863
    %v881 = vxor.u32 %v867, 2147483648
    %v882 = vmul.f32 %v881, 1.442695
    %v883 = vpow.pop %v882
    %v884 = vadd.f32 %v883, 1.0
    %v885 = vrcp.pop %v884
    %v886 = vmul.f32 1.0, %v885
    %v887 = vmul.f32 %v879, %v833
    %v888 = vmul.f32 %v873, %v880
    %v889 = vadd.f32 %v887, %v888
    %v890 = vtanh.pop %v889
    %v891 = vmul.f32 %v886, %v890
    %vm892 = vcmp.le.s32.totalorder %v106, 12
    %vm893 = vcmp.ge.s32.totalorder %v151, 12
    %vm894 = vmand %vm892, %vm893
    %v895 = vsel %vm894, %v891, %v832
    %v896 = vsel %vm894, %v889, %v833
    %s897 = scalar_lea.vmem %s4, 80
    %v898 = vld [vmem:[%s897] sm:$0xff]
    %900 = vset.pattern.permute.xlu0 0
    %901 = vperm.xlu0 %900, %v898
    %v902 = vpop.permute.xlu0 %901
    %v904 = vlaneseq
    %v905 = vshrl.u32 %v904, 7
    %v906 = vsub.s32 2, %v905
    %v907 = vrot.slane %v895, %v906
    %v908 = vmul.f32 %v902, %v907
    %v909 = vadd.f32 %v846, %v908
    %v910 = vld [vmem:[%s0 + $0xd] sm:$0x1]
    %v912 = vrot.slane %v895, 7
    %v914 = vsel %vm108, %v910, %v912
    %v915 = vmul.f32 %v914, %v57
    %v916 = vmul.f32 %v895, %v74
    %v917 = vadd.f32 %v915, %v916
    %v918 = vadd.f32 %v917, %v91
    %v919 = vmul.f32 %v914, %v61
    %v920 = vmul.f32 %v895, %v78
    %v921 = vadd.f32 %v919, %v920
    %v922 = vadd.f32 %v921, %v95
    %v923 = vmul.f32 %v914, %v65
    %v924 = vmul.f32 %v895, %v82
    %v925 = vadd.f32 %v923, %v924
    %v926 = vadd.f32 %v925, %v99
    %v927 = vmul.f32 %v914, %v69
    %v928 = vmul.f32 %v895, %v86
    %v929 = vadd.f32 %v927, %v928
    %v930 = vadd.f32 %v929, %v103
    %v931 = vxor.u32 %v918, 2147483648
    %v932 = vmul.f32 %v931, 1.442695
    %v933 = vpow.pop %v932
    %v934 = vadd.f32 %v933, 1.0
    %v935 = vrcp.pop %v934
    %v936 = vmul.f32 1.0, %v935
    %v937 = vxor.u32 %v922, 2147483648
    %v938 = vmul.f32 %v937, 1.442695
    %v939 = vpow.pop %v938
    %v940 = vadd.f32 %v939, 1.0
    %v941 = vrcp.pop %v940
    %v942 = vmul.f32 1.0, %v941
    %v943 = vtanh.pop %v926
    %v944 = vxor.u32 %v930, 2147483648
    %v945 = vmul.f32 %v944, 1.442695
    %v946 = vpow.pop %v945
    %v947 = vadd.f32 %v946, 1.0
    %v948 = vrcp.pop %v947
    %v949 = vmul.f32 1.0, %v948
    %v950 = vmul.f32 %v942, %v896
    %v951 = vmul.f32 %v936, %v943
    %v952 = vadd.f32 %v950, %v951
    %v953 = vtanh.pop %v952
    %v954 = vmul.f32 %v949, %v953
    %vm955 = vcmp.le.s32.totalorder %v106, 13
    %vm956 = vcmp.ge.s32.totalorder %v151, 13
    %vm957 = vmand %vm955, %vm956
    %v958 = vsel %vm957, %v954, %v895
    %v959 = vsel %vm957, %v952, %v896
    %s960 = scalar_lea.vmem %s4, 88
    %v961 = vld [vmem:[%s960] sm:$0xff]
    %963 = vset.pattern.permute.xlu0 0
    %964 = vperm.xlu0 %963, %v961
    %v965 = vpop.permute.xlu0 %964
    %v967 = vlaneseq
    %v968 = vshrl.u32 %v967, 7
    %v969 = vsub.s32 2, %v968
    %v970 = vrot.slane %v958, %v969
    %v971 = vmul.f32 %v965, %v970
    %v972 = vadd.f32 %v909, %v971
    %v973 = vld [vmem:[%s0 + $0xe] sm:$0x1]
    %v975 = vrot.slane %v958, 7
    %v977 = vsel %vm108, %v973, %v975
    %v978 = vmul.f32 %v977, %v57
    %v979 = vmul.f32 %v958, %v74
    %v980 = vadd.f32 %v978, %v979
    %v981 = vadd.f32 %v980, %v91
    %v982 = vmul.f32 %v977, %v61
    %v983 = vmul.f32 %v958, %v78
    %v984 = vadd.f32 %v982, %v983
    %v985 = vadd.f32 %v984, %v95
    %v986 = vmul.f32 %v977, %v65
    %v987 = vmul.f32 %v958, %v82
    %v988 = vadd.f32 %v986, %v987
    %v989 = vadd.f32 %v988, %v99
    %v990 = vmul.f32 %v977, %v69
    %v991 = vmul.f32 %v958, %v86
    %v992 = vadd.f32 %v990, %v991
    %v993 = vadd.f32 %v992, %v103
    %v994 = vxor.u32 %v981, 2147483648
    %v995 = vmul.f32 %v994, 1.442695
    %v996 = vpow.pop %v995
    %v997 = vadd.f32 %v996, 1.0
    %v998 = vrcp.pop %v997
    %v999 = vmul.f32 1.0, %v998
    %v1000 = vxor.u32 %v985, 2147483648
    %v1001 = vmul.f32 %v1000, 1.442695
    %v1002 = vpow.pop %v1001
    %v1003 = vadd.f32 %v1002, 1.0
    %v1004 = vrcp.pop %v1003
    %v1005 = vmul.f32 1.0, %v1004
    %v1006 = vtanh.pop %v989
    %v1007 = vxor.u32 %v993, 2147483648
    %v1008 = vmul.f32 %v1007, 1.442695
    %v1009 = vpow.pop %v1008
    %v1010 = vadd.f32 %v1009, 1.0
    %v1011 = vrcp.pop %v1010
    %v1012 = vmul.f32 1.0, %v1011
    %v1013 = vmul.f32 %v1005, %v959
    %v1014 = vmul.f32 %v999, %v1006
    %v1015 = vadd.f32 %v1013, %v1014
    %v1016 = vtanh.pop %v1015
    %v1017 = vmul.f32 %v1012, %v1016
    %vm1018 = vcmp.le.s32.totalorder %v106, 14
    %vm1019 = vcmp.ge.s32.totalorder %v151, 14
    %vm1020 = vmand %vm1018, %vm1019
    %v1021 = vsel %vm1020, %v1017, %v958
    %v1022 = vsel %vm1020, %v1015, %v959
    %s1023 = scalar_lea.vmem %s4, 96
    %v1024 = vld [vmem:[%s1023] sm:$0xff]
    %1026 = vset.pattern.permute.xlu0 0
    %1027 = vperm.xlu0 %1026, %v1024
    %v1028 = vpop.permute.xlu0 %1027
    %v1030 = vlaneseq
    %v1031 = vshrl.u32 %v1030, 7
    %v1032 = vsub.s32 2, %v1031
    %v1033 = vrot.slane %v1021, %v1032
    %v1034 = vmul.f32 %v1028, %v1033
    %v1035 = vadd.f32 %v972, %v1034
    %v1036 = vld [vmem:[%s0 + $0xf] sm:$0x1]
    %v1038 = vrot.slane %v1021, 7
    %v1040 = vsel %vm108, %v1036, %v1038
    %v1041 = vmul.f32 %v1040, %v57
    %v1042 = vmul.f32 %v1021, %v74
    %v1043 = vadd.f32 %v1041, %v1042
    %v1044 = vadd.f32 %v1043, %v91
    %v1045 = vmul.f32 %v1040, %v61
    %v1046 = vmul.f32 %v1021, %v78
    %v1047 = vadd.f32 %v1045, %v1046
    %v1048 = vadd.f32 %v1047, %v95
    %v1049 = vmul.f32 %v1040, %v65
    %v1050 = vmul.f32 %v1021, %v82
    %v1051 = vadd.f32 %v1049, %v1050
    %v1052 = vadd.f32 %v1051, %v99
    %v1053 = vmul.f32 %v1040, %v69
    %v1054 = vmul.f32 %v1021, %v86
    %v1055 = vadd.f32 %v1053, %v1054
    %v1056 = vadd.f32 %v1055, %v103
    %v1057 = vxor.u32 %v1044, 2147483648
    %v1058 = vmul.f32 %v1057, 1.442695
    %v1059 = vpow.pop %v1058
    %v1060 = vadd.f32 %v1059, 1.0
    %v1061 = vrcp.pop %v1060
    %v1062 = vmul.f32 1.0, %v1061
    %v1063 = vxor.u32 %v1048, 2147483648
    %v1064 = vmul.f32 %v1063, 1.442695
    %v1065 = vpow.pop %v1064
    %v1066 = vadd.f32 %v1065, 1.0
    %v1067 = vrcp.pop %v1066
    %v1068 = vmul.f32 1.0, %v1067
    %v1069 = vtanh.pop %v1052
    %v1070 = vxor.u32 %v1056, 2147483648
    %v1071 = vmul.f32 %v1070, 1.442695
    %v1072 = vpow.pop %v1071
    %v1073 = vadd.f32 %v1072, 1.0
    %v1074 = vrcp.pop %v1073
    %v1075 = vmul.f32 1.0, %v1074
    %v1076 = vmul.f32 %v1068, %v1022
    %v1077 = vmul.f32 %v1062, %v1069
    %v1078 = vadd.f32 %v1076, %v1077
    %v1079 = vtanh.pop %v1078
    %v1080 = vmul.f32 %v1075, %v1079
    %vm1081 = vcmp.le.s32.totalorder %v106, 15
    %vm1082 = vcmp.ge.s32.totalorder %v151, 15
    %vm1083 = vmand %vm1081, %vm1082
    %v1084 = vsel %vm1083, %v1080, %v1021
    %v1085 = vsel %vm1083, %v1078, %v1022
    %s1086 = scalar_lea.vmem %s4, 104
    %v1087 = vld [vmem:[%s1086] sm:$0xff]
    %1089 = vset.pattern.permute.xlu0 0
    %1090 = vperm.xlu0 %1089, %v1087
    %v1091 = vpop.permute.xlu0 %1090
    %v1093 = vlaneseq
    %v1094 = vshrl.u32 %v1093, 7
    %v1095 = vsub.s32 2, %v1094
    %v1096 = vrot.slane %v1084, %v1095
    %v1097 = vmul.f32 %v1091, %v1096
    %v1098 = vadd.f32 %v1035, %v1097
    %v1100 = vrot.slane %v1084, 7
    %v1102 = vsel %vm108, %v1036, %v1100
    %v1103 = vmul.f32 %v1102, %v57
    %v1104 = vmul.f32 %v1084, %v74
    %v1105 = vadd.f32 %v1103, %v1104
    %v1106 = vadd.f32 %v1105, %v91
    %v1107 = vmul.f32 %v1102, %v61
    %v1108 = vmul.f32 %v1084, %v78
    %v1109 = vadd.f32 %v1107, %v1108
    %v1110 = vadd.f32 %v1109, %v95
    %v1111 = vmul.f32 %v1102, %v65
    %v1112 = vmul.f32 %v1084, %v82
    %v1113 = vadd.f32 %v1111, %v1112
    %v1114 = vadd.f32 %v1113, %v99
    %v1115 = vmul.f32 %v1102, %v69
    %v1116 = vmul.f32 %v1084, %v86
    %v1117 = vadd.f32 %v1115, %v1116
    %v1118 = vadd.f32 %v1117, %v103
    %v1119 = vxor.u32 %v1106, 2147483648
    %v1120 = vmul.f32 %v1119, 1.442695
    %v1121 = vpow.pop %v1120
    %v1122 = vadd.f32 %v1121, 1.0
    %v1123 = vrcp.pop %v1122
    %v1124 = vmul.f32 1.0, %v1123
    %v1125 = vxor.u32 %v1110, 2147483648
    %v1126 = vmul.f32 %v1125, 1.442695
    %v1127 = vpow.pop %v1126
    %v1128 = vadd.f32 %v1127, 1.0
    %v1129 = vrcp.pop %v1128
    %v1130 = vmul.f32 1.0, %v1129
    %v1131 = vtanh.pop %v1114
    %v1132 = vxor.u32 %v1118, 2147483648
    %v1133 = vmul.f32 %v1132, 1.442695
    %v1134 = vpow.pop %v1133
    %v1135 = vadd.f32 %v1134, 1.0
    %v1136 = vrcp.pop %v1135
    %v1137 = vmul.f32 1.0, %v1136
    %v1138 = vmul.f32 %v1130, %v1085
    %v1139 = vmul.f32 %v1124, %v1131
    %v1140 = vadd.f32 %v1138, %v1139
    %v1141 = vtanh.pop %v1140
    %v1142 = vmul.f32 %v1137, %v1141
    %vm1143 = vcmp.le.s32.totalorder %v106, 16
    %vm1144 = vcmp.ge.s32.totalorder %v151, 16
    %vm1145 = vmand %vm1143, %vm1144
    %v1146 = vsel %vm1145, %v1142, %v1084
    %v1147 = vsel %vm1145, %v1140, %v1085
    %s1148 = scalar_lea.vmem %s4, 112
    %v1149 = vld [vmem:[%s1148] sm:$0xff]
    %1151 = vset.pattern.permute.xlu0 0
    %1152 = vperm.xlu0 %1151, %v1149
    %v1153 = vpop.permute.xlu0 %1152
    %v1155 = vlaneseq
    %v1156 = vshrl.u32 %v1155, 7
    %v1157 = vsub.s32 2, %v1156
    %v1158 = vrot.slane %v1146, %v1157
    %v1159 = vmul.f32 %v1153, %v1158
    %v1160 = vadd.f32 %v1098, %v1159
    %v1162 = vrot.slane %v1146, 7
    %v1164 = vsel %vm108, %v1036, %v1162
    %v1165 = vmul.f32 %v1164, %v57
    %v1166 = vmul.f32 %v1146, %v74
    %v1167 = vadd.f32 %v1165, %v1166
    %v1168 = vadd.f32 %v1167, %v91
    %v1169 = vmul.f32 %v1164, %v61
    %v1170 = vmul.f32 %v1146, %v78
    %v1171 = vadd.f32 %v1169, %v1170
    %v1172 = vadd.f32 %v1171, %v95
    %v1173 = vmul.f32 %v1164, %v65
    %v1174 = vmul.f32 %v1146, %v82
    %v1175 = vadd.f32 %v1173, %v1174
    %v1176 = vadd.f32 %v1175, %v99
    %v1177 = vmul.f32 %v1164, %v69
    %v1178 = vmul.f32 %v1146, %v86
    %v1179 = vadd.f32 %v1177, %v1178
    %v1180 = vadd.f32 %v1179, %v103
    %v1181 = vxor.u32 %v1168, 2147483648
    %v1182 = vmul.f32 %v1181, 1.442695
    %v1183 = vpow.pop %v1182
    %v1184 = vadd.f32 %v1183, 1.0
    %v1185 = vrcp.pop %v1184
    %v1186 = vmul.f32 1.0, %v1185
    %v1187 = vxor.u32 %v1172, 2147483648
    %v1188 = vmul.f32 %v1187, 1.442695
    %v1189 = vpow.pop %v1188
    %v1190 = vadd.f32 %v1189, 1.0
    %v1191 = vrcp.pop %v1190
    %v1192 = vmul.f32 1.0, %v1191
    %v1193 = vtanh.pop %v1176
    %v1194 = vxor.u32 %v1180, 2147483648
    %v1195 = vmul.f32 %v1194, 1.442695
    %v1196 = vpow.pop %v1195
    %v1197 = vadd.f32 %v1196, 1.0
    %v1198 = vrcp.pop %v1197
    %v1199 = vmul.f32 1.0, %v1198
    %v1200 = vmul.f32 %v1192, %v1147
    %v1201 = vmul.f32 %v1186, %v1193
    %v1202 = vadd.f32 %v1200, %v1201
    %v1203 = vtanh.pop %v1202
    %v1204 = vmul.f32 %v1199, %v1203
    %vm1205 = vcmp.le.s32.totalorder %v106, 17
    %vm1206 = vcmp.ge.s32.totalorder %v151, 17
    %vm1207 = vmand %vm1205, %vm1206
    %v1208 = vsel %vm1207, %v1204, %v1146
    %s1209 = scalar_lea.vmem %s4, 120
    %v1210 = vld [vmem:[%s1209] sm:$0xff]
    %1212 = vset.pattern.permute.xlu0 0
    %1213 = vperm.xlu0 %1212, %v1210
    %v1214 = vpop.permute.xlu0 %1213
    %v1216 = vlaneseq
    %v1217 = vshrl.u32 %v1216, 7
    %v1218 = vsub.s32 2, %v1217
    %v1219 = vrot.slane %v1208, %v1218
    %v1220 = vmul.f32 %v1214, %v1219
    %v1221 = vadd.f32 %v1160, %v1220
    %vm1222 = vcmask 15360
    %1223 = vst.msk [vmem:[%s14] sm:$0xff] %vm1222, %v1221
    %v1224 = vld [vmem:[%s6] sm:$0xff]
    %v1225 = vld [vmem:[%s6 + $0x8] sm:$0xff]
    %v1226 = vld [vmem:[%s6 + $0x10] sm:$0xff]
    %v1227 = vld [vmem:[%s6 + $0x18] sm:$0xff]
    %v1228 = vld [vmem:[%s6 + $0x20] sm:$0xff]
    %v1229 = vld [vmem:[%s6 + $0x28] sm:$0xff]
    %v1230 = vld [vmem:[%s6 + $0x30] sm:$0xff]
    %v1231 = vld [vmem:[%s6 + $0x38] sm:$0xff]
    %v1232 = vld [vmem:[%s6 + $0x40] sm:$0xff]
    %v1233 = vld [vmem:[%s6 + $0x48] sm:$0xff]
    %v1234 = vld [vmem:[%s6 + $0x50] sm:$0xff]
    %v1235 = vld [vmem:[%s6 + $0x58] sm:$0xff]
    %v1236 = vld [vmem:[%s5] sm:$0x3]
    %v1237 = vld [vmem:[%s5 + $0x2] sm:$0x3]
    %v1238 = vld [vmem:[%s5 + $0x4] sm:$0x3]
    %v1239 = vld [vmem:[%s7] sm:$0xff]
    %v1240 = vld [vmem:[%s7 + $0x8] sm:$0xff]
    %v1241 = vld [vmem:[%s7 + $0x10] sm:$0xff]
    %v1242 = vld [vmem:[%s7 + $0x18] sm:$0xff]
    %v1245 = vunpack.c.l.s4 1966171168
    %v1246 = vunpack.c.0.s8 %v1245
    %v1247 = vlaneseq
    %v1248 = vshrl.u32 %v1247, 7
    %v1249 = vsub.s32 %v1246, %v1248
    %v1250 = vrot.slane %v1236, %v1249
    %v1251 = vcombine.high %v1250, %v1250
    %v1253 = vunpack.c.l.s4 1966171168
    %v1254 = vunpack.c.0.s8 %v1253
    %v1255 = vlaneseq
    %v1256 = vshrl.u32 %v1255, 7
    %v1257 = vsub.s32 %v1254, %v1256
    %v1258 = vrot.slane %v1250, %v1257
    %v1260 = vunpack.c.l.s4 1966171168
    %v1261 = vunpack.c.0.s8 %v1260
    %v1262 = vlaneseq
    %v1263 = vshrl.u32 %v1262, 7
    %v1264 = vsub.s32 %v1261, %v1263
    %v1265 = vrot.slane %v1251, %v1264
    %1267 = vset.pattern.permute.xlu0 0
    %1268 = vperm.xlu0 %1267, %v1224
    %v1269 = vpop.permute.xlu0 %1268
    %1272 = vset.pattern.permute.xlu0 0
    %1273 = vperm.xlu0 %1272, %v1225
    %v1274 = vpop.permute.xlu0 %1273
    %1277 = vset.pattern.permute.xlu0 0
    %1278 = vperm.xlu0 %1277, %v1226
    %v1279 = vpop.permute.xlu0 %1278
    %1282 = vset.pattern.permute.xlu0 0
    %1283 = vperm.xlu0 %1282, %v1227
    %v1284 = vpop.permute.xlu0 %1283
    %v1286 = vlaneseq
    %v1287 = vshrl.u32 %v1286, 7
    %v1288 = vsub.s32 0, %v1287
    %v1289 = vrot.slane %v1258, %v1288
    %v1290 = vlaneseq
    %v1291 = vshrl.u32 %v1290, 7
    %v1292 = vsub.s32 0, %v1291
    %v1293 = vrot.slane %v1265, %v1292
    %v1296 = vmul.f32 %v1269, %v1289
    %v1297 = vmul.f32 %v1274, %v1289
    %v1298 = vmul.f32 %v1279, %v1289
    %v1299 = vmul.f32 %v1284, %v1289
    %v1300 = vmul.f32 %v1269, %v1293
    %v1301 = vmul.f32 %v1274, %v1293
    %v1302 = vmul.f32 %v1279, %v1293
    %v1303 = vmul.f32 %v1284, %v1293
    %1305 = vset.pattern.permute.xlu0 0
    %1306 = vperm.xlu0 %1305, %v1239
    %v1307 = vpop.permute.xlu0 %1306
    %1310 = vset.pattern.permute.xlu0 0
    %1311 = vperm.xlu0 %1310, %v1240
    %v1312 = vpop.permute.xlu0 %1311
    %1315 = vset.pattern.permute.xlu0 0
    %1316 = vperm.xlu0 %1315, %v1241
    %v1317 = vpop.permute.xlu0 %1316
    %1320 = vset.pattern.permute.xlu0 0
    %1321 = vperm.xlu0 %1320, %v1242
    %v1322 = vpop.permute.xlu0 %1321
    %v1324 = vadd.f32 %v1307, %v1296
    %v1325 = vadd.f32 %v1312, %v1297
    %v1326 = vadd.f32 %v1317, %v1298
    %v1327 = vadd.f32 %v1322, %v1299
    %v1328 = vadd.f32 %v1307, %v1300
    %v1329 = vadd.f32 %v1312, %v1301
    %v1330 = vadd.f32 %v1317, %v1302
    %v1331 = vadd.f32 %v1322, %v1303
    %v1334 = vunpack.c.l.s4 1966171168
    %v1335 = vunpack.c.0.s8 %v1334
    %v1336 = vlaneseq
    %v1337 = vshrl.u32 %v1336, 7
    %v1338 = vsub.s32 %v1335, %v1337
    %v1339 = vrot.slane %v1237, %v1338
    %v1340 = vcombine.high %v1339, %v1339
    %v1342 = vunpack.c.l.s4 1966171168
    %v1343 = vunpack.c.0.s8 %v1342
    %v1344 = vlaneseq
    %v1345 = vshrl.u32 %v1344, 7
    %v1346 = vsub.s32 %v1343, %v1345
    %v1347 = vrot.slane %v1339, %v1346
    %v1349 = vunpack.c.l.s4 1966171168
    %v1350 = vunpack.c.0.s8 %v1349
    %v1351 = vlaneseq
    %v1352 = vshrl.u32 %v1351, 7
    %v1353 = vsub.s32 %v1350, %v1352
    %v1354 = vrot.slane %v1340, %v1353
    %1356 = vset.pattern.permute.xlu0 0
    %1357 = vperm.xlu0 %1356, %v1228
    %v1358 = vpop.permute.xlu0 %1357
    %1361 = vset.pattern.permute.xlu0 0
    %1362 = vperm.xlu0 %1361, %v1229
    %v1363 = vpop.permute.xlu0 %1362
    %1366 = vset.pattern.permute.xlu0 0
    %1367 = vperm.xlu0 %1366, %v1230
    %v1368 = vpop.permute.xlu0 %1367
    %1371 = vset.pattern.permute.xlu0 0
    %1372 = vperm.xlu0 %1371, %v1231
    %v1373 = vpop.permute.xlu0 %1372
    %v1375 = vlaneseq
    %v1376 = vshrl.u32 %v1375, 7
    %v1377 = vsub.s32 0, %v1376
    %v1378 = vrot.slane %v1347, %v1377
    %v1379 = vlaneseq
    %v1380 = vshrl.u32 %v1379, 7
    %v1381 = vsub.s32 0, %v1380
    %v1382 = vrot.slane %v1354, %v1381
    %v1385 = vmul.f32 %v1358, %v1378
    %v1386 = vmul.f32 %v1363, %v1378
    %v1387 = vmul.f32 %v1368, %v1378
    %v1388 = vmul.f32 %v1373, %v1378
    %v1389 = vmul.f32 %v1358, %v1382
    %v1390 = vmul.f32 %v1363, %v1382
    %v1391 = vmul.f32 %v1368, %v1382
    %v1392 = vmul.f32 %v1373, %v1382
    %v1393 = vadd.f32 %v1324, %v1385
    %v1394 = vadd.f32 %v1325, %v1386
    %v1395 = vadd.f32 %v1326, %v1387
    %v1396 = vadd.f32 %v1327, %v1388
    %v1397 = vadd.f32 %v1328, %v1389
    %v1398 = vadd.f32 %v1329, %v1390
    %v1399 = vadd.f32 %v1330, %v1391
    %v1400 = vadd.f32 %v1331, %v1392
    %v1403 = vunpack.c.l.s4 1966171168
    %v1404 = vunpack.c.0.s8 %v1403
    %v1405 = vlaneseq
    %v1406 = vshrl.u32 %v1405, 7
    %v1407 = vsub.s32 %v1404, %v1406
    %v1408 = vrot.slane %v1238, %v1407
    %v1409 = vcombine.high %v1408, %v1408
    %v1411 = vunpack.c.l.s4 1966171168
    %v1412 = vunpack.c.0.s8 %v1411
    %v1413 = vlaneseq
    %v1414 = vshrl.u32 %v1413, 7
    %v1415 = vsub.s32 %v1412, %v1414
    %v1416 = vrot.slane %v1408, %v1415
    %v1418 = vunpack.c.l.s4 1966171168
    %v1419 = vunpack.c.0.s8 %v1418
    %v1420 = vlaneseq
    %v1421 = vshrl.u32 %v1420, 7
    %v1422 = vsub.s32 %v1419, %v1421
    %v1423 = vrot.slane %v1409, %v1422
    %1425 = vset.pattern.permute.xlu0 0
    %1426 = vperm.xlu0 %1425, %v1232
    %v1427 = vpop.permute.xlu0 %1426
    %1430 = vset.pattern.permute.xlu0 0
    %1431 = vperm.xlu0 %1430, %v1233
    %v1432 = vpop.permute.xlu0 %1431
    %1435 = vset.pattern.permute.xlu0 0
    %1436 = vperm.xlu0 %1435, %v1234
    %v1437 = vpop.permute.xlu0 %1436
    %1440 = vset.pattern.permute.xlu0 0
    %1441 = vperm.xlu0 %1440, %v1235
    %v1442 = vpop.permute.xlu0 %1441
    %v1444 = vlaneseq
    %v1445 = vshrl.u32 %v1444, 7
    %v1446 = vsub.s32 0, %v1445
    %v1447 = vrot.slane %v1416, %v1446
    %v1448 = vlaneseq
    %v1449 = vshrl.u32 %v1448, 7
    %v1450 = vsub.s32 0, %v1449
    %v1451 = vrot.slane %v1423, %v1450
    %v1454 = vmul.f32 %v1427, %v1447
    %v1455 = vmul.f32 %v1432, %v1447
    %v1456 = vmul.f32 %v1437, %v1447
    %v1457 = vmul.f32 %v1442, %v1447
    %v1458 = vmul.f32 %v1427, %v1451
    %v1459 = vmul.f32 %v1432, %v1451
    %v1460 = vmul.f32 %v1437, %v1451
    %v1461 = vmul.f32 %v1442, %v1451
    %v1462 = vadd.f32 %v1393, %v1454
    %v1463 = vadd.f32 %v1394, %v1455
    %v1464 = vadd.f32 %v1395, %v1456
    %v1465 = vadd.f32 %v1396, %v1457
    %v1466 = vadd.f32 %v1397, %v1458
    %v1467 = vadd.f32 %v1398, %v1459
    %v1468 = vadd.f32 %v1399, %v1460
    %v1469 = vadd.f32 %v1400, %v1461
    %v1470 = vmax.f32 %v1462, 0.0
    %v1471 = vmax.f32 %v1463, 0.0
    %v1472 = vmax.f32 %v1464, 0.0
    %v1473 = vmax.f32 %v1465, 0.0
    %v1474 = vmax.f32 %v1466, 0.0
    %v1475 = vmax.f32 %v1467, 0.0
    %v1476 = vmax.f32 %v1468, 0.0
    %v1477 = vmax.f32 %v1469, 0.0
    %v1478 = vld [vmem:[%s8] sm:$0xff]
    %v1479 = vld [vmem:[%s8 + $0x8] sm:$0xff]
    %v1480 = vld [vmem:[%s8 + $0x10] sm:$0xff]
    %v1481 = vld [vmem:[%s8 + $0x18] sm:$0xff]
    %v1482 = vld [vmem:[%s8 + $0x20] sm:$0xff]
    %v1483 = vld [vmem:[%s8 + $0x28] sm:$0xff]
    %v1484 = vld [vmem:[%s8 + $0x30] sm:$0xff]
    %v1485 = vld [vmem:[%s8 + $0x38] sm:$0xff]
    %v1486 = vld [vmem:[%s8 + $0x40] sm:$0xff]
    %v1487 = vld [vmem:[%s8 + $0x48] sm:$0xff]
    %v1488 = vld [vmem:[%s8 + $0x50] sm:$0xff]
    %v1489 = vld [vmem:[%s8 + $0x58] sm:$0xff]
    %1491 = vset.pattern.permute.xlu0 0
    %1492 = vperm.xlu0 %1491, %v1478
    %v1493 = vpop.permute.xlu0 %1492
    %1496 = vset.pattern.permute.xlu0 0
    %1497 = vperm.xlu0 %1496, %v1479
    %v1498 = vpop.permute.xlu0 %1497
    %1501 = vset.pattern.permute.xlu0 0
    %1502 = vperm.xlu0 %1501, %v1480
    %v1503 = vpop.permute.xlu0 %1502
    %1506 = vset.pattern.permute.xlu0 0
    %1507 = vperm.xlu0 %1506, %v1481
    %v1508 = vpop.permute.xlu0 %1507
    %v1510 = vmul.f32 %v1470, %v1493
    %v1511 = vmul.f32 %v1471, %v1498
    %v1512 = vmul.f32 %v1472, %v1503
    %v1513 = vmul.f32 %v1473, %v1508
    %v1514 = vmul.f32 %v1474, %v1493
    %v1515 = vmul.f32 %v1475, %v1498
    %v1516 = vmul.f32 %v1476, %v1503
    %v1517 = vmul.f32 %v1477, %v1508
    %vm1518 = vcmask 130048
    %v1519 = vsel %vm1518, %v1510, 0.0
    %v1520 = vsel %vm1518, %v1511, 0.0
    %v1521 = vadd.f32 %v1519, %v1520
    %v1522 = vsel %vm1518, %v1512, 0.0
    %v1523 = vadd.f32 %v1521, %v1522
    %v1524 = vsel %vm1518, %v1513, 0.0
    %v1525 = vadd.f32 %v1523, %v1524
    %v1526 = vrot.slane %v1525, 4
    %v1527 = vadd.f32 %v1525, %v1526
    %v1528 = vrot.slane %v1527, 2
    %v1529 = vadd.f32 %v1527, %v1528
    %v1530 = vrot.slane %v1529, 1
    %v1531 = vadd.f32 %v1529, %v1530
    %v1532 = vsel %vm1518, %v1514, 0.0
    %v1533 = vsel %vm1518, %v1515, 0.0
    %v1534 = vadd.f32 %v1532, %v1533
    %v1535 = vsel %vm1518, %v1516, 0.0
    %v1536 = vadd.f32 %v1534, %v1535
    %v1537 = vsel %vm1518, %v1517, 0.0
    %v1538 = vadd.f32 %v1536, %v1537
    %v1539 = vrot.slane %v1538, 4
    %v1540 = vadd.f32 %v1538, %v1539
    %v1541 = vrot.slane %v1540, 2
    %v1542 = vadd.f32 %v1540, %v1541
    %v1543 = vrot.slane %v1542, 1
    %v1544 = vadd.f32 %v1542, %v1543
    %1546 = vset.pattern.permute.xlu0 0
    %1547 = vperm.xlu0 %1546, %v1482
    %v1548 = vpop.permute.xlu0 %1547
    %1551 = vset.pattern.permute.xlu0 0
    %1552 = vperm.xlu0 %1551, %v1483
    %v1553 = vpop.permute.xlu0 %1552
    %1556 = vset.pattern.permute.xlu0 0
    %1557 = vperm.xlu0 %1556, %v1484
    %v1558 = vpop.permute.xlu0 %1557
    %1561 = vset.pattern.permute.xlu0 0
    %1562 = vperm.xlu0 %1561, %v1485
    %v1563 = vpop.permute.xlu0 %1562
    %v1565 = vmul.f32 %v1470, %v1548
    %v1566 = vmul.f32 %v1471, %v1553
    %v1567 = vmul.f32 %v1472, %v1558
    %v1568 = vmul.f32 %v1473, %v1563
    %v1569 = vmul.f32 %v1474, %v1548
    %v1570 = vmul.f32 %v1475, %v1553
    %v1571 = vmul.f32 %v1476, %v1558
    %v1572 = vmul.f32 %v1477, %v1563
    %v1573 = vsel %vm1518, %v1565, 0.0
    %v1574 = vsel %vm1518, %v1566, 0.0
    %v1575 = vadd.f32 %v1573, %v1574
    %v1576 = vsel %vm1518, %v1567, 0.0
    %v1577 = vadd.f32 %v1575, %v1576
    %v1578 = vsel %vm1518, %v1568, 0.0
    %v1579 = vadd.f32 %v1577, %v1578
    %v1580 = vrot.slane %v1579, 4
    %v1581 = vadd.f32 %v1579, %v1580
    %v1582 = vrot.slane %v1581, 2
    %v1583 = vadd.f32 %v1581, %v1582
    %v1584 = vrot.slane %v1583, 1
    %v1585 = vadd.f32 %v1583, %v1584
    %v1586 = vsel %vm1518, %v1569, 0.0
    %v1587 = vsel %vm1518, %v1570, 0.0
    %v1588 = vadd.f32 %v1586, %v1587
    %v1589 = vsel %vm1518, %v1571, 0.0
    %v1590 = vadd.f32 %v1588, %v1589
    %v1591 = vsel %vm1518, %v1572, 0.0
    %v1592 = vadd.f32 %v1590, %v1591
    %v1593 = vrot.slane %v1592, 4
    %v1594 = vadd.f32 %v1592, %v1593
    %v1595 = vrot.slane %v1594, 2
    %v1596 = vadd.f32 %v1594, %v1595
    %v1597 = vrot.slane %v1596, 1
    %v1598 = vadd.f32 %v1596, %v1597
    %1600 = vset.pattern.permute.xlu0 0
    %1601 = vperm.xlu0 %1600, %v1486
    %v1602 = vpop.permute.xlu0 %1601
    %1605 = vset.pattern.permute.xlu0 0
    %1606 = vperm.xlu0 %1605, %v1487
    %v1607 = vpop.permute.xlu0 %1606
    %1610 = vset.pattern.permute.xlu0 0
    %1611 = vperm.xlu0 %1610, %v1488
    %v1612 = vpop.permute.xlu0 %1611
    %1615 = vset.pattern.permute.xlu0 0
    %1616 = vperm.xlu0 %1615, %v1489
    %v1617 = vpop.permute.xlu0 %1616
    %v1619 = vmul.f32 %v1470, %v1602
    %v1620 = vmul.f32 %v1471, %v1607
    %v1621 = vmul.f32 %v1472, %v1612
    %v1622 = vmul.f32 %v1473, %v1617
    %v1623 = vmul.f32 %v1474, %v1602
    %v1624 = vmul.f32 %v1475, %v1607
    %v1625 = vmul.f32 %v1476, %v1612
    %v1626 = vmul.f32 %v1477, %v1617
    %v1627 = vsel %vm1518, %v1619, 0.0
    %v1628 = vsel %vm1518, %v1620, 0.0
    %v1629 = vadd.f32 %v1627, %v1628
    %v1630 = vsel %vm1518, %v1621, 0.0
    %v1631 = vadd.f32 %v1629, %v1630
    %v1632 = vsel %vm1518, %v1622, 0.0
    %v1633 = vadd.f32 %v1631, %v1632
    %v1634 = vrot.slane %v1633, 4
    %v1635 = vadd.f32 %v1633, %v1634
    %v1636 = vrot.slane %v1635, 2
    %v1637 = vadd.f32 %v1635, %v1636
    %v1638 = vrot.slane %v1637, 1
    %v1639 = vadd.f32 %v1637, %v1638
    %v1640 = vsel %vm1518, %v1623, 0.0
    %v1641 = vsel %vm1518, %v1624, 0.0
    %v1642 = vadd.f32 %v1640, %v1641
    %v1643 = vsel %vm1518, %v1625, 0.0
    %v1644 = vadd.f32 %v1642, %v1643
    %v1645 = vsel %vm1518, %v1626, 0.0
    %v1646 = vadd.f32 %v1644, %v1645
    %v1647 = vrot.slane %v1646, 4
    %v1648 = vadd.f32 %v1646, %v1647
    %v1649 = vrot.slane %v1648, 2
    %v1650 = vadd.f32 %v1648, %v1649
    %v1651 = vrot.slane %v1650, 1
    %v1652 = vadd.f32 %v1650, %v1651
    %s1653 = sld [smem:[#allocation2]]
    %v1654 = vstv %s1653
    %v1655 = vadd.f32 %v1585, %v1654
    %v1656 = vadd.f32 %v1598, %v1654
    %v1657 = vld [vmem:[%s10] sm:$0xff]
    %v1658 = vld [vmem:[%s10 + $0x8] sm:$0xff]
    %vm1661 = vcmask 1041409
    %v1662 = vsel %vm1661, %v1544, %v1531
    %v1663 = vsel %vm1518, %v1662, 0
    %1665 = vmatprep.subr.mxu0 0.0
    %1666 = vmatpush1.msra.mxu0 %v1657
    %1667 = vmatprep.subr.mxu0 0.0
    %1668 = vmatpush1.msra.mxu0 %v1658
    %1669 = vmatprep.subr.mxu0 0.0
    %1670 = vmatpush1.msra.mxu0 0.0
    %1671 = vmatprep.subr.mxu0 0.0
    %1672 = vmatpush1.msra.mxu0 0.0
    %1673 = vmatprep.subr.mxu0 0.0
    %1674 = vmatpush1.msra.mxu0 0.0
    %1675 = vmatprep.subr.mxu0 0.0
    %1676 = vmatpush1.msra.mxu0 0.0
    %1677 = vmatprep.subr.mxu0 0.0
    %1678 = vmatpush1.msra.mxu0 0.0
    %1679 = vmatprep.subr.mxu0 0.0
    %1680 = vmatpush1.msra.mxu0 0.0
    %1681 = vmatprep.subr.mxu0 0.0
    %1682 = vmatpush1.msra.mxu0 0.0
    %1683 = vmatprep.subr.mxu0 0.0
    %1684 = vmatpush1.msra.mxu0 0.0
    %1685 = vmatprep.subr.mxu0 0.0
    %1686 = vmatpush1.msra.mxu0 0.0
    %1687 = vmatprep.subr.mxu0 0.0
    %1688 = vmatpush1.msra.mxu0 0.0
    %1689 = vmatprep.subr.mxu0 0.0
    %1690 = vmatpush1.msra.mxu0 0.0
    %1691 = vmatprep.subr.mxu0 0.0
    %1692 = vmatpush1.msra.mxu0 0.0
    %1693 = vmatprep.subr.mxu0 0.0
    %1694 = vmatpush1.msra.mxu0 0.0
    %1695 = vmatprep.subr.mxu0 0.0
    %1696 = vmatpush1.msra.mxu0 0.0
    %1697 = vmatprep.subr.mxu0 0.0
    %1698 = vmatpush1.msra.mxu0 0.0
    %1699 = vmatprep.subr.mxu0 0.0
    %1700 = vmatpush1.msra.mxu0 0.0
    %1701 = vmatprep.subr.mxu0 0.0
    %1702 = vmatpush1.msra.mxu0 0.0
    %1703 = vmatprep.subr.mxu0 0.0
    %1704 = vmatpush1.msra.mxu0 0.0
    %1705 = vmatprep.subr.mxu0 0.0
    %1706 = vmatpush1.msra.mxu0 0.0
    %1707 = vmatprep.subr.mxu0 0.0
    %1708 = vmatpush1.msra.mxu0 0.0
    %1709 = vmatprep.subr.mxu0 0.0
    %1710 = vmatpush1.msra.mxu0 0.0
    %1711 = vmatprep.subr.mxu0 0.0
    %1712 = vmatpush1.msra.mxu0 0.0
    %1713 = vmatprep.subr.mxu0 0.0
    %1714 = vmatpush1.msra.mxu0 0.0
    %1715 = vmatprep.subr.mxu0 0.0
    %1716 = vmatpush1.msra.mxu0 0.0
    %1717 = vmatprep.subr.mxu0 0.0
    %1718 = vmatpush1.msra.mxu0 0.0
    %1719 = vmatprep.subr.mxu0 0.0
    %1720 = vmatpush1.msra.mxu0 0.0
    %1721 = vmatprep.subr.mxu0 0.0
    %1722 = vmatpush1.msra.mxu0 0.0
    %1723 = vmatprep.subr.mxu0 0.0
    %1724 = vmatpush1.msra.mxu0 0.0
    %1725 = vmatprep.subr.mxu0 0.0
    %1726 = vmatpush1.msra.mxu0 0.0
    %1727 = vmatprep.subr.mxu0 0.0
    %1728 = vmatpush1.msra.mxu0 0.0
    %1729 = vmatprep.mubr.f32.mxu0 0.0
    %1730 = vmatmul.mubr.f32.gmra.mrb[0].mxu0 %v1663
    %v1731 = vpop.f32.mrb[0].mxu0
    %v1732 = vadd.f32 0.0, %v1731
    %v1733 = vpop.f32.mrb[0].mxu0
    %1734 = vdwg.mxu0
    %v1736 = vrot.slane %v1732, 1
    %v1739 = vadd.f32 %v1655, %v1732
    %v1740 = vadd.f32 %v1656, %v1736
    %v1741 = vld [vmem:[%s11] sm:$0xff]
    %v1742 = vld [vmem:[%s11 + $0x8] sm:$0xff]
    %v1745 = vsel %vm1661, %v1652, %v1639
    %v1746 = vsel %vm1518, %v1745, 0
    %1748 = vmatprep.subr.mxu0 0.0
    %1749 = vmatpush1.msra.mxu0 %v1741
    %1750 = vmatprep.subr.mxu0 0.0
    %1751 = vmatpush1.msra.mxu0 %v1742
    %1752 = vmatprep.subr.mxu0 0.0
    %1753 = vmatpush1.msra.mxu0 0.0
    %1754 = vmatprep.subr.mxu0 0.0
    %1755 = vmatpush1.msra.mxu0 0.0
    %1756 = vmatprep.subr.mxu0 0.0
    %1757 = vmatpush1.msra.mxu0 0.0
    %1758 = vmatprep.subr.mxu0 0.0
    %1759 = vmatpush1.msra.mxu0 0.0
    %1760 = vmatprep.subr.mxu0 0.0
    %1761 = vmatpush1.msra.mxu0 0.0
    %1762 = vmatprep.subr.mxu0 0.0
    %1763 = vmatpush1.msra.mxu0 0.0
    %1764 = vmatprep.subr.mxu0 0.0
    %1765 = vmatpush1.msra.mxu0 0.0
    %1766 = vmatprep.subr.mxu0 0.0
    %1767 = vmatpush1.msra.mxu0 0.0
    %1768 = vmatprep.subr.mxu0 0.0
    %1769 = vmatpush1.msra.mxu0 0.0
    %1770 = vmatprep.subr.mxu0 0.0
    %1771 = vmatpush1.msra.mxu0 0.0
    %1772 = vmatprep.subr.mxu0 0.0
    %1773 = vmatpush1.msra.mxu0 0.0
    %1774 = vmatprep.subr.mxu0 0.0
    %1775 = vmatpush1.msra.mxu0 0.0
    %1776 = vmatprep.subr.mxu0 0.0
    %1777 = vmatpush1.msra.mxu0 0.0
    %1778 = vmatprep.subr.mxu0 0.0
    %1779 = vmatpush1.msra.mxu0 0.0
    %1780 = vmatprep.subr.mxu0 0.0
    %1781 = vmatpush1.msra.mxu0 0.0
    %1782 = vmatprep.subr.mxu0 0.0
    %1783 = vmatpush1.msra.mxu0 0.0
    %1784 = vmatprep.subr.mxu0 0.0
    %1785 = vmatpush1.msra.mxu0 0.0
    %1786 = vmatprep.subr.mxu0 0.0
    %1787 = vmatpush1.msra.mxu0 0.0
    %1788 = vmatprep.subr.mxu0 0.0
    %1789 = vmatpush1.msra.mxu0 0.0
    %1790 = vmatprep.subr.mxu0 0.0
    %1791 = vmatpush1.msra.mxu0 0.0
    %1792 = vmatprep.subr.mxu0 0.0
    %1793 = vmatpush1.msra.mxu0 0.0
    %1794 = vmatprep.subr.mxu0 0.0
    %1795 = vmatpush1.msra.mxu0 0.0
    %1796 = vmatprep.subr.mxu0 0.0
    %1797 = vmatpush1.msra.mxu0 0.0
    %1798 = vmatprep.subr.mxu0 0.0
    %1799 = vmatpush1.msra.mxu0 0.0
    %1800 = vmatprep.subr.mxu0 0.0
    %1801 = vmatpush1.msra.mxu0 0.0
    %1802 = vmatprep.subr.mxu0 0.0
    %1803 = vmatpush1.msra.mxu0 0.0
    %1804 = vmatprep.subr.mxu0 0.0
    %1805 = vmatpush1.msra.mxu0 0.0
    %1806 = vmatprep.subr.mxu0 0.0
    %1807 = vmatpush1.msra.mxu0 0.0
    %1808 = vmatprep.subr.mxu0 0.0
    %1809 = vmatpush1.msra.mxu0 0.0
    %1810 = vmatprep.subr.mxu0 0.0
    %1811 = vmatpush1.msra.mxu0 0.0
    %1812 = vmatprep.mubr.f32.mxu0 0.0
    %1813 = vmatmul.mubr.f32.gmra.mrb[0].mxu0 %v1746
    %v1814 = vpop.f32.mrb[0].mxu0
    %v1815 = vadd.f32 0.0, %v1814
    %v1816 = vpop.f32.mrb[0].mxu0
    %1817 = vdwg.mxu0
    %v1819 = vrot.slane %v1815, 1
    %v1822 = vadd.f32 %v1739, %v1815
    %v1823 = vadd.f32 %v1740, %v1819
    %v1824 = vmax.f32 %v1822, 0.0
    %v1825 = vmax.f32 %v1823, 0.0
    %v1826 = vld [vmem:[%s12] sm:$0xff]
    %v1827 = vld [vmem:[%s12 + $0x8] sm:$0xff]
    %v1828 = vld [vmem:[%s13] sm:$0x1]
    %v1830 = vlaneseq
    %v1831 = vshrl.u32 %v1830, 7
    %v1832 = vsub.s32 0, %v1831
    %v1833 = vrot.slane %v1828, %v1832
    %v1837 = vrot.slane %v1825, 7
    %v1838 = vsel %vm1661, %v1837, %v1824
    %v1839 = vsel %vm1518, %v1838, 0
    %1841 = vmatprep.subr.mxu0 0.0
    %1842 = vmatpush1.msra.mxu0 %v1826
    %1843 = vmatprep.subr.mxu0 0.0
    %1844 = vmatpush1.msra.mxu0 %v1827
    %1845 = vmatprep.subr.mxu0 0.0
    %1846 = vmatpush1.msra.mxu0 0.0
    %1847 = vmatprep.subr.mxu0 0.0
    %1848 = vmatpush1.msra.mxu0 0.0
    %1849 = vmatprep.subr.mxu0 0.0
    %1850 = vmatpush1.msra.mxu0 0.0
    %1851 = vmatprep.subr.mxu0 0.0
    %1852 = vmatpush1.msra.mxu0 0.0
    %1853 = vmatprep.subr.mxu0 0.0
    %1854 = vmatpush1.msra.mxu0 0.0
    %1855 = vmatprep.subr.mxu0 0.0
    %1856 = vmatpush1.msra.mxu0 0.0
    %1857 = vmatprep.subr.mxu0 0.0
    %1858 = vmatpush1.msra.mxu0 0.0
    %1859 = vmatprep.subr.mxu0 0.0
    %1860 = vmatpush1.msra.mxu0 0.0
    %1861 = vmatprep.subr.mxu0 0.0
    %1862 = vmatpush1.msra.mxu0 0.0
    %1863 = vmatprep.subr.mxu0 0.0
    %1864 = vmatpush1.msra.mxu0 0.0
    %1865 = vmatprep.subr.mxu0 0.0
    %1866 = vmatpush1.msra.mxu0 0.0
    %1867 = vmatprep.subr.mxu0 0.0
    %1868 = vmatpush1.msra.mxu0 0.0
    %1869 = vmatprep.subr.mxu0 0.0
    %1870 = vmatpush1.msra.mxu0 0.0
    %1871 = vmatprep.subr.mxu0 0.0
    %1872 = vmatpush1.msra.mxu0 0.0
    %1873 = vmatprep.subr.mxu0 0.0
    %1874 = vmatpush1.msra.mxu0 0.0
    %1875 = vmatprep.subr.mxu0 0.0
    %1876 = vmatpush1.msra.mxu0 0.0
    %1877 = vmatprep.subr.mxu0 0.0
    %1878 = vmatpush1.msra.mxu0 0.0
    %1879 = vmatprep.subr.mxu0 0.0
    %1880 = vmatpush1.msra.mxu0 0.0
    %1881 = vmatprep.subr.mxu0 0.0
    %1882 = vmatpush1.msra.mxu0 0.0
    %1883 = vmatprep.subr.mxu0 0.0
    %1884 = vmatpush1.msra.mxu0 0.0
    %1885 = vmatprep.subr.mxu0 0.0
    %1886 = vmatpush1.msra.mxu0 0.0
    %1887 = vmatprep.subr.mxu0 0.0
    %1888 = vmatpush1.msra.mxu0 0.0
    %1889 = vmatprep.subr.mxu0 0.0
    %1890 = vmatpush1.msra.mxu0 0.0
    %1891 = vmatprep.subr.mxu0 0.0
    %1892 = vmatpush1.msra.mxu0 0.0
    %1893 = vmatprep.subr.mxu0 0.0
    %1894 = vmatpush1.msra.mxu0 0.0
    %1895 = vmatprep.subr.mxu0 0.0
    %1896 = vmatpush1.msra.mxu0 0.0
    %1897 = vmatprep.subr.mxu0 0.0
    %1898 = vmatpush1.msra.mxu0 0.0
    %1899 = vmatprep.subr.mxu0 0.0
    %1900 = vmatpush1.msra.mxu0 0.0
    %1901 = vmatprep.subr.mxu0 0.0
    %1902 = vmatpush1.msra.mxu0 0.0
    %1903 = vmatprep.subr.mxu0 0.0
    %1904 = vmatpush1.msra.mxu0 0.0
    %1905 = vmatprep.mubr.f32.mxu0 0.0
    %1906 = vmatmul.mubr.f32.gmra.mrb[0].mxu0 %v1839
    %v1907 = vpop.f32.mrb[0].mxu0
    %v1908 = vadd.f32 %v1833, %v1907
    %v1909 = vpop.f32.mrb[0].mxu0
    %1910 = vdwg.mxu0
    %vm1911 = vcmask 58368
    %1912 = vst.msk [vmem:[#allocation3] sm:$0x3] %vm1911, %v1908
    // Predicated region
    $region58: #{tpu_custom_call.1} parent=1 // pred_check
      _
    $region59: #{tpu_custom_call.1} parent=1 // pred_check_branch
      %1914 = sbr.rel (0) target = $region61
    $region60: #{tpu_custom_call.1} parent=1 // pred_region
      _
    $region61: #{tpu_custom_call.1} parent=1 // pred_fallthru
      _
    // Predicated region
    $region62: #{tpu_custom_call.1} parent=1 // pred_check
      _
    $region63: #{tpu_custom_call.1} parent=1 // pred_check_branch
      %1916 = sbr.rel (0) target = $region65
    $region64: #{tpu_custom_call.1} parent=1 // pred_region
      %s1918 = ssub.s32 32, 32
      %1919 = vsyncadd [#allocation4], %s1918
      %s1921 = sshll.u32 [#allocation3], 4
      %s1922 = int_to_ptr.vmem [resolvable:$true] %s1921
      %1924 = dma.vmem_to_hbm [thread:$0]  %s1922, 32, %s15, [#allocation4]
    $region65: #{tpu_custom_call.1} parent=1 // pred_fallthru
      _
    // Predicated region
    $region66: #{tpu_custom_call.1} parent=1 // pred_check
      _
    $region67: #{tpu_custom_call.1} parent=1 // pred_check_branch
      %1926 = sbr.rel (0) target = $region69
    $region68: #{tpu_custom_call.1} parent=1 // pred_region
      _
    $region69: #{tpu_custom_call.1} parent=1 // pred_fallthru
      _
    // Predicated region
    $region70: #{tpu_custom_call.1} parent=1 // pred_check
      _
    $region71: #{tpu_custom_call.1} parent=1 // pred_check_branch
      %1928 = sbr.rel (0) target = $region73
    $region72: #{tpu_custom_call.1} parent=1 // pred_region
      %1929 = dma.done [#allocation4], 32
    $region73: #{tpu_custom_call.1} parent=1 // pred_fallthru
      _
    %1930 = vsyncpa [#allocation4], 1

</llo_original>
